<compile_context>
chip_gen: v6e
topology: v6e:2x2x1
jax: 0.10.0
libtpu: 0.0.40
codegen_flags: <defaults>
</compile_context>

<pallas_src>
import math

import jax
import jax.numpy as jnp
from jax import lax
from jax.experimental import pallas as pl
from jax.experimental.pallas import tpu as pltpu

# ----------------------------- Options (small, synthetic) -------------------
B = 2              # batch
V_IN = 2           # input views
V_OUT = 2          # rendered / supervised views
C = 3
H = W = 32         # image resolution
P = H * W          # 1024 flattened pixels
CAM_DIM = 16       # camera embedding dim per view
SPLAT = 16         # opt.splat_size (triplane resolution)
APP_NC = 8         # opt.app_n_comp
DEN_NC = 4         # opt.density_n_comp
N_SAMPLES = 32     # opt.n_sample
ZNEAR, ZFAR = 1.2, 2.8
BETA = 0.05        # Laplace density beta (tensorRF.lap_density)
SPHERE_R = 0.5
LAMBDA_LPIPS = 0.0

FEAT_DIM = V_IN * C + V_IN * CAM_DIM               # 38
APP_PLANES = 3 * APP_NC * SPLAT * SPLAT            # 6144
APP_LINES = 3 * APP_NC * SPLAT                     # 384
DEN_PLANES = 3 * DEN_NC * SPLAT * SPLAT            # 3072
DEN_LINES = 3 * DEN_NC * SPLAT                     # 192
OUT_DIM = APP_PLANES + APP_LINES + DEN_PLANES + DEN_LINES  # 9792

# ---- lane/sublane-dense padded shapes for the Pallas head matmul ----
M_PAD = 8                                      # batch rows padded to 8 sublanes
FEAT_PAD = 128                                 # K padded 38 -> 128
OUT_PAD = ((OUT_DIM + 127) // 128) * 128       # 9792 -> 9856 (77 x 128)

# ---- ray packing for the fused render + loss kernel ----
N_IMG = B * V_OUT              # 4 rendered/supervised images
R_TOTAL = N_IMG * P            # 4096 rays total
SL = 8                         # sublane axis (all 8 sublanes used)
LN = R_TOTAL // SL             # 512 lanes
NBLK = 2                       # lane-axis grid blocks (v7x: one per TensorCore)
LN_BLK = LN // NBLK            # 256 lanes / block (multiple of 128 -> unmasked)
assert R_TOTAL % SL == 0 and LN % NBLK == 0 and LN_BLK % 128 == 0


# ----------------------------- Pallas kernels -------------------------------
def svd_head_kernel(x_ref, w_ref, b_ref, o_ref):
    """Linear head producing all triplane components in one lane-dense MXU matmul."""
    o_ref[...] = (
        jnp.dot(x_ref[...], w_ref[...], preferred_element_type=jnp.float32)
        + b_ref[...]
    )


def render_loss_kernel(sig_ref, o_ref, d_ref, gti_ref, gta_ref, m_ref,
                       shade_ref, alpha_ref, alb_ref, pred_ref, sums_ref):
    """Fused SDF volume rendering + GT compositing + MSE partial sums.

    Layout: per-ray scalar fields are (SL, LN_BLK) tiles (rays packed over
    sublanes x lanes -> full vregs); xyz fields are (3, SL, LN_BLK), indexed
    per channel so all elementwise math stays 2-D and full-width.
    One grid step renders SL*LN_BLK rays through all N_SAMPLES samples.
    """
    s = sig_ref[...]                          # (SL, LN_BLK) density scale/ray
    ox, oy, oz = o_ref[0], o_ref[1], o_ref[2]
    dx, dy, dz = d_ref[0], d_ref[1], d_ref[2]

    # loop-invariant scalars hoisted out of the sample loop
    dt = (ZFAR - ZNEAR) / N_SAMPLES
    t_step = (ZFAR - ZNEAR) / (N_SAMPLES - 1)
    inv_beta = 1.0 / BETA

    def body(k, carry):
        T, ax, ay, az, shd = carry
        t = ZNEAR + t_step * k.astype(jnp.float32)
        px = ox + t * dx
        py = oy + t * dy
        pz = oz + t * dz
        r2 = px * px + py * py + pz * pz
        inv_r = lax.rsqrt(jnp.maximum(r2, 1e-12))   # one EUP op (no sqrt+div)
        x = SPHERE_R - r2 * inv_r                   # -sdf
        # Laplace CDF (VolSDF-style SDF -> density) with a single exp
        e = jnp.exp(-jnp.abs(x) * inv_beta)
        psi = jnp.where(x > 0.0, 1.0 - 0.5 * e, 0.5 * e)
        a = 1.0 - jnp.exp(-(s * psi) * dt)
        w = T * a
        ax = ax + w * jnp.clip(0.5 * (px + 1.0), 0.0, 1.0)
        ay = ay + w * jnp.clip(0.5 * (py + 1.0), 0.0, 1.0)
        az = az + w * jnp.clip(0.5 * (pz + 1.0), 0.0, 1.0)
        ddotn = (dx * px + dy * py + dz * pz) * inv_r
        shd = shd + w * jnp.clip(0.5 - 0.5 * ddotn, 0.0, 1.0)
        T = T * (1.0 - a)
        return T, ax, ay, az, shd

    one = jnp.ones_like(s)
    zero = jnp.zeros_like(s)
    T, ax, ay, az, shd = lax.fori_loop(
        0, N_SAMPLES, body, (one, zero, zero, zero, zero), unroll=8)

    # white background compositing (bg_color = ones(3))
    shade = shd + T                    # single-channel shading
    alpha = 1.0 - T
    albx, alby, albz = ax + T, ay + T, az + T
    prx, pry, prz = shade * albx, shade * alby, shade * albz

    shade_ref[...] = shade
    alpha_ref[...] = alpha
    alb_ref[0] = albx
    alb_ref[1] = alby
    alb_ref[2] = albz
    pred_ref[0] = prx
    pred_ref[1] = pry
    pred_ref[2] = prz

    # ---- fused loss epilogue: GT compositing + squared-error partial sums ----
    m = m_ref[...]
    bg = 1.0 - m                       # bg_color = 1 per channel
    gix = gti_ref[0] * m + bg
    giy = gti_ref[1] * m + bg
    giz = gti_ref[2] * m + bg
    gax = gta_ref[0] * m + bg
    gay = gta_ref[1] * m + bg
    gaz = gta_ref[2] * m + bg

    sums_ref[0, 0] = (jnp.sum((prx - gix) ** 2) + jnp.sum((pry - giy) ** 2)
                      + jnp.sum((prz - giz) ** 2))
    sums_ref[0, 1] = jnp.sum((alpha - m) ** 2)
    sums_ref[0, 2] = (jnp.sum((albx - gax) ** 2) + jnp.sum((alby - gay) ** 2)
                      + jnp.sum((albz - gaz) ** 2))


# ----------------------------- Wrappers --------------------------------------
def init_params(key):
    # Logical head weight is head_w[:FEAT_DIM, :OUT_DIM]; the rest is MXU-
    # alignment padding (the padded feature columns are zero so it is inert).
    head_w = 0.05 * jax.random.normal(key, (FEAT_PAD, OUT_PAD), jnp.float32)
    head_b = jnp.zeros((1, OUT_PAD), jnp.float32)
    return {"head_w": head_w, "head_b": head_b}


def forward_svd_volume(images_vit, source_camera, params):
    """Stand-in for LDM_SVD_Net: pooled image + camera features -> linear head."""
    Bn = images_vit.shape[0]
    img_feat = images_vit.mean(axis=(3, 4)).reshape(Bn, V_IN * C)
    cam_feat = source_camera.reshape(Bn, V_IN * CAM_DIM)
    feat = jnp.concatenate([img_feat, cam_feat], axis=-1).astype(jnp.float32)
    feat_p = jnp.zeros((M_PAD, FEAT_PAD), jnp.float32).at[:Bn, :FEAT_DIM].set(feat)

    out_p = pl.pallas_call(
        svd_head_kernel,
        out_shape=jax.ShapeDtypeStruct((M_PAD, OUT_PAD), jnp.float32),
        grid=(1,),
        in_specs=[
            pl.BlockSpec((M_PAD, FEAT_PAD), lambda i: (0, 0)),
            pl.BlockSpec((FEAT_PAD, OUT_PAD), lambda i: (0, 0)),
            pl.BlockSpec((1, OUT_PAD), lambda i: (0, 0)),
        ],
        out_specs=pl.BlockSpec((M_PAD, OUT_PAD), lambda i: (0, 0)),
    )(feat_p, params["head_w"], params["head_b"])
    out = out_p[:Bn, :OUT_DIM]

    o0 = APP_PLANES
    o1 = o0 + APP_LINES
    o2 = o1 + DEN_PLANES
    results = {
        "app_planes": out[:, :o0].reshape(Bn, 3, APP_NC, SPLAT, SPLAT),
        "app_lines": out[:, o0:o1].reshape(Bn, 3, APP_NC, SPLAT, 1),
        "density_planes": out[:, o1:o2].reshape(Bn, 3, DEN_NC, SPLAT, SPLAT),
        "density_lines": out[:, o2:].reshape(Bn, 3, DEN_NC, SPLAT, 1),
    }
    return results


def render_and_loss(svd_volume, rays_o, rays_d, gt_images, gt_albedos, gt_masks):
    """Fused stand-in for tensorRF(...) + background compositing + MSE sums."""
    Bn = rays_o.shape[0]

    # ---- pack everything into (SL, LN) / (3, SL, LN) ray tiles ----
    o_p = rays_o.reshape(R_TOTAL, 3).T.reshape(3, SL, LN).astype(jnp.float32)
    d_p = rays_d.reshape(R_TOTAL, 3).T.reshape(3, SL, LN).astype(jnp.float32)
    gti_p = (gt_images.reshape(N_IMG, 3, P).transpose(1, 0, 2)
             .reshape(3, SL, LN).astype(jnp.float32))
    gta_p = (gt_albedos.reshape(N_IMG, 3, P).transpose(1, 0, 2)
             .reshape(3, SL, LN).astype(jnp.float32))
    m_p = gt_masks.reshape(SL, LN).astype(jnp.float32)

    # per-image density scale from the density planes, pre-broadcast per ray
    dplanes = svd_volume["density_planes"]
    dens_b = 2.0 + 4.0 * jax.nn.sigmoid(dplanes.reshape(Bn, -1).mean(axis=-1))
    dens_img = jnp.repeat(dens_b, V_OUT)                         # (N_IMG,)
    sig_p = jnp.broadcast_to(dens_img[:, None], (N_IMG, P)).reshape(SL, LN)
    sig_p = sig_p.astype(jnp.float32)

    vec2 = lambda: pl.BlockSpec((SL, LN_BLK), lambda i: (0, i))
    vec3 = lambda: pl.BlockSpec((3, SL, LN_BLK), lambda i: (0, 0, i))

    shade_p, alpha_p, alb_p, pred_p, sums = pl.pallas_call(
        render_loss_kernel,
        out_shape=(
            jax.ShapeDtypeStruct((SL, LN), jnp.float32),          # shading (1ch)
            jax.ShapeDtypeStruct((SL, LN), jnp.float32),          # alpha
            jax.ShapeDtypeStruct((3, SL, LN), jnp.float32),       # albedo
            jax.ShapeDtypeStruct((3, SL, LN), jnp.float32),       # pred image
            jax.ShapeDtypeStruct((NBLK, 3), jnp.float32),         # sq-err sums
        ),
        grid=(NBLK,),
        in_specs=[vec2(), vec3(), vec3(), vec3(), vec3(), vec2()],
        out_specs=[
            vec2(), vec2(), vec3(), vec3(),
            pl.BlockSpec((1, 3), lambda i: (i, 0),
                         memory_space=pltpu.MemorySpace.SMEM),
        ],
        compiler_params=pltpu.CompilerParams(
            dimension_semantics=("parallel",)),
    )(sig_p, o_p, d_p, gti_p, gta_p, m_p)

    return shade_p, alpha_p, alb_p, pred_p, sums


def ldm_sdf_forward(data, params):
    Bn = data["input"].shape[0]

    # ---- forward_svd_volume ----
    svd_volume = forward_svd_volume(data["input_vit"], data["source_camera"],
                                    params)

    # ---- fused tensorRF rendering + GT compositing + MSE sums ----
    shade_p, alpha_p, alb_p, pred_p, sums = render_and_loss(
        svd_volume, data["all_rays_o"], data["all_rays_d"],
        data["images_output"], data["albedos_output"], data["masks_output"])

    # ---- unpack ray tiles back to (B, V_OUT, C, H, W) ----
    def unpack1(x):                     # (SL, LN) -> (N_IMG, P)
        return x.reshape(N_IMG, P)

    def unpack3(x):                     # (3, SL, LN) -> (N_IMG, 3, P)
        return x.reshape(3, N_IMG, P).transpose(1, 0, 2)

    shade_img = unpack1(shade_p)
    pred_shading = jnp.broadcast_to(shade_img[:, None, :], (N_IMG, 3, P))
    alphas_pred = unpack1(alpha_p).reshape(Bn, V_OUT, 1, H, W)
    pred_albedos = unpack3(alb_p).reshape(Bn, V_OUT, 3, H, W)
    images_pred = unpack3(pred_p).reshape(Bn, V_OUT, 3, H, W)

    tot = jnp.sum(sums, axis=0)
    mse_img = tot[0] / (N_IMG * 3 * P)
    mse_alpha = tot[1] / (N_IMG * 1 * P)
    mse_albedo = tot[2] / (N_IMG * 3 * P)
    loss_mse = mse_img + mse_alpha + mse_albedo
    loss = loss_mse
    # TODO(synk): lambda_lpips > 0 branch (VGG LPIPS) not translatable.
    psnr = -10.0 * jnp.log10(mse_img)

    results = {
        "svd_volume": svd_volume,
        "pred_shading": pred_shading.reshape(Bn, V_OUT, 3, H, W),
        "alphas_pred": alphas_pred,
        "pred_albedos": pred_albedos,
        "images_pred": images_pred,
        "loss": loss,
        "psnr": psnr,
    }
    return results


# ----------------------------- Synthetic data --------------------------------
def make_rays():
    us = (jnp.arange(W, dtype=jnp.float32) + 0.5) / W - 0.5
    vs = (jnp.arange(H, dtype=jnp.float32) + 0.5) / H - 0.5
    vv, uu = jnp.meshgrid(vs, us, indexing="ij")
    dirs = jnp.stack([uu, vv, jnp.ones_like(uu)], axis=-1).reshape(P, 3)
    dirs = dirs / jnp.linalg.norm(dirs, axis=-1, keepdims=True)

    all_o, all_d = [], []
    for v in range(V_OUT):
        ang = 2.0 * math.pi * v / V_OUT
        c, s = math.cos(ang), math.sin(ang)
        Rm = jnp.array([[c, 0.0, s], [0.0, 1.0, 0.0], [-s, 0.0, c]], jnp.float32)
        cam_pos = Rm @ jnp.array([0.0, 0.0, -2.0], jnp.float32)
        d_world = dirs @ Rm.T
        o_world = jnp.broadcast_to(cam_pos, (P, 3))
        all_o.append(o_world)
        all_d.append(d_world)
    rays_o = jnp.stack(all_o, axis=0)[None].repeat(B, axis=0)   # (B, V_OUT, P, 3)
    rays_d = jnp.stack(all_d, axis=0)[None].repeat(B, axis=0)
    return rays_o, rays_d


def make_data(key):
    ks = jax.random.split(key, 6)
    rays_o, rays_d = make_rays()
    data = {
        "input": jax.random.uniform(ks[0], (B, V_IN, C, H, W), jnp.float32),
        "input_vit": jax.random.uniform(ks[1], (B, V_IN, C, H, W), jnp.float32),
        "source_camera": jax.random.normal(ks[2], (B, V_IN, CAM_DIM), jnp.float32),
        "all_rays_o": rays_o,
        "all_rays_d": rays_d,
        "images_output": jax.random.uniform(ks[3], (B, V_OUT, 3, H, W), jnp.float32),
        "albedos_output": jax.random.uniform(ks[4], (B, V_OUT, 3, H, W), jnp.float32),
        "masks_output": (jax.random.uniform(ks[5], (B, V_OUT, 1, H, W)) > 0.3
                         ).astype(jnp.float32),
    }
    return data


if __name__ == "__main__":
    key = jax.random.PRNGKey(0)
    k_param, k_data = jax.random.split(key)
    params = init_params(k_param)
    data = make_data(k_data)

    results = ldm_sdf_forward(data, params)
    jax.block_until_ready(results)

    assert results["images_pred"].shape == (B, V_OUT, 3, H, W)
    assert results["alphas_pred"].shape == (B, V_OUT, 1, H, W)
    assert results["pred_shading"].shape == (B, V_OUT, 3, H, W)
    assert results["svd_volume"]["app_planes"].shape == (B, 3, APP_NC, SPLAT, SPLAT)
    assert bool(jnp.isfinite(results["loss"])) and bool(jnp.isfinite(results["psnr"]))
    print("KERNEL_OK")
</pallas_src>

<mosaic_0001>
module attributes {stable_mosaic.version = 11 : i64} {
  func.func @svd_head_kernel(%arg0: i32, %arg1: memref<8x128xf32, #tpu.memory_space<vmem>>, %arg2: memref<128x9856xf32, #tpu.memory_space<vmem>>, %arg3: memref<1x9856xf32, #tpu.memory_space<vmem>>, %arg4: memref<8x9856xf32, #tpu.memory_space<vmem>>) attributes {dimension_semantics = [#tpu.dimension_semantics<arbitrary>], iteration_bounds = array<i64: 1>, scalar_prefetch = 0 : i64, scratch_operands = 0 : i64, tpu.core_type = #tpu.core_type<tc>, window_params = [{pipeline_mode = #tpu.pipeline_mode<synchronous>, transform_indices = @transform_0, window_bounds = array<i64: 8, 128>}, {pipeline_mode = #tpu.pipeline_mode<synchronous>, transform_indices = @transform_1, window_bounds = array<i64: 128, 9856>}, {pipeline_mode = #tpu.pipeline_mode<synchronous>, transform_indices = @transform_2, window_bounds = array<i64: 1, 9856>}, {pipeline_mode = #tpu.pipeline_mode<synchronous>, transform_indices = @transform_3, window_bounds = array<i64: 8, 9856>}]} {
    %c0 = arith.constant 0 : index
    %c0_0 = arith.constant 0 : index
    %0 = vector.load %arg1[%c0, %c0_0] : memref<8x128xf32, #tpu.memory_space<vmem>>, vector<8x128xf32>
    %c0_1 = arith.constant 0 : index
    %c0_2 = arith.constant 0 : index
    %1 = vector.load %arg2[%c0_1, %c0_2] : memref<128x9856xf32, #tpu.memory_space<vmem>>, vector<128x9856xf32>
    %cst = arith.constant dense<0.000000e+00> : vector<8x9856xf32>
    %2 = tpu.matmul %0, %1, %cst {dimension_numbers = #tpu.dot_dimension_numbers<[1], [0], [0], [1], [0, 0, 1, 1], [], []>} : vector<8x128xf32>, vector<128x9856xf32>, vector<8x9856xf32> -> vector<8x9856xf32>
    %c0_3 = arith.constant 0 : index
    %c0_4 = arith.constant 0 : index
    %3 = vector.load %arg3[%c0_3, %c0_4] : memref<1x9856xf32, #tpu.memory_space<vmem>>, vector<1x9856xf32>
    %4 = vector.broadcast %3 : vector<1x9856xf32> to vector<8x9856xf32>
    %5 = arith.addf %2, %4 : vector<8x9856xf32>
    %c0_5 = arith.constant 0 : index
    %c0_6 = arith.constant 0 : index
    %6 = vector.load %arg4[%c0_5, %c0_6] : memref<8x9856xf32, #tpu.memory_space<vmem>>, vector<8x9856xf32>
    tpu.vector_store %arg4[%c0_5, %c0_6], %5 {strides = array<i32>} : memref<8x9856xf32, #tpu.memory_space<vmem>>, vector<8x9856xf32>,
    return
  }
  func.func @transform_0(%arg0: i32) -> (i32, i32) {
    %c0_i32 = arith.constant 0 : i32
    %c0_i32_0 = arith.constant 0 : i32
    %c0_i32_1 = arith.constant 0 : i32
    return %c0_i32, %c0_i32_0 : i32, i32
  }
  func.func @transform_1(%arg0: i32) -> (i32, i32) {
    %c0_i32 = arith.constant 0 : i32
    %c0_i32_0 = arith.constant 0 : i32
    %c0_i32_1 = arith.constant 0 : i32
    return %c0_i32, %c0_i32_0 : i32, i32
  }
  func.func @transform_2(%arg0: i32) -> (i32, i32) {
    %c0_i32 = arith.constant 0 : i32
    %c0_i32_0 = arith.constant 0 : i32
    %c0_i32_1 = arith.constant 0 : i32
    return %c0_i32, %c0_i32_0 : i32, i32
  }
  func.func @transform_3(%arg0: i32) -> (i32, i32) {
    %c0_i32 = arith.constant 0 : i32
    %c0_i32_0 = arith.constant 0 : i32
    %c0_i32_1 = arith.constant 0 : i32
    return %c0_i32, %c0_i32_0 : i32, i32
  }
}

</mosaic_0001>

<llo_original>
// kernel: tpu_custom_call.1
$region0: #{tpu_custom_call.1}
  #allocation0 [shape = 'u32[]', space=smem, size = 0x4, offset = 0x4, fixed_abs, tag = 'smem constant byte address 0x4 - core index']
  #allocation1 [shape = 'u32[144,128]{1,0:T(1,128)}', space=vmem, size = 0x12000, scoped, tag = 'internal scratch']
  %s0 = inlined_call_operand.hbm [shape: f32[8,128], index: 0, kind: input, shape index: {}]
  %s1 = inlined_call_operand.hbm [shape: f32[128,9856], index: 1, kind: input, shape index: {}]
  %s2 = inlined_call_operand.hbm [shape: f32[1,9856], index: 2, kind: input, shape index: {}]
  %s3 = inlined_call_operand.hbm [shape: f32[8,9856], index: 3, kind: output, shape index: {}]
  %s4 = sld [smem:[#allocation0]]
  $region34: #{tpu_custom_call.1} parent=0
    _
  %s6 = ssub.s32 1, %s4
  %s7 = scalar_select 0, %s6, %s4
  $region1: #{tpu_custom_call.1} parent=0
    #allocation2 [shape = 'u8[4096]{0}', space=vmem, size = 0x1000, scoped, tag = 'input window, operand 0, single buffered']
    #allocation3 [shape = 's32[1]{0}', space=sflag, size = 0x4, scoped, tag = 'scoped memory for tpu_custom_call.1']
    #allocation4 [shape = 's32[1]{0}', space=sflag, size = 0x4, scoped, tag = 'scoped memory for tpu_custom_call.1']
    #allocation5 [shape = 'u8[5046272]{0}', space=vmem, size = 0x4d0000, scoped, tag = 'input window, operand 1, single buffered']
    #allocation6 [shape = 's32[1]{0}', space=sflag, size = 0x4, scoped, tag = 'scoped memory for tpu_custom_call.1']
    #allocation7 [shape = 'u8[39424]{0}', space=vmem, size = 0x9c00, scoped, tag = 'input window, operand 2, single buffered']
    #allocation8 [shape = 'u8[315392]{0}', space=vmem, size = 0x4d000, scoped, tag = 'output window, operand 0, single buffered']
    %8 = vsyncpa [#allocation3], 0
    %9 = vsyncpa [#allocation6], 0
    %10 = vsyncpa [#allocation4], 0
    // Predicated region
    $region2: #{tpu_custom_call.1} parent=1 // pred_check
      _
    $region3: #{tpu_custom_call.1} parent=1 // pred_check_branch
      %12 = sbr.rel (0) target = $region5
    $region4: #{tpu_custom_call.1} parent=1 // pred_region
      %s14 = ssub.s32 128, 128
      %15 = vsyncadd [#allocation3], %s14
      %s17 = sshll.u32 [#allocation2], 4
      %s18 = int_to_ptr.vmem [resolvable:$true] %s17
      %20 = dma.hbm_to_vmem [thread:$0]  %s0, 128, %s18, [#allocation3]
    $region5: #{tpu_custom_call.1} parent=1 // pred_fallthru
      _
    // Predicated region
    $region6: #{tpu_custom_call.1} parent=1 // pred_check
      _
    $region7: #{tpu_custom_call.1} parent=1 // pred_check_branch
      %22 = sbr.rel (0) target = $region9
    $region8: #{tpu_custom_call.1} parent=1 // pred_region
      %s24 = ssub.s32 157696, 157696
      %25 = vsyncadd [#allocation6], %s24
      %s26 = sshll.u32 [#allocation5], 4
      %s27 = int_to_ptr.vmem [resolvable:$true] %s26
      %32 = dma.hbm_to_vmem [thread:$0]  %s1, 157696, %s27, [#allocation6], 9856, 9856, 616
    $region9: #{tpu_custom_call.1} parent=1 // pred_fallthru
      _
    // Predicated region
    $region10: #{tpu_custom_call.1} parent=1 // pred_check
      _
    $region11: #{tpu_custom_call.1} parent=1 // pred_check_branch
      %34 = sbr.rel (0) target = $region13
    $region12: #{tpu_custom_call.1} parent=1 // pred_region
      %s36 = ssub.s32 1232, 1232
      %37 = vsyncadd [#allocation6], %s36
      %s39 = sshll.u32 [#allocation7], 4
      %s40 = int_to_ptr.vmem [resolvable:$true] %s39
      %42 = dma.hbm_to_vmem [thread:$0]  %s2, 1232, %s40, [#allocation6]
    $region13: #{tpu_custom_call.1} parent=1 // pred_fallthru
      _
    // Predicated region
    $region14: #{tpu_custom_call.1} parent=1 // pred_check
      _
    $region15: #{tpu_custom_call.1} parent=1 // pred_check_branch
      %44 = sbr.rel (0) target = $region17
    $region16: #{tpu_custom_call.1} parent=1 // pred_region
      %45 = dma.done [#allocation3], 128
    $region17: #{tpu_custom_call.1} parent=1 // pred_fallthru
      _
    // Predicated region
    $region18: #{tpu_custom_call.1} parent=1 // pred_check
      _
    $region19: #{tpu_custom_call.1} parent=1 // pred_check_branch
      %47 = sbr.rel (0) target = $region21
    $region20: #{tpu_custom_call.1} parent=1 // pred_region
      %48 = dma.done [#allocation6], 157696
    $region21: #{tpu_custom_call.1} parent=1 // pred_fallthru
      _
    // Predicated region
    $region22: #{tpu_custom_call.1} parent=1 // pred_check
      _
    $region23: #{tpu_custom_call.1} parent=1 // pred_check_branch
      %50 = sbr.rel (0) target = $region25
    $region24: #{tpu_custom_call.1} parent=1 // pred_region
      %51 = dma.done [#allocation6], 1232
    $region25: #{tpu_custom_call.1} parent=1 // pred_fallthru
      _
    %v52 = vld [vmem:[#allocation2] sm:$0xff]
    %v53 = vld [vmem:[#allocation5] sm:$0xff]
    %v54 = vld [vmem:[#allocation5 + $0x8] sm:$0xff]
    %v55 = vld [vmem:[#allocation5 + $0x10] sm:$0xff]
    %v56 = vld [vmem:[#allocation5 + $0x18] sm:$0xff]
    %v57 = vld [vmem:[#allocation5 + $0x20] sm:$0xff]
    %v58 = vld [vmem:[#allocation5 + $0x28] sm:$0xff]
    %v59 = vld [vmem:[#allocation5 + $0x30] sm:$0xff]
    %v60 = vld [vmem:[#allocation5 + $0x38] sm:$0xff]
    %v61 = vld [vmem:[#allocation5 + $0x40] sm:$0xff]
    %v62 = vld [vmem:[#allocation5 + $0x48] sm:$0xff]
    %v63 = vld [vmem:[#allocation5 + $0x50] sm:$0xff]
    %v64 = vld [vmem:[#allocation5 + $0x58] sm:$0xff]
    %v65 = vld [vmem:[#allocation5 + $0x60] sm:$0xff]
    %v66 = vld [vmem:[#allocation5 + $0x68] sm:$0xff]
    %v67 = vld [vmem:[#allocation5 + $0x70] sm:$0xff]
    %v68 = vld [vmem:[#allocation5 + $0x78] sm:$0xff]
    %v69 = vld [vmem:[#allocation5 + $0x80] sm:$0xff]
    %v70 = vld [vmem:[#allocation5 + $0x88] sm:$0xff]
    %v71 = vld [vmem:[#allocation5 + $0x90] sm:$0xff]
    %v72 = vld [vmem:[#allocation5 + $0x98] sm:$0xff]
    %v73 = vld [vmem:[#allocation5 + $0xa0] sm:$0xff]
    %v74 = vld [vmem:[#allocation5 + $0xa8] sm:$0xff]
    %v75 = vld [vmem:[#allocation5 + $0xb0] sm:$0xff]
    %v76 = vld [vmem:[#allocation5 + $0xb8] sm:$0xff]
    %v77 = vld [vmem:[#allocation5 + $0xc0] sm:$0xff]
    %v78 = vld [vmem:[#allocation5 + $0xc8] sm:$0xff]
    %v79 = vld [vmem:[#allocation5 + $0xd0] sm:$0xff]
    %v80 = vld [vmem:[#allocation5 + $0xd8] sm:$0xff]
    %v81 = vld [vmem:[#allocation5 + $0xe0] sm:$0xff]
    %v82 = vld [vmem:[#allocation5 + $0xe8] sm:$0xff]
    %v83 = vld [vmem:[#allocation5 + $0xf0] sm:$0xff]
    %v84 = vld [vmem:[#allocation5 + $0xf8] sm:$0xff]
    %v85 = vld [vmem:[#allocation5 + $0x100] sm:$0xff]
    %v86 = vld [vmem:[#allocation5 + $0x108] sm:$0xff]
    %v87 = vld [vmem:[#allocation5 + $0x110] sm:$0xff]
    %v88 = vld [vmem:[#allocation5 + $0x118] sm:$0xff]
    %v89 = vld [vmem:[#allocation5 + $0x120] sm:$0xff]
    %v90 = vld [vmem:[#allocation5 + $0x128] sm:$0xff]
    %v91 = vld [vmem:[#allocation5 + $0x130] sm:$0xff]
    %v92 = vld [vmem:[#allocation5 + $0x138] sm:$0xff]
    %v93 = vld [vmem:[#allocation5 + $0x140] sm:$0xff]
    %v94 = vld [vmem:[#allocation5 + $0x148] sm:$0xff]
    %v95 = vld [vmem:[#allocation5 + $0x150] sm:$0xff]
    %v96 = vld [vmem:[#allocation5 + $0x158] sm:$0xff]
    %v97 = vld [vmem:[#allocation5 + $0x160] sm:$0xff]
    %v98 = vld [vmem:[#allocation5 + $0x168] sm:$0xff]
    %v99 = vld [vmem:[#allocation5 + $0x170] sm:$0xff]
    %v100 = vld [vmem:[#allocation5 + $0x178] sm:$0xff]
    %v101 = vld [vmem:[#allocation5 + $0x180] sm:$0xff]
    %v102 = vld [vmem:[#allocation5 + $0x188] sm:$0xff]
    %v103 = vld [vmem:[#allocation5 + $0x190] sm:$0xff]
    %v104 = vld [vmem:[#allocation5 + $0x198] sm:$0xff]
    %v105 = vld [vmem:[#allocation5 + $0x1a0] sm:$0xff]
    %v106 = vld [vmem:[#allocation5 + $0x1a8] sm:$0xff]
    %v107 = vld [vmem:[#allocation5 + $0x1b0] sm:$0xff]
    %v108 = vld [vmem:[#allocation5 + $0x1b8] sm:$0xff]
    %v109 = vld [vmem:[#allocation5 + $0x1c0] sm:$0xff]
    %v110 = vld [vmem:[#allocation5 + $0x1c8] sm:$0xff]
    %v111 = vld [vmem:[#allocation5 + $0x1d0] sm:$0xff]
    %v112 = vld [vmem:[#allocation5 + $0x1d8] sm:$0xff]
    %v113 = vld [vmem:[#allocation5 + $0x1e0] sm:$0xff]
    %v114 = vld [vmem:[#allocation5 + $0x1e8] sm:$0xff]
    %v115 = vld [vmem:[#allocation5 + $0x1f0] sm:$0xff]
    %v116 = vld [vmem:[#allocation5 + $0x1f8] sm:$0xff]
    %v117 = vld [vmem:[#allocation5 + $0x200] sm:$0xff]
    %v118 = vld [vmem:[#allocation5 + $0x208] sm:$0xff]
    %v119 = vld [vmem:[#allocation5 + $0x210] sm:$0xff]
    %v120 = vld [vmem:[#allocation5 + $0x218] sm:$0xff]
    %v121 = vld [vmem:[#allocation5 + $0x220] sm:$0xff]
    %v122 = vld [vmem:[#allocation5 + $0x228] sm:$0xff]
    %v123 = vld [vmem:[#allocation5 + $0x230] sm:$0xff]
    %v124 = vld [vmem:[#allocation5 + $0x238] sm:$0xff]
    %v125 = vld [vmem:[#allocation5 + $0x240] sm:$0xff]
    %v126 = vld [vmem:[#allocation5 + $0x248] sm:$0xff]
    %v127 = vld [vmem:[#allocation5 + $0x250] sm:$0xff]
    %v128 = vld [vmem:[#allocation5 + $0x258] sm:$0xff]
    %v129 = vld [vmem:[#allocation5 + $0x260] sm:$0xff]
    %v130 = vld [vmem:[#allocation5 + $0x268] sm:$0xff]
    %v131 = vld [vmem:[#allocation5 + $0x270] sm:$0xff]
    %v132 = vld [vmem:[#allocation5 + $0x278] sm:$0xff]
    %v133 = vld [vmem:[#allocation5 + $0x280] sm:$0xff]
    %v134 = vld [vmem:[#allocation5 + $0x288] sm:$0xff]
    %v135 = vld [vmem:[#allocation5 + $0x290] sm:$0xff]
    %v136 = vld [vmem:[#allocation5 + $0x298] sm:$0xff]
    %v137 = vld [vmem:[#allocation5 + $0x2a0] sm:$0xff]
    %v138 = vld [vmem:[#allocation5 + $0x2a8] sm:$0xff]
    %v139 = vld [vmem:[#allocation5 + $0x2b0] sm:$0xff]
    %v140 = vld [vmem:[#allocation5 + $0x2b8] sm:$0xff]
    %v141 = vld [vmem:[#allocation5 + $0x2c0] sm:$0xff]
    %v142 = vld [vmem:[#allocation5 + $0x2c8] sm:$0xff]
    %v143 = vld [vmem:[#allocation5 + $0x2d0] sm:$0xff]
    %v144 = vld [vmem:[#allocation5 + $0x2d8] sm:$0xff]
    %v145 = vld [vmem:[#allocation5 + $0x2e0] sm:$0xff]
    %v146 = vld [vmem:[#allocation5 + $0x2e8] sm:$0xff]
    %v147 = vld [vmem:[#allocation5 + $0x2f0] sm:$0xff]
    %v148 = vld [vmem:[#allocation5 + $0x2f8] sm:$0xff]
    %v149 = vld [vmem:[#allocation5 + $0x300] sm:$0xff]
    %v150 = vld [vmem:[#allocation5 + $0x308] sm:$0xff]
    %v151 = vld [vmem:[#allocation5 + $0x310] sm:$0xff]
    %v152 = vld [vmem:[#allocation5 + $0x318] sm:$0xff]
    %v153 = vld [vmem:[#allocation5 + $0x320] sm:$0xff]
    %v154 = vld [vmem:[#allocation5 + $0x328] sm:$0xff]
    %v155 = vld [vmem:[#allocation5 + $0x330] sm:$0xff]
    %v156 = vld [vmem:[#allocation5 + $0x338] sm:$0xff]
    %v157 = vld [vmem:[#allocation5 + $0x340] sm:$0xff]
    %v158 = vld [vmem:[#allocation5 + $0x348] sm:$0xff]
    %v159 = vld [vmem:[#allocation5 + $0x350] sm:$0xff]
    %v160 = vld [vmem:[#allocation5 + $0x358] sm:$0xff]
    %v161 = vld [vmem:[#allocation5 + $0x360] sm:$0xff]
    %v162 = vld [vmem:[#allocation5 + $0x368] sm:$0xff]
    %v163 = vld [vmem:[#allocation5 + $0x370] sm:$0xff]
    %v164 = vld [vmem:[#allocation5 + $0x378] sm:$0xff]
    %v165 = vld [vmem:[#allocation5 + $0x380] sm:$0xff]
    %v166 = vld [vmem:[#allocation5 + $0x388] sm:$0xff]
    %v167 = vld [vmem:[#allocation5 + $0x390] sm:$0xff]
    %v168 = vld [vmem:[#allocation5 + $0x398] sm:$0xff]
    %v169 = vld [vmem:[#allocation5 + $0x3a0] sm:$0xff]
    %v170 = vld [vmem:[#allocation5 + $0x3a8] sm:$0xff]
    %v171 = vld [vmem:[#allocation5 + $0x3b0] sm:$0xff]
    %v172 = vld [vmem:[#allocation5 + $0x3b8] sm:$0xff]
    %v173 = vld [vmem:[#allocation5 + $0x3c0] sm:$0xff]
    %v174 = vld [vmem:[#allocation5 + $0x3c8] sm:$0xff]
    %v175 = vld [vmem:[#allocation5 + $0x3d0] sm:$0xff]
    %v176 = vld [vmem:[#allocation5 + $0x3d8] sm:$0xff]
    %v177 = vld [vmem:[#allocation5 + $0x3e0] sm:$0xff]
    %v178 = vld [vmem:[#allocation5 + $0x3e8] sm:$0xff]
    %v179 = vld [vmem:[#allocation5 + $0x3f0] sm:$0xff]
    %v180 = vld [vmem:[#allocation5 + $0x3f8] sm:$0xff]
    %v181 = vld [vmem:[#allocation5 + $0x400] sm:$0xff]
    %v182 = vld [vmem:[#allocation5 + $0x408] sm:$0xff]
    %v183 = vld [vmem:[#allocation5 + $0x410] sm:$0xff]
    %v184 = vld [vmem:[#allocation5 + $0x418] sm:$0xff]
    %v185 = vld [vmem:[#allocation5 + $0x420] sm:$0xff]
    %v186 = vld [vmem:[#allocation5 + $0x428] sm:$0xff]
    %v187 = vld [vmem:[#allocation5 + $0x430] sm:$0xff]
    %v188 = vld [vmem:[#allocation5 + $0x438] sm:$0xff]
    %v189 = vld [vmem:[#allocation5 + $0x440] sm:$0xff]
    %v190 = vld [vmem:[#allocation5 + $0x448] sm:$0xff]
    %v191 = vld [vmem:[#allocation5 + $0x450] sm:$0xff]
    %v192 = vld [vmem:[#allocation5 + $0x458] sm:$0xff]
    %v193 = vld [vmem:[#allocation5 + $0x460] sm:$0xff]
    %v194 = vld [vmem:[#allocation5 + $0x468] sm:$0xff]
    %v195 = vld [vmem:[#allocation5 + $0x470] sm:$0xff]
    %v196 = vld [vmem:[#allocation5 + $0x478] sm:$0xff]
    %v197 = vld [vmem:[#allocation5 + $0x480] sm:$0xff]
    %v198 = vld [vmem:[#allocation5 + $0x488] sm:$0xff]
    %v199 = vld [vmem:[#allocation5 + $0x490] sm:$0xff]
    %v200 = vld [vmem:[#allocation5 + $0x498] sm:$0xff]
    %v201 = vld [vmem:[#allocation5 + $0x4a0] sm:$0xff]
    %v202 = vld [vmem:[#allocation5 + $0x4a8] sm:$0xff]
    %v203 = vld [vmem:[#allocation5 + $0x4b0] sm:$0xff]
    %v204 = vld [vmem:[#allocation5 + $0x4b8] sm:$0xff]
    %v205 = vld [vmem:[#allocation5 + $0x4c0] sm:$0xff]
    %v206 = vld [vmem:[#allocation5 + $0x4c8] sm:$0xff]
    %v207 = vld [vmem:[#allocation5 + $0x4d0] sm:$0xff]
    %v208 = vld [vmem:[#allocation5 + $0x4d8] sm:$0xff]
    %v209 = vld [vmem:[#allocation5 + $0x4e0] sm:$0xff]
    %v210 = vld [vmem:[#allocation5 + $0x4e8] sm:$0xff]
    %v211 = vld [vmem:[#allocation5 + $0x4f0] sm:$0xff]
    %v212 = vld [vmem:[#allocation5 + $0x4f8] sm:$0xff]
    %v213 = vld [vmem:[#allocation5 + $0x500] sm:$0xff]
    %v214 = vld [vmem:[#allocation5 + $0x508] sm:$0xff]
    %v215 = vld [vmem:[#allocation5 + $0x510] sm:$0xff]
    %v216 = vld [vmem:[#allocation5 + $0x518] sm:$0xff]
    %v217 = vld [vmem:[#allocation5 + $0x520] sm:$0xff]
    %v218 = vld [vmem:[#allocation5 + $0x528] sm:$0xff]
    %v219 = vld [vmem:[#allocation5 + $0x530] sm:$0xff]
    %v220 = vld [vmem:[#allocation5 + $0x538] sm:$0xff]
    %v221 = vld [vmem:[#allocation5 + $0x540] sm:$0xff]
    %v222 = vld [vmem:[#allocation5 + $0x548] sm:$0xff]
    %v223 = vld [vmem:[#allocation5 + $0x550] sm:$0xff]
    %v224 = vld [vmem:[#allocation5 + $0x558] sm:$0xff]
    %v225 = vld [vmem:[#allocation5 + $0x560] sm:$0xff]
    %v226 = vld [vmem:[#allocation5 + $0x568] sm:$0xff]
    %v227 = vld [vmem:[#allocation5 + $0x570] sm:$0xff]
    %v228 = vld [vmem:[#allocation5 + $0x578] sm:$0xff]
    %v229 = vld [vmem:[#allocation5 + $0x580] sm:$0xff]
    %v230 = vld [vmem:[#allocation5 + $0x588] sm:$0xff]
    %v231 = vld [vmem:[#allocation5 + $0x590] sm:$0xff]
    %v232 = vld [vmem:[#allocation5 + $0x598] sm:$0xff]
    %v233 = vld [vmem:[#allocation5 + $0x5a0] sm:$0xff]
    %v234 = vld [vmem:[#allocation5 + $0x5a8] sm:$0xff]
    %v235 = vld [vmem:[#allocation5 + $0x5b0] sm:$0xff]
    %v236 = vld [vmem:[#allocation5 + $0x5b8] sm:$0xff]
    %v237 = vld [vmem:[#allocation5 + $0x5c0] sm:$0xff]
    %v238 = vld [vmem:[#allocation5 + $0x5c8] sm:$0xff]
    %v239 = vld [vmem:[#allocation5 + $0x5d0] sm:$0xff]
    %v240 = vld [vmem:[#allocation5 + $0x5d8] sm:$0xff]
    %v241 = vld [vmem:[#allocation5 + $0x5e0] sm:$0xff]
    %v242 = vld [vmem:[#allocation5 + $0x5e8] sm:$0xff]
    %v243 = vld [vmem:[#allocation5 + $0x5f0] sm:$0xff]
    %v244 = vld [vmem:[#allocation5 + $0x5f8] sm:$0xff]
    %v245 = vld [vmem:[#allocation5 + $0x600] sm:$0xff]
    %v246 = vld [vmem:[#allocation5 + $0x608] sm:$0xff]
    %v247 = vld [vmem:[#allocation5 + $0x610] sm:$0xff]
    %v248 = vld [vmem:[#allocation5 + $0x618] sm:$0xff]
    %v249 = vld [vmem:[#allocation5 + $0x620] sm:$0xff]
    %v250 = vld [vmem:[#allocation5 + $0x628] sm:$0xff]
    %v251 = vld [vmem:[#allocation5 + $0x630] sm:$0xff]
    %v252 = vld [vmem:[#allocation5 + $0x638] sm:$0xff]
    %v253 = vld [vmem:[#allocation5 + $0x640] sm:$0xff]
    %v254 = vld [vmem:[#allocation5 + $0x648] sm:$0xff]
    %v255 = vld [vmem:[#allocation5 + $0x650] sm:$0xff]
    %v256 = vld [vmem:[#allocation5 + $0x658] sm:$0xff]
    %v257 = vld [vmem:[#allocation5 + $0x660] sm:$0xff]
    %v258 = vld [vmem:[#allocation5 + $0x668] sm:$0xff]
    %v259 = vld [vmem:[#allocation5 + $0x670] sm:$0xff]
    %v260 = vld [vmem:[#allocation5 + $0x678] sm:$0xff]
    %v261 = vld [vmem:[#allocation5 + $0x680] sm:$0xff]
    %v262 = vld [vmem:[#allocation5 + $0x688] sm:$0xff]
    %v263 = vld [vmem:[#allocation5 + $0x690] sm:$0xff]
    %v264 = vld [vmem:[#allocation5 + $0x698] sm:$0xff]
    %v265 = vld [vmem:[#allocation5 + $0x6a0] sm:$0xff]
    %v266 = vld [vmem:[#allocation5 + $0x6a8] sm:$0xff]
    %v267 = vld [vmem:[#allocation5 + $0x6b0] sm:$0xff]
    %v268 = vld [vmem:[#allocation5 + $0x6b8] sm:$0xff]
    %v269 = vld [vmem:[#allocation5 + $0x6c0] sm:$0xff]
    %v270 = vld [vmem:[#allocation5 + $0x6c8] sm:$0xff]
    %v271 = vld [vmem:[#allocation5 + $0x6d0] sm:$0xff]
    %v272 = vld [vmem:[#allocation5 + $0x6d8] sm:$0xff]
    %v273 = vld [vmem:[#allocation5 + $0x6e0] sm:$0xff]
    %v274 = vld [vmem:[#allocation5 + $0x6e8] sm:$0xff]
    %v275 = vld [vmem:[#allocation5 + $0x6f0] sm:$0xff]
    %v276 = vld [vmem:[#allocation5 + $0x6f8] sm:$0xff]
    %v277 = vld [vmem:[#allocation5 + $0x700] sm:$0xff]
    %v278 = vld [vmem:[#allocation5 + $0x708] sm:$0xff]
    %v279 = vld [vmem:[#allocation5 + $0x710] sm:$0xff]
    %v280 = vld [vmem:[#allocation5 + $0x718] sm:$0xff]
    %v281 = vld [vmem:[#allocation5 + $0x720] sm:$0xff]
    %v282 = vld [vmem:[#allocation5 + $0x728] sm:$0xff]
    %v283 = vld [vmem:[#allocation5 + $0x730] sm:$0xff]
    %v284 = vld [vmem:[#allocation5 + $0x738] sm:$0xff]
    %v285 = vld [vmem:[#allocation5 + $0x740] sm:$0xff]
    %v286 = vld [vmem:[#allocation5 + $0x748] sm:$0xff]
    %v287 = vld [vmem:[#allocation5 + $0x750] sm:$0xff]
    %v288 = vld [vmem:[#allocation5 + $0x758] sm:$0xff]
    %v289 = vld [vmem:[#allocation5 + $0x760] sm:$0xff]
    %v290 = vld [vmem:[#allocation5 + $0x768] sm:$0xff]
    %v291 = vld [vmem:[#allocation5 + $0x770] sm:$0xff]
    %v292 = vld [vmem:[#allocation5 + $0x778] sm:$0xff]
    %v293 = vld [vmem:[#allocation5 + $0x780] sm:$0xff]
    %v294 = vld [vmem:[#allocation5 + $0x788] sm:$0xff]
    %v295 = vld [vmem:[#allocation5 + $0x790] sm:$0xff]
    %v296 = vld [vmem:[#allocation5 + $0x798] sm:$0xff]
    %v297 = vld [vmem:[#allocation5 + $0x7a0] sm:$0xff]
    %v298 = vld [vmem:[#allocation5 + $0x7a8] sm:$0xff]
    %v299 = vld [vmem:[#allocation5 + $0x7b0] sm:$0xff]
    %v300 = vld [vmem:[#allocation5 + $0x7b8] sm:$0xff]
    %v301 = vld [vmem:[#allocation5 + $0x7c0] sm:$0xff]
    %v302 = vld [vmem:[#allocation5 + $0x7c8] sm:$0xff]
    %v303 = vld [vmem:[#allocation5 + $0x7d0] sm:$0xff]
    %v304 = vld [vmem:[#allocation5 + $0x7d8] sm:$0xff]
    %v305 = vld [vmem:[#allocation5 + $0x7e0] sm:$0xff]
    %v306 = vld [vmem:[#allocation5 + $0x7e8] sm:$0xff]
    %v307 = vld [vmem:[#allocation5 + $0x7f0] sm:$0xff]
    %v308 = vld [vmem:[#allocation5 + $0x7f8] sm:$0xff]
    %v309 = vld [vmem:[#allocation5 + $0x800] sm:$0xff]
    %v310 = vld [vmem:[#allocation5 + $0x808] sm:$0xff]
    %v311 = vld [vmem:[#allocation5 + $0x810] sm:$0xff]
    %v312 = vld [vmem:[#allocation5 + $0x818] sm:$0xff]
    %v313 = vld [vmem:[#allocation5 + $0x820] sm:$0xff]
    %v314 = vld [vmem:[#allocation5 + $0x828] sm:$0xff]
    %v315 = vld [vmem:[#allocation5 + $0x830] sm:$0xff]
    %v316 = vld [vmem:[#allocation5 + $0x838] sm:$0xff]
    %v317 = vld [vmem:[#allocation5 + $0x840] sm:$0xff]
    %v318 = vld [vmem:[#allocation5 + $0x848] sm:$0xff]
    %v319 = vld [vmem:[#allocation5 + $0x850] sm:$0xff]
    %v320 = vld [vmem:[#allocation5 + $0x858] sm:$0xff]
    %v321 = vld [vmem:[#allocation5 + $0x860] sm:$0xff]
    %v322 = vld [vmem:[#allocation5 + $0x868] sm:$0xff]
    %v323 = vld [vmem:[#allocation5 + $0x870] sm:$0xff]
    %v324 = vld [vmem:[#allocation5 + $0x878] sm:$0xff]
    %v325 = vld [vmem:[#allocation5 + $0x880] sm:$0xff]
    %v326 = vld [vmem:[#allocation5 + $0x888] sm:$0xff]
    %v327 = vld [vmem:[#allocation5 + $0x890] sm:$0xff]
    %v328 = vld [vmem:[#allocation5 + $0x898] sm:$0xff]
    %v329 = vld [vmem:[#allocation5 + $0x8a0] sm:$0xff]
    %v330 = vld [vmem:[#allocation5 + $0x8a8] sm:$0xff]
    %v331 = vld [vmem:[#allocation5 + $0x8b0] sm:$0xff]
    %v332 = vld [vmem:[#allocation5 + $0x8b8] sm:$0xff]
    %v333 = vld [vmem:[#allocation5 + $0x8c0] sm:$0xff]
    %v334 = vld [vmem:[#allocation5 + $0x8c8] sm:$0xff]
    %v335 = vld [vmem:[#allocation5 + $0x8d0] sm:$0xff]
    %v336 = vld [vmem:[#allocation5 + $0x8d8] sm:$0xff]
    %v337 = vld [vmem:[#allocation5 + $0x8e0] sm:$0xff]
    %v338 = vld [vmem:[#allocation5 + $0x8e8] sm:$0xff]
    %v339 = vld [vmem:[#allocation5 + $0x8f0] sm:$0xff]
    %v340 = vld [vmem:[#allocation5 + $0x8f8] sm:$0xff]
    %v341 = vld [vmem:[#allocation5 + $0x900] sm:$0xff]
    %v342 = vld [vmem:[#allocation5 + $0x908] sm:$0xff]
    %v343 = vld [vmem:[#allocation5 + $0x910] sm:$0xff]
    %v344 = vld [vmem:[#allocation5 + $0x918] sm:$0xff]
    %v345 = vld [vmem:[#allocation5 + $0x920] sm:$0xff]
    %v346 = vld [vmem:[#allocation5 + $0x928] sm:$0xff]
    %v347 = vld [vmem:[#allocation5 + $0x930] sm:$0xff]
    %v348 = vld [vmem:[#allocation5 + $0x938] sm:$0xff]
    %v349 = vld [vmem:[#allocation5 + $0x940] sm:$0xff]
    %v350 = vld [vmem:[#allocation5 + $0x948] sm:$0xff]
    %v351 = vld [vmem:[#allocation5 + $0x950] sm:$0xff]
    %v352 = vld [vmem:[#allocation5 + $0x958] sm:$0xff]
    %v353 = vld [vmem:[#allocation5 + $0x960] sm:$0xff]
    %v354 = vld [vmem:[#allocation5 + $0x968] sm:$0xff]
    %v355 = vld [vmem:[#allocation5 + $0x970] sm:$0xff]
    %v356 = vld [vmem:[#allocation5 + $0x978] sm:$0xff]
    %v357 = vld [vmem:[#allocation5 + $0x980] sm:$0xff]
    %v358 = vld [vmem:[#allocation5 + $0x988] sm:$0xff]
    %v359 = vld [vmem:[#allocation5 + $0x990] sm:$0xff]
    %v360 = vld [vmem:[#allocation5 + $0x998] sm:$0xff]
    %v361 = vld [vmem:[#allocation5 + $0x9a0] sm:$0xff]
    %v362 = vld [vmem:[#allocation5 + $0x9a8] sm:$0xff]
    %v363 = vld [vmem:[#allocation5 + $0x9b0] sm:$0xff]
    %v364 = vld [vmem:[#allocation5 + $0x9b8] sm:$0xff]
    %v365 = vld [vmem:[#allocation5 + $0x9c0] sm:$0xff]
    %v366 = vld [vmem:[#allocation5 + $0x9c8] sm:$0xff]
    %v367 = vld [vmem:[#allocation5 + $0x9d0] sm:$0xff]
    %v368 = vld [vmem:[#allocation5 + $0x9d8] sm:$0xff]
    %v369 = vld [vmem:[#allocation5 + $0x9e0] sm:$0xff]
    %v370 = vld [vmem:[#allocation5 + $0x9e8] sm:$0xff]
    %v371 = vld [vmem:[#allocation5 + $0x9f0] sm:$0xff]
    %v372 = vld [vmem:[#allocation5 + $0x9f8] sm:$0xff]
    %v373 = vld [vmem:[#allocation5 + $0xa00] sm:$0xff]
    %v374 = vld [vmem:[#allocation5 + $0xa08] sm:$0xff]
    %v375 = vld [vmem:[#allocation5 + $0xa10] sm:$0xff]
    %v376 = vld [vmem:[#allocation5 + $0xa18] sm:$0xff]
    %v377 = vld [vmem:[#allocation5 + $0xa20] sm:$0xff]
    %v378 = vld [vmem:[#allocation5 + $0xa28] sm:$0xff]
    %v379 = vld [vmem:[#allocation5 + $0xa30] sm:$0xff]
    %v380 = vld [vmem:[#allocation5 + $0xa38] sm:$0xff]
    %v381 = vld [vmem:[#allocation5 + $0xa40] sm:$0xff]
    %v382 = vld [vmem:[#allocation5 + $0xa48] sm:$0xff]
    %v383 = vld [vmem:[#allocation5 + $0xa50] sm:$0xff]
    %v384 = vld [vmem:[#allocation5 + $0xa58] sm:$0xff]
    %v385 = vld [vmem:[#allocation5 + $0xa60] sm:$0xff]
    %v386 = vld [vmem:[#allocation5 + $0xa68] sm:$0xff]
    %v387 = vld [vmem:[#allocation5 + $0xa70] sm:$0xff]
    %v388 = vld [vmem:[#allocation5 + $0xa78] sm:$0xff]
    %v389 = vld [vmem:[#allocation5 + $0xa80] sm:$0xff]
    %v390 = vld [vmem:[#allocation5 + $0xa88] sm:$0xff]
    %v391 = vld [vmem:[#allocation5 + $0xa90] sm:$0xff]
    %v392 = vld [vmem:[#allocation5 + $0xa98] sm:$0xff]
    %v393 = vld [vmem:[#allocation5 + $0xaa0] sm:$0xff]
    %v394 = vld [vmem:[#allocation5 + $0xaa8] sm:$0xff]
    %v395 = vld [vmem:[#allocation5 + $0xab0] sm:$0xff]
    %v396 = vld [vmem:[#allocation5 + $0xab8] sm:$0xff]
    %v397 = vld [vmem:[#allocation5 + $0xac0] sm:$0xff]
    %v398 = vld [vmem:[#allocation5 + $0xac8] sm:$0xff]
    %v399 = vld [vmem:[#allocation5 + $0xad0] sm:$0xff]
    %v400 = vld [vmem:[#allocation5 + $0xad8] sm:$0xff]
    %v401 = vld [vmem:[#allocation5 + $0xae0] sm:$0xff]
    %v402 = vld [vmem:[#allocation5 + $0xae8] sm:$0xff]
    %v403 = vld [vmem:[#allocation5 + $0xaf0] sm:$0xff]
    %v404 = vld [vmem:[#allocation5 + $0xaf8] sm:$0xff]
    %v405 = vld [vmem:[#allocation5 + $0xb00] sm:$0xff]
    %v406 = vld [vmem:[#allocation5 + $0xb08] sm:$0xff]
    %v407 = vld [vmem:[#allocation5 + $0xb10] sm:$0xff]
    %v408 = vld [vmem:[#allocation5 + $0xb18] sm:$0xff]
    %v409 = vld [vmem:[#allocation5 + $0xb20] sm:$0xff]
    %v410 = vld [vmem:[#allocation5 + $0xb28] sm:$0xff]
    %v411 = vld [vmem:[#allocation5 + $0xb30] sm:$0xff]
    %v412 = vld [vmem:[#allocation5 + $0xb38] sm:$0xff]
    %v413 = vld [vmem:[#allocation5 + $0xb40] sm:$0xff]
    %v414 = vld [vmem:[#allocation5 + $0xb48] sm:$0xff]
    %v415 = vld [vmem:[#allocation5 + $0xb50] sm:$0xff]
    %v416 = vld [vmem:[#allocation5 + $0xb58] sm:$0xff]
    %v417 = vld [vmem:[#allocation5 + $0xb60] sm:$0xff]
    %v418 = vld [vmem:[#allocation5 + $0xb68] sm:$0xff]
    %v419 = vld [vmem:[#allocation5 + $0xb70] sm:$0xff]
    %v420 = vld [vmem:[#allocation5 + $0xb78] sm:$0xff]
    %v421 = vld [vmem:[#allocation5 + $0xb80] sm:$0xff]
    %v422 = vld [vmem:[#allocation5 + $0xb88] sm:$0xff]
    %v423 = vld [vmem:[#allocation5 + $0xb90] sm:$0xff]
    %v424 = vld [vmem:[#allocation5 + $0xb98] sm:$0xff]
    %v425 = vld [vmem:[#allocation5 + $0xba0] sm:$0xff]
    %v426 = vld [vmem:[#allocation5 + $0xba8] sm:$0xff]
    %v427 = vld [vmem:[#allocation5 + $0xbb0] sm:$0xff]
    %v428 = vld [vmem:[#allocation5 + $0xbb8] sm:$0xff]
    %v429 = vld [vmem:[#allocation5 + $0xbc0] sm:$0xff]
    %v430 = vld [vmem:[#allocation5 + $0xbc8] sm:$0xff]
    %v431 = vld [vmem:[#allocation5 + $0xbd0] sm:$0xff]
    %v432 = vld [vmem:[#allocation5 + $0xbd8] sm:$0xff]
    %v433 = vld [vmem:[#allocation5 + $0xbe0] sm:$0xff]
    %v434 = vld [vmem:[#allocation5 + $0xbe8] sm:$0xff]
    %v435 = vld [vmem:[#allocation5 + $0xbf0] sm:$0xff]
    %v436 = vld [vmem:[#allocation5 + $0xbf8] sm:$0xff]
    %v437 = vld [vmem:[#allocation5 + $0xc00] sm:$0xff]
    %v438 = vld [vmem:[#allocation5 + $0xc08] sm:$0xff]
    %v439 = vld [vmem:[#allocation5 + $0xc10] sm:$0xff]
    %v440 = vld [vmem:[#allocation5 + $0xc18] sm:$0xff]
    %v441 = vld [vmem:[#allocation5 + $0xc20] sm:$0xff]
    %v442 = vld [vmem:[#allocation5 + $0xc28] sm:$0xff]
    %v443 = vld [vmem:[#allocation5 + $0xc30] sm:$0xff]
    %v444 = vld [vmem:[#allocation5 + $0xc38] sm:$0xff]
    %v445 = vld [vmem:[#allocation5 + $0xc40] sm:$0xff]
    %v446 = vld [vmem:[#allocation5 + $0xc48] sm:$0xff]
    %v447 = vld [vmem:[#allocation5 + $0xc50] sm:$0xff]
    %v448 = vld [vmem:[#allocation5 + $0xc58] sm:$0xff]
    %v449 = vld [vmem:[#allocation5 + $0xc60] sm:$0xff]
    %v450 = vld [vmem:[#allocation5 + $0xc68] sm:$0xff]
    %v451 = vld [vmem:[#allocation5 + $0xc70] sm:$0xff]
    %v452 = vld [vmem:[#allocation5 + $0xc78] sm:$0xff]
    %v453 = vld [vmem:[#allocation5 + $0xc80] sm:$0xff]
    %v454 = vld [vmem:[#allocation5 + $0xc88] sm:$0xff]
    %v455 = vld [vmem:[#allocation5 + $0xc90] sm:$0xff]
    %v456 = vld [vmem:[#allocation5 + $0xc98] sm:$0xff]
    %v457 = vld [vmem:[#allocation5 + $0xca0] sm:$0xff]
    %v458 = vld [vmem:[#allocation5 + $0xca8] sm:$0xff]
    %v459 = vld [vmem:[#allocation5 + $0xcb0] sm:$0xff]
    %v460 = vld [vmem:[#allocation5 + $0xcb8] sm:$0xff]
    %v461 = vld [vmem:[#allocation5 + $0xcc0] sm:$0xff]
    %v462 = vld [vmem:[#allocation5 + $0xcc8] sm:$0xff]
    %v463 = vld [vmem:[#allocation5 + $0xcd0] sm:$0xff]
    %v464 = vld [vmem:[#allocation5 + $0xcd8] sm:$0xff]
    %v465 = vld [vmem:[#allocation5 + $0xce0] sm:$0xff]
    %v466 = vld [vmem:[#allocation5 + $0xce8] sm:$0xff]
    %v467 = vld [vmem:[#allocation5 + $0xcf0] sm:$0xff]
    %v468 = vld [vmem:[#allocation5 + $0xcf8] sm:$0xff]
    %v469 = vld [vmem:[#allocation5 + $0xd00] sm:$0xff]
    %v470 = vld [vmem:[#allocation5 + $0xd08] sm:$0xff]
    %v471 = vld [vmem:[#allocation5 + $0xd10] sm:$0xff]
    %v472 = vld [vmem:[#allocation5 + $0xd18] sm:$0xff]
    %v473 = vld [vmem:[#allocation5 + $0xd20] sm:$0xff]
    %v474 = vld [vmem:[#allocation5 + $0xd28] sm:$0xff]
    %v475 = vld [vmem:[#allocation5 + $0xd30] sm:$0xff]
    %v476 = vld [vmem:[#allocation5 + $0xd38] sm:$0xff]
    %v477 = vld [vmem:[#allocation5 + $0xd40] sm:$0xff]
    %v478 = vld [vmem:[#allocation5 + $0xd48] sm:$0xff]
    %v479 = vld [vmem:[#allocation5 + $0xd50] sm:$0xff]
    %v480 = vld [vmem:[#allocation5 + $0xd58] sm:$0xff]
    %v481 = vld [vmem:[#allocation5 + $0xd60] sm:$0xff]
    %v482 = vld [vmem:[#allocation5 + $0xd68] sm:$0xff]
    %v483 = vld [vmem:[#allocation5 + $0xd70] sm:$0xff]
    %v484 = vld [vmem:[#allocation5 + $0xd78] sm:$0xff]
    %v485 = vld [vmem:[#allocation5 + $0xd80] sm:$0xff]
    %v486 = vld [vmem:[#allocation5 + $0xd88] sm:$0xff]
    %v487 = vld [vmem:[#allocation5 + $0xd90] sm:$0xff]
    %v488 = vld [vmem:[#allocation5 + $0xd98] sm:$0xff]
    %v489 = vld [vmem:[#allocation5 + $0xda0] sm:$0xff]
    %v490 = vld [vmem:[#allocation5 + $0xda8] sm:$0xff]
    %v491 = vld [vmem:[#allocation5 + $0xdb0] sm:$0xff]
    %v492 = vld [vmem:[#allocation5 + $0xdb8] sm:$0xff]
    %v493 = vld [vmem:[#allocation5 + $0xdc0] sm:$0xff]
    %v494 = vld [vmem:[#allocation5 + $0xdc8] sm:$0xff]
    %v495 = vld [vmem:[#allocation5 + $0xdd0] sm:$0xff]
    %v496 = vld [vmem:[#allocation5 + $0xdd8] sm:$0xff]
    %v497 = vld [vmem:[#allocation5 + $0xde0] sm:$0xff]
    %v498 = vld [vmem:[#allocation5 + $0xde8] sm:$0xff]
    %v499 = vld [vmem:[#allocation5 + $0xdf0] sm:$0xff]
    %v500 = vld [vmem:[#allocation5 + $0xdf8] sm:$0xff]
    %v501 = vld [vmem:[#allocation5 + $0xe00] sm:$0xff]
    %v502 = vld [vmem:[#allocation5 + $0xe08] sm:$0xff]
    %v503 = vld [vmem:[#allocation5 + $0xe10] sm:$0xff]
    %v504 = vld [vmem:[#allocation5 + $0xe18] sm:$0xff]
    %v505 = vld [vmem:[#allocation5 + $0xe20] sm:$0xff]
    %v506 = vld [vmem:[#allocation5 + $0xe28] sm:$0xff]
    %v507 = vld [vmem:[#allocation5 + $0xe30] sm:$0xff]
    %v508 = vld [vmem:[#allocation5 + $0xe38] sm:$0xff]
    %v509 = vld [vmem:[#allocation5 + $0xe40] sm:$0xff]
    %v510 = vld [vmem:[#allocation5 + $0xe48] sm:$0xff]
    %v511 = vld [vmem:[#allocation5 + $0xe50] sm:$0xff]
    %v512 = vld [vmem:[#allocation5 + $0xe58] sm:$0xff]
    %v513 = vld [vmem:[#allocation5 + $0xe60] sm:$0xff]
    %v514 = vld [vmem:[#allocation5 + $0xe68] sm:$0xff]
    %v515 = vld [vmem:[#allocation5 + $0xe70] sm:$0xff]
    %v516 = vld [vmem:[#allocation5 + $0xe78] sm:$0xff]
    %v517 = vld [vmem:[#allocation5 + $0xe80] sm:$0xff]
    %v518 = vld [vmem:[#allocation5 + $0xe88] sm:$0xff]
    %v519 = vld [vmem:[#allocation5 + $0xe90] sm:$0xff]
    %v520 = vld [vmem:[#allocation5 + $0xe98] sm:$0xff]
    %v521 = vld [vmem:[#allocation5 + $0xea0] sm:$0xff]
    %v522 = vld [vmem:[#allocation5 + $0xea8] sm:$0xff]
    %v523 = vld [vmem:[#allocation5 + $0xeb0] sm:$0xff]
    %v524 = vld [vmem:[#allocation5 + $0xeb8] sm:$0xff]
    %v525 = vld [vmem:[#allocation5 + $0xec0] sm:$0xff]
    %v526 = vld [vmem:[#allocation5 + $0xec8] sm:$0xff]
    %v527 = vld [vmem:[#allocation5 + $0xed0] sm:$0xff]
    %v528 = vld [vmem:[#allocation5 + $0xed8] sm:$0xff]
    %v529 = vld [vmem:[#allocation5 + $0xee0] sm:$0xff]
    %v530 = vld [vmem:[#allocation5 + $0xee8] sm:$0xff]
    %v531 = vld [vmem:[#allocation5 + $0xef0] sm:$0xff]
    %v532 = vld [vmem:[#allocation5 + $0xef8] sm:$0xff]
    %v533 = vld [vmem:[#allocation5 + $0xf00] sm:$0xff]
    %v534 = vld [vmem:[#allocation5 + $0xf08] sm:$0xff]
    %v535 = vld [vmem:[#allocation5 + $0xf10] sm:$0xff]
    %v536 = vld [vmem:[#allocation5 + $0xf18] sm:$0xff]
    %v537 = vld [vmem:[#allocation5 + $0xf20] sm:$0xff]
    %v538 = vld [vmem:[#allocation5 + $0xf28] sm:$0xff]
    %v539 = vld [vmem:[#allocation5 + $0xf30] sm:$0xff]
    %v540 = vld [vmem:[#allocation5 + $0xf38] sm:$0xff]
    %v541 = vld [vmem:[#allocation5 + $0xf40] sm:$0xff]
    %v542 = vld [vmem:[#allocation5 + $0xf48] sm:$0xff]
    %v543 = vld [vmem:[#allocation5 + $0xf50] sm:$0xff]
    %v544 = vld [vmem:[#allocation5 + $0xf58] sm:$0xff]
    %v545 = vld [vmem:[#allocation5 + $0xf60] sm:$0xff]
    %v546 = vld [vmem:[#allocation5 + $0xf68] sm:$0xff]
    %v547 = vld [vmem:[#allocation5 + $0xf70] sm:$0xff]
    %v548 = vld [vmem:[#allocation5 + $0xf78] sm:$0xff]
    %v549 = vld [vmem:[#allocation5 + $0xf80] sm:$0xff]
    %v550 = vld [vmem:[#allocation5 + $0xf88] sm:$0xff]
    %v551 = vld [vmem:[#allocation5 + $0xf90] sm:$0xff]
    %v552 = vld [vmem:[#allocation5 + $0xf98] sm:$0xff]
    %v553 = vld [vmem:[#allocation5 + $0xfa0] sm:$0xff]
    %v554 = vld [vmem:[#allocation5 + $0xfa8] sm:$0xff]
    %v555 = vld [vmem:[#allocation5 + $0xfb0] sm:$0xff]
    %v556 = vld [vmem:[#allocation5 + $0xfb8] sm:$0xff]
    %v557 = vld [vmem:[#allocation5 + $0xfc0] sm:$0xff]
    %v558 = vld [vmem:[#allocation5 + $0xfc8] sm:$0xff]
    %v559 = vld [vmem:[#allocation5 + $0xfd0] sm:$0xff]
    %v560 = vld [vmem:[#allocation5 + $0xfd8] sm:$0xff]
    %v561 = vld [vmem:[#allocation5 + $0xfe0] sm:$0xff]
    %v562 = vld [vmem:[#allocation5 + $0xfe8] sm:$0xff]
    %v563 = vld [vmem:[#allocation5 + $0xff0] sm:$0xff]
    %v564 = vld [vmem:[#allocation5 + $0xff8] sm:$0xff]
    %v565 = vld [vmem:[#allocation5 + $0x1000] sm:$0xff]
    %v566 = vld [vmem:[#allocation5 + $0x1008] sm:$0xff]
    %v567 = vld [vmem:[#allocation5 + $0x1010] sm:$0xff]
    %v568 = vld [vmem:[#allocation5 + $0x1018] sm:$0xff]
    %v569 = vld [vmem:[#allocation5 + $0x1020] sm:$0xff]
    %v570 = vld [vmem:[#allocation5 + $0x1028] sm:$0xff]
    %v571 = vld [vmem:[#allocation5 + $0x1030] sm:$0xff]
    %v572 = vld [vmem:[#allocation5 + $0x1038] sm:$0xff]
    %v573 = vld [vmem:[#allocation5 + $0x1040] sm:$0xff]
    %v574 = vld [vmem:[#allocation5 + $0x1048] sm:$0xff]
    %v575 = vld [vmem:[#allocation5 + $0x1050] sm:$0xff]
    %v576 = vld [vmem:[#allocation5 + $0x1058] sm:$0xff]
    %v577 = vld [vmem:[#allocation5 + $0x1060] sm:$0xff]
    %v578 = vld [vmem:[#allocation5 + $0x1068] sm:$0xff]
    %v579 = vld [vmem:[#allocation5 + $0x1070] sm:$0xff]
    %v580 = vld [vmem:[#allocation5 + $0x1078] sm:$0xff]
    %v581 = vld [vmem:[#allocation5 + $0x1080] sm:$0xff]
    %v582 = vld [vmem:[#allocation5 + $0x1088] sm:$0xff]
    %v583 = vld [vmem:[#allocation5 + $0x1090] sm:$0xff]
    %v584 = vld [vmem:[#allocation5 + $0x1098] sm:$0xff]
    %v585 = vld [vmem:[#allocation5 + $0x10a0] sm:$0xff]
    %v586 = vld [vmem:[#allocation5 + $0x10a8] sm:$0xff]
    %v587 = vld [vmem:[#allocation5 + $0x10b0] sm:$0xff]
    %v588 = vld [vmem:[#allocation5 + $0x10b8] sm:$0xff]
    %v589 = vld [vmem:[#allocation5 + $0x10c0] sm:$0xff]
    %v590 = vld [vmem:[#allocation5 + $0x10c8] sm:$0xff]
    %v591 = vld [vmem:[#allocation5 + $0x10d0] sm:$0xff]
    %v592 = vld [vmem:[#allocation5 + $0x10d8] sm:$0xff]
    %v593 = vld [vmem:[#allocation5 + $0x10e0] sm:$0xff]
    %v594 = vld [vmem:[#allocation5 + $0x10e8] sm:$0xff]
    %v595 = vld [vmem:[#allocation5 + $0x10f0] sm:$0xff]
    %v596 = vld [vmem:[#allocation5 + $0x10f8] sm:$0xff]
    %v597 = vld [vmem:[#allocation5 + $0x1100] sm:$0xff]
    %v598 = vld [vmem:[#allocation5 + $0x1108] sm:$0xff]
    %v599 = vld [vmem:[#allocation5 + $0x1110] sm:$0xff]
    %v600 = vld [vmem:[#allocation5 + $0x1118] sm:$0xff]
    %v601 = vld [vmem:[#allocation5 + $0x1120] sm:$0xff]
    %v602 = vld [vmem:[#allocation5 + $0x1128] sm:$0xff]
    %v603 = vld [vmem:[#allocation5 + $0x1130] sm:$0xff]
    %v604 = vld [vmem:[#allocation5 + $0x1138] sm:$0xff]
    %v605 = vld [vmem:[#allocation5 + $0x1140] sm:$0xff]
    %v606 = vld [vmem:[#allocation5 + $0x1148] sm:$0xff]
    %v607 = vld [vmem:[#allocation5 + $0x1150] sm:$0xff]
    %v608 = vld [vmem:[#allocation5 + $0x1158] sm:$0xff]
    %v609 = vld [vmem:[#allocation5 + $0x1160] sm:$0xff]
    %v610 = vld [vmem:[#allocation5 + $0x1168] sm:$0xff]
    %v611 = vld [vmem:[#allocation5 + $0x1170] sm:$0xff]
    %v612 = vld [vmem:[#allocation5 + $0x1178] sm:$0xff]
    %v613 = vld [vmem:[#allocation5 + $0x1180] sm:$0xff]
    %v614 = vld [vmem:[#allocation5 + $0x1188] sm:$0xff]
    %v615 = vld [vmem:[#allocation5 + $0x1190] sm:$0xff]
    %v616 = vld [vmem:[#allocation5 + $0x1198] sm:$0xff]
    %v617 = vld [vmem:[#allocation5 + $0x11a0] sm:$0xff]
    %v618 = vld [vmem:[#allocation5 + $0x11a8] sm:$0xff]
    %v619 = vld [vmem:[#allocation5 + $0x11b0] sm:$0xff]
    %v620 = vld [vmem:[#allocation5 + $0x11b8] sm:$0xff]
    %v621 = vld [vmem:[#allocation5 + $0x11c0] sm:$0xff]
    %v622 = vld [vmem:[#allocation5 + $0x11c8] sm:$0xff]
    %v623 = vld [vmem:[#allocation5 + $0x11d0] sm:$0xff]
    %v624 = vld [vmem:[#allocation5 + $0x11d8] sm:$0xff]
    %v625 = vld [vmem:[#allocation5 + $0x11e0] sm:$0xff]
    %v626 = vld [vmem:[#allocation5 + $0x11e8] sm:$0xff]
    %v627 = vld [vmem:[#allocation5 + $0x11f0] sm:$0xff]
    %v628 = vld [vmem:[#allocation5 + $0x11f8] sm:$0xff]
    %v629 = vld [vmem:[#allocation5 + $0x1200] sm:$0xff]
    %v630 = vld [vmem:[#allocation5 + $0x1208] sm:$0xff]
    %v631 = vld [vmem:[#allocation5 + $0x1210] sm:$0xff]
    %v632 = vld [vmem:[#allocation5 + $0x1218] sm:$0xff]
    %v633 = vld [vmem:[#allocation5 + $0x1220] sm:$0xff]
    %v634 = vld [vmem:[#allocation5 + $0x1228] sm:$0xff]
    %v635 = vld [vmem:[#allocation5 + $0x1230] sm:$0xff]
    %v636 = vld [vmem:[#allocation5 + $0x1238] sm:$0xff]
    %v637 = vld [vmem:[#allocation5 + $0x1240] sm:$0xff]
    %v638 = vld [vmem:[#allocation5 + $0x1248] sm:$0xff]
    %v639 = vld [vmem:[#allocation5 + $0x1250] sm:$0xff]
    %v640 = vld [vmem:[#allocation5 + $0x1258] sm:$0xff]
    %v641 = vld [vmem:[#allocation5 + $0x1260] sm:$0xff]
    %v642 = vld [vmem:[#allocation5 + $0x1268] sm:$0xff]
    %v643 = vld [vmem:[#allocation5 + $0x1270] sm:$0xff]
    %v644 = vld [vmem:[#allocation5 + $0x1278] sm:$0xff]
    %v645 = vld [vmem:[#allocation5 + $0x1280] sm:$0xff]
    %v646 = vld [vmem:[#allocation5 + $0x1288] sm:$0xff]
    %v647 = vld [vmem:[#allocation5 + $0x1290] sm:$0xff]
    %v648 = vld [vmem:[#allocation5 + $0x1298] sm:$0xff]
    %v649 = vld [vmem:[#allocation5 + $0x12a0] sm:$0xff]
    %v650 = vld [vmem:[#allocation5 + $0x12a8] sm:$0xff]
    %v651 = vld [vmem:[#allocation5 + $0x12b0] sm:$0xff]
    %v652 = vld [vmem:[#allocation5 + $0x12b8] sm:$0xff]
    %v653 = vld [vmem:[#allocation5 + $0x12c0] sm:$0xff]
    %v654 = vld [vmem:[#allocation5 + $0x12c8] sm:$0xff]
    %v655 = vld [vmem:[#allocation5 + $0x12d0] sm:$0xff]
    %v656 = vld [vmem:[#allocation5 + $0x12d8] sm:$0xff]
    %v657 = vld [vmem:[#allocation5 + $0x12e0] sm:$0xff]
    %v658 = vld [vmem:[#allocation5 + $0x12e8] sm:$0xff]
    %v659 = vld [vmem:[#allocation5 + $0x12f0] sm:$0xff]
    %v660 = vld [vmem:[#allocation5 + $0x12f8] sm:$0xff]
    %v661 = vld [vmem:[#allocation5 + $0x1300] sm:$0xff]
    %v662 = vld [vmem:[#allocation5 + $0x1308] sm:$0xff]
    %v663 = vld [vmem:[#allocation5 + $0x1310] sm:$0xff]
    %v664 = vld [vmem:[#allocation5 + $0x1318] sm:$0xff]
    %v665 = vld [vmem:[#allocation5 + $0x1320] sm:$0xff]
    %v666 = vld [vmem:[#allocation5 + $0x1328] sm:$0xff]
    %v667 = vld [vmem:[#allocation5 + $0x1330] sm:$0xff]
    %v668 = vld [vmem:[#allocation5 + $0x1338] sm:$0xff]
    %v669 = vld [vmem:[#allocation5 + $0x1340] sm:$0xff]
    %v670 = vld [vmem:[#allocation5 + $0x1348] sm:$0xff]
    %v671 = vld [vmem:[#allocation5 + $0x1350] sm:$0xff]
    %v672 = vld [vmem:[#allocation5 + $0x1358] sm:$0xff]
    %v673 = vld [vmem:[#allocation5 + $0x1360] sm:$0xff]
    %v674 = vld [vmem:[#allocation5 + $0x1368] sm:$0xff]
    %v675 = vld [vmem:[#allocation5 + $0x1370] sm:$0xff]
    %v676 = vld [vmem:[#allocation5 + $0x1378] sm:$0xff]
    %v677 = vld [vmem:[#allocation5 + $0x1380] sm:$0xff]
    %v678 = vld [vmem:[#allocation5 + $0x1388] sm:$0xff]
    %v679 = vld [vmem:[#allocation5 + $0x1390] sm:$0xff]
    %v680 = vld [vmem:[#allocation5 + $0x1398] sm:$0xff]
    %v681 = vld [vmem:[#allocation5 + $0x13a0] sm:$0xff]
    %v682 = vld [vmem:[#allocation5 + $0x13a8] sm:$0xff]
    %v683 = vld [vmem:[#allocation5 + $0x13b0] sm:$0xff]
    %v684 = vld [vmem:[#allocation5 + $0x13b8] sm:$0xff]
    %v685 = vld [vmem:[#allocation5 + $0x13c0] sm:$0xff]
    %v686 = vld [vmem:[#allocation5 + $0x13c8] sm:$0xff]
    %v687 = vld [vmem:[#allocation5 + $0x13d0] sm:$0xff]
    %v688 = vld [vmem:[#allocation5 + $0x13d8] sm:$0xff]
    %v689 = vld [vmem:[#allocation5 + $0x13e0] sm:$0xff]
    %v690 = vld [vmem:[#allocation5 + $0x13e8] sm:$0xff]
    %v691 = vld [vmem:[#allocation5 + $0x13f0] sm:$0xff]
    %v692 = vld [vmem:[#allocation5 + $0x13f8] sm:$0xff]
    %v693 = vld [vmem:[#allocation5 + $0x1400] sm:$0xff]
    %v694 = vld [vmem:[#allocation5 + $0x1408] sm:$0xff]
    %v695 = vld [vmem:[#allocation5 + $0x1410] sm:$0xff]
    %v696 = vld [vmem:[#allocation5 + $0x1418] sm:$0xff]
    %v697 = vld [vmem:[#allocation5 + $0x1420] sm:$0xff]
    %v698 = vld [vmem:[#allocation5 + $0x1428] sm:$0xff]
    %v699 = vld [vmem:[#allocation5 + $0x1430] sm:$0xff]
    %v700 = vld [vmem:[#allocation5 + $0x1438] sm:$0xff]
    %v701 = vld [vmem:[#allocation5 + $0x1440] sm:$0xff]
    %v702 = vld [vmem:[#allocation5 + $0x1448] sm:$0xff]
    %v703 = vld [vmem:[#allocation5 + $0x1450] sm:$0xff]
    %v704 = vld [vmem:[#allocation5 + $0x1458] sm:$0xff]
    %v705 = vld [vmem:[#allocation5 + $0x1460] sm:$0xff]
    %v706 = vld [vmem:[#allocation5 + $0x1468] sm:$0xff]
    %v707 = vld [vmem:[#allocation5 + $0x1470] sm:$0xff]
    %v708 = vld [vmem:[#allocation5 + $0x1478] sm:$0xff]
    %v709 = vld [vmem:[#allocation5 + $0x1480] sm:$0xff]
    %v710 = vld [vmem:[#allocation5 + $0x1488] sm:$0xff]
    %v711 = vld [vmem:[#allocation5 + $0x1490] sm:$0xff]
    %v712 = vld [vmem:[#allocation5 + $0x1498] sm:$0xff]
    %v713 = vld [vmem:[#allocation5 + $0x14a0] sm:$0xff]
    %v714 = vld [vmem:[#allocation5 + $0x14a8] sm:$0xff]
    %v715 = vld [vmem:[#allocation5 + $0x14b0] sm:$0xff]
    %v716 = vld [vmem:[#allocation5 + $0x14b8] sm:$0xff]
    %v717 = vld [vmem:[#allocation5 + $0x14c0] sm:$0xff]
    %v718 = vld [vmem:[#allocation5 + $0x14c8] sm:$0xff]
    %v719 = vld [vmem:[#allocation5 + $0x14d0] sm:$0xff]
    %v720 = vld [vmem:[#allocation5 + $0x14d8] sm:$0xff]
    %v721 = vld [vmem:[#allocation5 + $0x14e0] sm:$0xff]
    %v722 = vld [vmem:[#allocation5 + $0x14e8] sm:$0xff]
    %v723 = vld [vmem:[#allocation5 + $0x14f0] sm:$0xff]
    %v724 = vld [vmem:[#allocation5 + $0x14f8] sm:$0xff]
    %v725 = vld [vmem:[#allocation5 + $0x1500] sm:$0xff]
    %v726 = vld [vmem:[#allocation5 + $0x1508] sm:$0xff]
    %v727 = vld [vmem:[#allocation5 + $0x1510] sm:$0xff]
    %v728 = vld [vmem:[#allocation5 + $0x1518] sm:$0xff]
    %v729 = vld [vmem:[#allocation5 + $0x1520] sm:$0xff]
    %v730 = vld [vmem:[#allocation5 + $0x1528] sm:$0xff]
    %v731 = vld [vmem:[#allocation5 + $0x1530] sm:$0xff]
    %v732 = vld [vmem:[#allocation5 + $0x1538] sm:$0xff]
    %v733 = vld [vmem:[#allocation5 + $0x1540] sm:$0xff]
    %v734 = vld [vmem:[#allocation5 + $0x1548] sm:$0xff]
    %v735 = vld [vmem:[#allocation5 + $0x1550] sm:$0xff]
    %v736 = vld [vmem:[#allocation5 + $0x1558] sm:$0xff]
    %v737 = vld [vmem:[#allocation5 + $0x1560] sm:$0xff]
    %v738 = vld [vmem:[#allocation5 + $0x1568] sm:$0xff]
    %v739 = vld [vmem:[#allocation5 + $0x1570] sm:$0xff]
    %v740 = vld [vmem:[#allocation5 + $0x1578] sm:$0xff]
    %v741 = vld [vmem:[#allocation5 + $0x1580] sm:$0xff]
    %v742 = vld [vmem:[#allocation5 + $0x1588] sm:$0xff]
    %v743 = vld [vmem:[#allocation5 + $0x1590] sm:$0xff]
    %v744 = vld [vmem:[#allocation5 + $0x1598] sm:$0xff]
    %v745 = vld [vmem:[#allocation5 + $0x15a0] sm:$0xff]
    %v746 = vld [vmem:[#allocation5 + $0x15a8] sm:$0xff]
    %v747 = vld [vmem:[#allocation5 + $0x15b0] sm:$0xff]
    %v748 = vld [vmem:[#allocation5 + $0x15b8] sm:$0xff]
    %v749 = vld [vmem:[#allocation5 + $0x15c0] sm:$0xff]
    %v750 = vld [vmem:[#allocation5 + $0x15c8] sm:$0xff]
    %v751 = vld [vmem:[#allocation5 + $0x15d0] sm:$0xff]
    %v752 = vld [vmem:[#allocation5 + $0x15d8] sm:$0xff]
    %v753 = vld [vmem:[#allocation5 + $0x15e0] sm:$0xff]
    %v754 = vld [vmem:[#allocation5 + $0x15e8] sm:$0xff]
    %v755 = vld [vmem:[#allocation5 + $0x15f0] sm:$0xff]
    %v756 = vld [vmem:[#allocation5 + $0x15f8] sm:$0xff]
    %v757 = vld [vmem:[#allocation5 + $0x1600] sm:$0xff]
    %v758 = vld [vmem:[#allocation5 + $0x1608] sm:$0xff]
    %v759 = vld [vmem:[#allocation5 + $0x1610] sm:$0xff]
    %v760 = vld [vmem:[#allocation5 + $0x1618] sm:$0xff]
    %v761 = vld [vmem:[#allocation5 + $0x1620] sm:$0xff]
    %v762 = vld [vmem:[#allocation5 + $0x1628] sm:$0xff]
    %v763 = vld [vmem:[#allocation5 + $0x1630] sm:$0xff]
    %v764 = vld [vmem:[#allocation5 + $0x1638] sm:$0xff]
    %v765 = vld [vmem:[#allocation5 + $0x1640] sm:$0xff]
    %v766 = vld [vmem:[#allocation5 + $0x1648] sm:$0xff]
    %v767 = vld [vmem:[#allocation5 + $0x1650] sm:$0xff]
    %v768 = vld [vmem:[#allocation5 + $0x1658] sm:$0xff]
    %v769 = vld [vmem:[#allocation5 + $0x1660] sm:$0xff]
    %v770 = vld [vmem:[#allocation5 + $0x1668] sm:$0xff]
    %v771 = vld [vmem:[#allocation5 + $0x1670] sm:$0xff]
    %v772 = vld [vmem:[#allocation5 + $0x1678] sm:$0xff]
    %v773 = vld [vmem:[#allocation5 + $0x1680] sm:$0xff]
    %v774 = vld [vmem:[#allocation5 + $0x1688] sm:$0xff]
    %v775 = vld [vmem:[#allocation5 + $0x1690] sm:$0xff]
    %v776 = vld [vmem:[#allocation5 + $0x1698] sm:$0xff]
    %v777 = vld [vmem:[#allocation5 + $0x16a0] sm:$0xff]
    %v778 = vld [vmem:[#allocation5 + $0x16a8] sm:$0xff]
    %v779 = vld [vmem:[#allocation5 + $0x16b0] sm:$0xff]
    %v780 = vld [vmem:[#allocation5 + $0x16b8] sm:$0xff]
    %v781 = vld [vmem:[#allocation5 + $0x16c0] sm:$0xff]
    %v782 = vld [vmem:[#allocation5 + $0x16c8] sm:$0xff]
    %v783 = vld [vmem:[#allocation5 + $0x16d0] sm:$0xff]
    %v784 = vld [vmem:[#allocation5 + $0x16d8] sm:$0xff]
    %v785 = vld [vmem:[#allocation5 + $0x16e0] sm:$0xff]
    %v786 = vld [vmem:[#allocation5 + $0x16e8] sm:$0xff]
    %v787 = vld [vmem:[#allocation5 + $0x16f0] sm:$0xff]
    %v788 = vld [vmem:[#allocation5 + $0x16f8] sm:$0xff]
    %v789 = vld [vmem:[#allocation5 + $0x1700] sm:$0xff]
    %v790 = vld [vmem:[#allocation5 + $0x1708] sm:$0xff]
    %v791 = vld [vmem:[#allocation5 + $0x1710] sm:$0xff]
    %v792 = vld [vmem:[#allocation5 + $0x1718] sm:$0xff]
    %v793 = vld [vmem:[#allocation5 + $0x1720] sm:$0xff]
    %v794 = vld [vmem:[#allocation5 + $0x1728] sm:$0xff]
    %v795 = vld [vmem:[#allocation5 + $0x1730] sm:$0xff]
    %v796 = vld [vmem:[#allocation5 + $0x1738] sm:$0xff]
    %v797 = vld [vmem:[#allocation5 + $0x1740] sm:$0xff]
    %v798 = vld [vmem:[#allocation5 + $0x1748] sm:$0xff]
    %v799 = vld [vmem:[#allocation5 + $0x1750] sm:$0xff]
    %v800 = vld [vmem:[#allocation5 + $0x1758] sm:$0xff]
    %v801 = vld [vmem:[#allocation5 + $0x1760] sm:$0xff]
    %v802 = vld [vmem:[#allocation5 + $0x1768] sm:$0xff]
    %v803 = vld [vmem:[#allocation5 + $0x1770] sm:$0xff]
    %v804 = vld [vmem:[#allocation5 + $0x1778] sm:$0xff]
    %v805 = vld [vmem:[#allocation5 + $0x1780] sm:$0xff]
    %v806 = vld [vmem:[#allocation5 + $0x1788] sm:$0xff]
    %v807 = vld [vmem:[#allocation5 + $0x1790] sm:$0xff]
    %v808 = vld [vmem:[#allocation5 + $0x1798] sm:$0xff]
    %v809 = vld [vmem:[#allocation5 + $0x17a0] sm:$0xff]
    %v810 = vld [vmem:[#allocation5 + $0x17a8] sm:$0xff]
    %v811 = vld [vmem:[#allocation5 + $0x17b0] sm:$0xff]
    %v812 = vld [vmem:[#allocation5 + $0x17b8] sm:$0xff]
    %v813 = vld [vmem:[#allocation5 + $0x17c0] sm:$0xff]
    %v814 = vld [vmem:[#allocation5 + $0x17c8] sm:$0xff]
    %v815 = vld [vmem:[#allocation5 + $0x17d0] sm:$0xff]
    %v816 = vld [vmem:[#allocation5 + $0x17d8] sm:$0xff]
    %v817 = vld [vmem:[#allocation5 + $0x17e0] sm:$0xff]
    %v818 = vld [vmem:[#allocation5 + $0x17e8] sm:$0xff]
    %v819 = vld [vmem:[#allocation5 + $0x17f0] sm:$0xff]
    %v820 = vld [vmem:[#allocation5 + $0x17f8] sm:$0xff]
    %v821 = vld [vmem:[#allocation5 + $0x1800] sm:$0xff]
    %v822 = vld [vmem:[#allocation5 + $0x1808] sm:$0xff]
    %v823 = vld [vmem:[#allocation5 + $0x1810] sm:$0xff]
    %v824 = vld [vmem:[#allocation5 + $0x1818] sm:$0xff]
    %v825 = vld [vmem:[#allocation5 + $0x1820] sm:$0xff]
    %v826 = vld [vmem:[#allocation5 + $0x1828] sm:$0xff]
    %v827 = vld [vmem:[#allocation5 + $0x1830] sm:$0xff]
    %v828 = vld [vmem:[#allocation5 + $0x1838] sm:$0xff]
    %v829 = vld [vmem:[#allocation5 + $0x1840] sm:$0xff]
    %v830 = vld [vmem:[#allocation5 + $0x1848] sm:$0xff]
    %v831 = vld [vmem:[#allocation5 + $0x1850] sm:$0xff]
    %v832 = vld [vmem:[#allocation5 + $0x1858] sm:$0xff]
    %v833 = vld [vmem:[#allocation5 + $0x1860] sm:$0xff]
    %v834 = vld [vmem:[#allocation5 + $0x1868] sm:$0xff]
    %v835 = vld [vmem:[#allocation5 + $0x1870] sm:$0xff]
    %v836 = vld [vmem:[#allocation5 + $0x1878] sm:$0xff]
    %v837 = vld [vmem:[#allocation5 + $0x1880] sm:$0xff]
    %v838 = vld [vmem:[#allocation5 + $0x1888] sm:$0xff]
    %v839 = vld [vmem:[#allocation5 + $0x1890] sm:$0xff]
    %v840 = vld [vmem:[#allocation5 + $0x1898] sm:$0xff]
    %v841 = vld [vmem:[#allocation5 + $0x18a0] sm:$0xff]
    %v842 = vld [vmem:[#allocation5 + $0x18a8] sm:$0xff]
    %v843 = vld [vmem:[#allocation5 + $0x18b0] sm:$0xff]
    %v844 = vld [vmem:[#allocation5 + $0x18b8] sm:$0xff]
    %v845 = vld [vmem:[#allocation5 + $0x18c0] sm:$0xff]
    %v846 = vld [vmem:[#allocation5 + $0x18c8] sm:$0xff]
    %v847 = vld [vmem:[#allocation5 + $0x18d0] sm:$0xff]
    %v848 = vld [vmem:[#allocation5 + $0x18d8] sm:$0xff]
    %v849 = vld [vmem:[#allocation5 + $0x18e0] sm:$0xff]
    %v850 = vld [vmem:[#allocation5 + $0x18e8] sm:$0xff]
    %v851 = vld [vmem:[#allocation5 + $0x18f0] sm:$0xff]
    %v852 = vld [vmem:[#allocation5 + $0x18f8] sm:$0xff]
    %v853 = vld [vmem:[#allocation5 + $0x1900] sm:$0xff]
    %v854 = vld [vmem:[#allocation5 + $0x1908] sm:$0xff]
    %v855 = vld [vmem:[#allocation5 + $0x1910] sm:$0xff]
    %v856 = vld [vmem:[#allocation5 + $0x1918] sm:$0xff]
    %v857 = vld [vmem:[#allocation5 + $0x1920] sm:$0xff]
    %v858 = vld [vmem:[#allocation5 + $0x1928] sm:$0xff]
    %v859 = vld [vmem:[#allocation5 + $0x1930] sm:$0xff]
    %v860 = vld [vmem:[#allocation5 + $0x1938] sm:$0xff]
    %v861 = vld [vmem:[#allocation5 + $0x1940] sm:$0xff]
    %v862 = vld [vmem:[#allocation5 + $0x1948] sm:$0xff]
    %v863 = vld [vmem:[#allocation5 + $0x1950] sm:$0xff]
    %v864 = vld [vmem:[#allocation5 + $0x1958] sm:$0xff]
    %v865 = vld [vmem:[#allocation5 + $0x1960] sm:$0xff]
    %v866 = vld [vmem:[#allocation5 + $0x1968] sm:$0xff]
    %v867 = vld [vmem:[#allocation5 + $0x1970] sm:$0xff]
    %v868 = vld [vmem:[#allocation5 + $0x1978] sm:$0xff]
    %v869 = vld [vmem:[#allocation5 + $0x1980] sm:$0xff]
    %v870 = vld [vmem:[#allocation5 + $0x1988] sm:$0xff]
    %v871 = vld [vmem:[#allocation5 + $0x1990] sm:$0xff]
    %v872 = vld [vmem:[#allocation5 + $0x1998] sm:$0xff]
    %v873 = vld [vmem:[#allocation5 + $0x19a0] sm:$0xff]
    %v874 = vld [vmem:[#allocation5 + $0x19a8] sm:$0xff]
    %v875 = vld [vmem:[#allocation5 + $0x19b0] sm:$0xff]
    %v876 = vld [vmem:[#allocation5 + $0x19b8] sm:$0xff]
    %v877 = vld [vmem:[#allocation5 + $0x19c0] sm:$0xff]
    %v878 = vld [vmem:[#allocation5 + $0x19c8] sm:$0xff]
    %v879 = vld [vmem:[#allocation5 + $0x19d0] sm:$0xff]
    %v880 = vld [vmem:[#allocation5 + $0x19d8] sm:$0xff]
    %v881 = vld [vmem:[#allocation5 + $0x19e0] sm:$0xff]
    %v882 = vld [vmem:[#allocation5 + $0x19e8] sm:$0xff]
    %v883 = vld [vmem:[#allocation5 + $0x19f0] sm:$0xff]
    %v884 = vld [vmem:[#allocation5 + $0x19f8] sm:$0xff]
    %v885 = vld [vmem:[#allocation5 + $0x1a00] sm:$0xff]
    %v886 = vld [vmem:[#allocation5 + $0x1a08] sm:$0xff]
    %v887 = vld [vmem:[#allocation5 + $0x1a10] sm:$0xff]
    %v888 = vld [vmem:[#allocation5 + $0x1a18] sm:$0xff]
    %v889 = vld [vmem:[#allocation5 + $0x1a20] sm:$0xff]
    %v890 = vld [vmem:[#allocation5 + $0x1a28] sm:$0xff]
    %v891 = vld [vmem:[#allocation5 + $0x1a30] sm:$0xff]
    %v892 = vld [vmem:[#allocation5 + $0x1a38] sm:$0xff]
    %v893 = vld [vmem:[#allocation5 + $0x1a40] sm:$0xff]
    %v894 = vld [vmem:[#allocation5 + $0x1a48] sm:$0xff]
    %v895 = vld [vmem:[#allocation5 + $0x1a50] sm:$0xff]
    %v896 = vld [vmem:[#allocation5 + $0x1a58] sm:$0xff]
    %v897 = vld [vmem:[#allocation5 + $0x1a60] sm:$0xff]
    %v898 = vld [vmem:[#allocation5 + $0x1a68] sm:$0xff]
    %v899 = vld [vmem:[#allocation5 + $0x1a70] sm:$0xff]
    %v900 = vld [vmem:[#allocation5 + $0x1a78] sm:$0xff]
    %v901 = vld [vmem:[#allocation5 + $0x1a80] sm:$0xff]
    %v902 = vld [vmem:[#allocation5 + $0x1a88] sm:$0xff]
    %v903 = vld [vmem:[#allocation5 + $0x1a90] sm:$0xff]
    %v904 = vld [vmem:[#allocation5 + $0x1a98] sm:$0xff]
    %v905 = vld [vmem:[#allocation5 + $0x1aa0] sm:$0xff]
    %v906 = vld [vmem:[#allocation5 + $0x1aa8] sm:$0xff]
    %v907 = vld [vmem:[#allocation5 + $0x1ab0] sm:$0xff]
    %v908 = vld [vmem:[#allocation5 + $0x1ab8] sm:$0xff]
    %v909 = vld [vmem:[#allocation5 + $0x1ac0] sm:$0xff]
    %v910 = vld [vmem:[#allocation5 + $0x1ac8] sm:$0xff]
    %v911 = vld [vmem:[#allocation5 + $0x1ad0] sm:$0xff]
    %v912 = vld [vmem:[#allocation5 + $0x1ad8] sm:$0xff]
    %v913 = vld [vmem:[#allocation5 + $0x1ae0] sm:$0xff]
    %v914 = vld [vmem:[#allocation5 + $0x1ae8] sm:$0xff]
    %v915 = vld [vmem:[#allocation5 + $0x1af0] sm:$0xff]
    %v916 = vld [vmem:[#allocation5 + $0x1af8] sm:$0xff]
    %v917 = vld [vmem:[#allocation5 + $0x1b00] sm:$0xff]
    %v918 = vld [vmem:[#allocation5 + $0x1b08] sm:$0xff]
    %v919 = vld [vmem:[#allocation5 + $0x1b10] sm:$0xff]
    %v920 = vld [vmem:[#allocation5 + $0x1b18] sm:$0xff]
    %v921 = vld [vmem:[#allocation5 + $0x1b20] sm:$0xff]
    %v922 = vld [vmem:[#allocation5 + $0x1b28] sm:$0xff]
    %v923 = vld [vmem:[#allocation5 + $0x1b30] sm:$0xff]
    %v924 = vld [vmem:[#allocation5 + $0x1b38] sm:$0xff]
    %v925 = vld [vmem:[#allocation5 + $0x1b40] sm:$0xff]
    %v926 = vld [vmem:[#allocation5 + $0x1b48] sm:$0xff]
    %v927 = vld [vmem:[#allocation5 + $0x1b50] sm:$0xff]
    %v928 = vld [vmem:[#allocation5 + $0x1b58] sm:$0xff]
    %v929 = vld [vmem:[#allocation5 + $0x1b60] sm:$0xff]
    %v930 = vld [vmem:[#allocation5 + $0x1b68] sm:$0xff]
    %v931 = vld [vmem:[#allocation5 + $0x1b70] sm:$0xff]
    %v932 = vld [vmem:[#allocation5 + $0x1b78] sm:$0xff]
    %v933 = vld [vmem:[#allocation5 + $0x1b80] sm:$0xff]
    %v934 = vld [vmem:[#allocation5 + $0x1b88] sm:$0xff]
    %v935 = vld [vmem:[#allocation5 + $0x1b90] sm:$0xff]
    %v936 = vld [vmem:[#allocation5 + $0x1b98] sm:$0xff]
    %v937 = vld [vmem:[#allocation5 + $0x1ba0] sm:$0xff]
    %v938 = vld [vmem:[#allocation5 + $0x1ba8] sm:$0xff]
    %v939 = vld [vmem:[#allocation5 + $0x1bb0] sm:$0xff]
    %v940 = vld [vmem:[#allocation5 + $0x1bb8] sm:$0xff]
    %v941 = vld [vmem:[#allocation5 + $0x1bc0] sm:$0xff]
    %v942 = vld [vmem:[#allocation5 + $0x1bc8] sm:$0xff]
    %v943 = vld [vmem:[#allocation5 + $0x1bd0] sm:$0xff]
    %v944 = vld [vmem:[#allocation5 + $0x1bd8] sm:$0xff]
    %v945 = vld [vmem:[#allocation5 + $0x1be0] sm:$0xff]
    %v946 = vld [vmem:[#allocation5 + $0x1be8] sm:$0xff]
    %v947 = vld [vmem:[#allocation5 + $0x1bf0] sm:$0xff]
    %v948 = vld [vmem:[#allocation5 + $0x1bf8] sm:$0xff]
    %v949 = vld [vmem:[#allocation5 + $0x1c00] sm:$0xff]
    %v950 = vld [vmem:[#allocation5 + $0x1c08] sm:$0xff]
    %v951 = vld [vmem:[#allocation5 + $0x1c10] sm:$0xff]
    %v952 = vld [vmem:[#allocation5 + $0x1c18] sm:$0xff]
    %v953 = vld [vmem:[#allocation5 + $0x1c20] sm:$0xff]
    %v954 = vld [vmem:[#allocation5 + $0x1c28] sm:$0xff]
    %v955 = vld [vmem:[#allocation5 + $0x1c30] sm:$0xff]
    %v956 = vld [vmem:[#allocation5 + $0x1c38] sm:$0xff]
    %v957 = vld [vmem:[#allocation5 + $0x1c40] sm:$0xff]
    %v958 = vld [vmem:[#allocation5 + $0x1c48] sm:$0xff]
    %v959 = vld [vmem:[#allocation5 + $0x1c50] sm:$0xff]
    %v960 = vld [vmem:[#allocation5 + $0x1c58] sm:$0xff]
    %v961 = vld [vmem:[#allocation5 + $0x1c60] sm:$0xff]
    %v962 = vld [vmem:[#allocation5 + $0x1c68] sm:$0xff]
    %v963 = vld [vmem:[#allocation5 + $0x1c70] sm:$0xff]
    %v964 = vld [vmem:[#allocation5 + $0x1c78] sm:$0xff]
    %v965 = vld [vmem:[#allocation5 + $0x1c80] sm:$0xff]
    %v966 = vld [vmem:[#allocation5 + $0x1c88] sm:$0xff]
    %v967 = vld [vmem:[#allocation5 + $0x1c90] sm:$0xff]
    %v968 = vld [vmem:[#allocation5 + $0x1c98] sm:$0xff]
    %v969 = vld [vmem:[#allocation5 + $0x1ca0] sm:$0xff]
    %v970 = vld [vmem:[#allocation5 + $0x1ca8] sm:$0xff]
    %v971 = vld [vmem:[#allocation5 + $0x1cb0] sm:$0xff]
    %v972 = vld [vmem:[#allocation5 + $0x1cb8] sm:$0xff]
    %v973 = vld [vmem:[#allocation5 + $0x1cc0] sm:$0xff]
    %v974 = vld [vmem:[#allocation5 + $0x1cc8] sm:$0xff]
    %v975 = vld [vmem:[#allocation5 + $0x1cd0] sm:$0xff]
    %v976 = vld [vmem:[#allocation5 + $0x1cd8] sm:$0xff]
    %v977 = vld [vmem:[#allocation5 + $0x1ce0] sm:$0xff]
    %v978 = vld [vmem:[#allocation5 + $0x1ce8] sm:$0xff]
    %v979 = vld [vmem:[#allocation5 + $0x1cf0] sm:$0xff]
    %v980 = vld [vmem:[#allocation5 + $0x1cf8] sm:$0xff]
    %v981 = vld [vmem:[#allocation5 + $0x1d00] sm:$0xff]
    %v982 = vld [vmem:[#allocation5 + $0x1d08] sm:$0xff]
    %v983 = vld [vmem:[#allocation5 + $0x1d10] sm:$0xff]
    %v984 = vld [vmem:[#allocation5 + $0x1d18] sm:$0xff]
    %v985 = vld [vmem:[#allocation5 + $0x1d20] sm:$0xff]
    %v986 = vld [vmem:[#allocation5 + $0x1d28] sm:$0xff]
    %v987 = vld [vmem:[#allocation5 + $0x1d30] sm:$0xff]
    %v988 = vld [vmem:[#allocation5 + $0x1d38] sm:$0xff]
    %v989 = vld [vmem:[#allocation5 + $0x1d40] sm:$0xff]
    %v990 = vld [vmem:[#allocation5 + $0x1d48] sm:$0xff]
    %v991 = vld [vmem:[#allocation5 + $0x1d50] sm:$0xff]
    %v992 = vld [vmem:[#allocation5 + $0x1d58] sm:$0xff]
    %v993 = vld [vmem:[#allocation5 + $0x1d60] sm:$0xff]
    %v994 = vld [vmem:[#allocation5 + $0x1d68] sm:$0xff]
    %v995 = vld [vmem:[#allocation5 + $0x1d70] sm:$0xff]
    %v996 = vld [vmem:[#allocation5 + $0x1d78] sm:$0xff]
    %v997 = vld [vmem:[#allocation5 + $0x1d80] sm:$0xff]
    %v998 = vld [vmem:[#allocation5 + $0x1d88] sm:$0xff]
    %v999 = vld [vmem:[#allocation5 + $0x1d90] sm:$0xff]
    %v1000 = vld [vmem:[#allocation5 + $0x1d98] sm:$0xff]
    %v1001 = vld [vmem:[#allocation5 + $0x1da0] sm:$0xff]
    %v1002 = vld [vmem:[#allocation5 + $0x1da8] sm:$0xff]
    %v1003 = vld [vmem:[#allocation5 + $0x1db0] sm:$0xff]
    %v1004 = vld [vmem:[#allocation5 + $0x1db8] sm:$0xff]
    %v1005 = vld [vmem:[#allocation5 + $0x1dc0] sm:$0xff]
    %v1006 = vld [vmem:[#allocation5 + $0x1dc8] sm:$0xff]
    %v1007 = vld [vmem:[#allocation5 + $0x1dd0] sm:$0xff]
    %v1008 = vld [vmem:[#allocation5 + $0x1dd8] sm:$0xff]
    %v1009 = vld [vmem:[#allocation5 + $0x1de0] sm:$0xff]
    %v1010 = vld [vmem:[#allocation5 + $0x1de8] sm:$0xff]
    %v1011 = vld [vmem:[#allocation5 + $0x1df0] sm:$0xff]
    %v1012 = vld [vmem:[#allocation5 + $0x1df8] sm:$0xff]
    %v1013 = vld [vmem:[#allocation5 + $0x1e00] sm:$0xff]
    %v1014 = vld [vmem:[#allocation5 + $0x1e08] sm:$0xff]
    %v1015 = vld [vmem:[#allocation5 + $0x1e10] sm:$0xff]
    %v1016 = vld [vmem:[#allocation5 + $0x1e18] sm:$0xff]
    %v1017 = vld [vmem:[#allocation5 + $0x1e20] sm:$0xff]
    %v1018 = vld [vmem:[#allocation5 + $0x1e28] sm:$0xff]
    %v1019 = vld [vmem:[#allocation5 + $0x1e30] sm:$0xff]
    %v1020 = vld [vmem:[#allocation5 + $0x1e38] sm:$0xff]
    %v1021 = vld [vmem:[#allocation5 + $0x1e40] sm:$0xff]
    %v1022 = vld [vmem:[#allocation5 + $0x1e48] sm:$0xff]
    %v1023 = vld [vmem:[#allocation5 + $0x1e50] sm:$0xff]
    %v1024 = vld [vmem:[#allocation5 + $0x1e58] sm:$0xff]
    %v1025 = vld [vmem:[#allocation5 + $0x1e60] sm:$0xff]
    %v1026 = vld [vmem:[#allocation5 + $0x1e68] sm:$0xff]
    %v1027 = vld [vmem:[#allocation5 + $0x1e70] sm:$0xff]
    %v1028 = vld [vmem:[#allocation5 + $0x1e78] sm:$0xff]
    %v1029 = vld [vmem:[#allocation5 + $0x1e80] sm:$0xff]
    %v1030 = vld [vmem:[#allocation5 + $0x1e88] sm:$0xff]
    %v1031 = vld [vmem:[#allocation5 + $0x1e90] sm:$0xff]
    %v1032 = vld [vmem:[#allocation5 + $0x1e98] sm:$0xff]
    %v1033 = vld [vmem:[#allocation5 + $0x1ea0] sm:$0xff]
    %v1034 = vld [vmem:[#allocation5 + $0x1ea8] sm:$0xff]
    %v1035 = vld [vmem:[#allocation5 + $0x1eb0] sm:$0xff]
    %v1036 = vld [vmem:[#allocation5 + $0x1eb8] sm:$0xff]
    %v1037 = vld [vmem:[#allocation5 + $0x1ec0] sm:$0xff]
    %v1038 = vld [vmem:[#allocation5 + $0x1ec8] sm:$0xff]
    %v1039 = vld [vmem:[#allocation5 + $0x1ed0] sm:$0xff]
    %v1040 = vld [vmem:[#allocation5 + $0x1ed8] sm:$0xff]
    %v1041 = vld [vmem:[#allocation5 + $0x1ee0] sm:$0xff]
    %v1042 = vld [vmem:[#allocation5 + $0x1ee8] sm:$0xff]
    %v1043 = vld [vmem:[#allocation5 + $0x1ef0] sm:$0xff]
    %v1044 = vld [vmem:[#allocation5 + $0x1ef8] sm:$0xff]
    %v1045 = vld [vmem:[#allocation5 + $0x1f00] sm:$0xff]
    %v1046 = vld [vmem:[#allocation5 + $0x1f08] sm:$0xff]
    %v1047 = vld [vmem:[#allocation5 + $0x1f10] sm:$0xff]
    %v1048 = vld [vmem:[#allocation5 + $0x1f18] sm:$0xff]
    %v1049 = vld [vmem:[#allocation5 + $0x1f20] sm:$0xff]
    %v1050 = vld [vmem:[#allocation5 + $0x1f28] sm:$0xff]
    %v1051 = vld [vmem:[#allocation5 + $0x1f30] sm:$0xff]
    %v1052 = vld [vmem:[#allocation5 + $0x1f38] sm:$0xff]
    %v1053 = vld [vmem:[#allocation5 + $0x1f40] sm:$0xff]
    %v1054 = vld [vmem:[#allocation5 + $0x1f48] sm:$0xff]
    %v1055 = vld [vmem:[#allocation5 + $0x1f50] sm:$0xff]
    %v1056 = vld [vmem:[#allocation5 + $0x1f58] sm:$0xff]
    %v1057 = vld [vmem:[#allocation5 + $0x1f60] sm:$0xff]
    %v1058 = vld [vmem:[#allocation5 + $0x1f68] sm:$0xff]
    %v1059 = vld [vmem:[#allocation5 + $0x1f70] sm:$0xff]
    %v1060 = vld [vmem:[#allocation5 + $0x1f78] sm:$0xff]
    %v1061 = vld [vmem:[#allocation5 + $0x1f80] sm:$0xff]
    %v1062 = vld [vmem:[#allocation5 + $0x1f88] sm:$0xff]
    %v1063 = vld [vmem:[#allocation5 + $0x1f90] sm:$0xff]
    %v1064 = vld [vmem:[#allocation5 + $0x1f98] sm:$0xff]
    %v1065 = vld [vmem:[#allocation5 + $0x1fa0] sm:$0xff]
    %v1066 = vld [vmem:[#allocation5 + $0x1fa8] sm:$0xff]
    %v1067 = vld [vmem:[#allocation5 + $0x1fb0] sm:$0xff]
    %v1068 = vld [vmem:[#allocation5 + $0x1fb8] sm:$0xff]
    %v1069 = vld [vmem:[#allocation5 + $0x1fc0] sm:$0xff]
    %v1070 = vld [vmem:[#allocation5 + $0x1fc8] sm:$0xff]
    %v1071 = vld [vmem:[#allocation5 + $0x1fd0] sm:$0xff]
    %v1072 = vld [vmem:[#allocation5 + $0x1fd8] sm:$0xff]
    %v1073 = vld [vmem:[#allocation5 + $0x1fe0] sm:$0xff]
    %v1074 = vld [vmem:[#allocation5 + $0x1fe8] sm:$0xff]
    %v1075 = vld [vmem:[#allocation5 + $0x1ff0] sm:$0xff]
    %v1076 = vld [vmem:[#allocation5 + $0x1ff8] sm:$0xff]
    %v1077 = vld [vmem:[#allocation5 + $0x2000] sm:$0xff]
    %v1078 = vld [vmem:[#allocation5 + $0x2008] sm:$0xff]
    %v1079 = vld [vmem:[#allocation5 + $0x2010] sm:$0xff]
    %v1080 = vld [vmem:[#allocation5 + $0x2018] sm:$0xff]
    %v1081 = vld [vmem:[#allocation5 + $0x2020] sm:$0xff]
    %v1082 = vld [vmem:[#allocation5 + $0x2028] sm:$0xff]
    %v1083 = vld [vmem:[#allocation5 + $0x2030] sm:$0xff]
    %v1084 = vld [vmem:[#allocation5 + $0x2038] sm:$0xff]
    %v1085 = vld [vmem:[#allocation5 + $0x2040] sm:$0xff]
    %v1086 = vld [vmem:[#allocation5 + $0x2048] sm:$0xff]
    %v1087 = vld [vmem:[#allocation5 + $0x2050] sm:$0xff]
    %v1088 = vld [vmem:[#allocation5 + $0x2058] sm:$0xff]
    %v1089 = vld [vmem:[#allocation5 + $0x2060] sm:$0xff]
    %v1090 = vld [vmem:[#allocation5 + $0x2068] sm:$0xff]
    %v1091 = vld [vmem:[#allocation5 + $0x2070] sm:$0xff]
    %v1092 = vld [vmem:[#allocation5 + $0x2078] sm:$0xff]
    %v1093 = vld [vmem:[#allocation5 + $0x2080] sm:$0xff]
    %v1094 = vld [vmem:[#allocation5 + $0x2088] sm:$0xff]
    %v1095 = vld [vmem:[#allocation5 + $0x2090] sm:$0xff]
    %v1096 = vld [vmem:[#allocation5 + $0x2098] sm:$0xff]
    %v1097 = vld [vmem:[#allocation5 + $0x20a0] sm:$0xff]
    %v1098 = vld [vmem:[#allocation5 + $0x20a8] sm:$0xff]
    %v1099 = vld [vmem:[#allocation5 + $0x20b0] sm:$0xff]
    %v1100 = vld [vmem:[#allocation5 + $0x20b8] sm:$0xff]
    %v1101 = vld [vmem:[#allocation5 + $0x20c0] sm:$0xff]
    %v1102 = vld [vmem:[#allocation5 + $0x20c8] sm:$0xff]
    %v1103 = vld [vmem:[#allocation5 + $0x20d0] sm:$0xff]
    %v1104 = vld [vmem:[#allocation5 + $0x20d8] sm:$0xff]
    %v1105 = vld [vmem:[#allocation5 + $0x20e0] sm:$0xff]
    %v1106 = vld [vmem:[#allocation5 + $0x20e8] sm:$0xff]
    %v1107 = vld [vmem:[#allocation5 + $0x20f0] sm:$0xff]
    %v1108 = vld [vmem:[#allocation5 + $0x20f8] sm:$0xff]
    %v1109 = vld [vmem:[#allocation5 + $0x2100] sm:$0xff]
    %v1110 = vld [vmem:[#allocation5 + $0x2108] sm:$0xff]
    %v1111 = vld [vmem:[#allocation5 + $0x2110] sm:$0xff]
    %v1112 = vld [vmem:[#allocation5 + $0x2118] sm:$0xff]
    %v1113 = vld [vmem:[#allocation5 + $0x2120] sm:$0xff]
    %v1114 = vld [vmem:[#allocation5 + $0x2128] sm:$0xff]
    %v1115 = vld [vmem:[#allocation5 + $0x2130] sm:$0xff]
    %v1116 = vld [vmem:[#allocation5 + $0x2138] sm:$0xff]
    %v1117 = vld [vmem:[#allocation5 + $0x2140] sm:$0xff]
    %v1118 = vld [vmem:[#allocation5 + $0x2148] sm:$0xff]
    %v1119 = vld [vmem:[#allocation5 + $0x2150] sm:$0xff]
    %v1120 = vld [vmem:[#allocation5 + $0x2158] sm:$0xff]
    %v1121 = vld [vmem:[#allocation5 + $0x2160] sm:$0xff]
    %v1122 = vld [vmem:[#allocation5 + $0x2168] sm:$0xff]
    %v1123 = vld [vmem:[#allocation5 + $0x2170] sm:$0xff]
    %v1124 = vld [vmem:[#allocation5 + $0x2178] sm:$0xff]
    %v1125 = vld [vmem:[#allocation5 + $0x2180] sm:$0xff]
    %v1126 = vld [vmem:[#allocation5 + $0x2188] sm:$0xff]
    %v1127 = vld [vmem:[#allocation5 + $0x2190] sm:$0xff]
    %v1128 = vld [vmem:[#allocation5 + $0x2198] sm:$0xff]
    %v1129 = vld [vmem:[#allocation5 + $0x21a0] sm:$0xff]
    %v1130 = vld [vmem:[#allocation5 + $0x21a8] sm:$0xff]
    %v1131 = vld [vmem:[#allocation5 + $0x21b0] sm:$0xff]
    %v1132 = vld [vmem:[#allocation5 + $0x21b8] sm:$0xff]
    %v1133 = vld [vmem:[#allocation5 + $0x21c0] sm:$0xff]
    %v1134 = vld [vmem:[#allocation5 + $0x21c8] sm:$0xff]
    %v1135 = vld [vmem:[#allocation5 + $0x21d0] sm:$0xff]
    %v1136 = vld [vmem:[#allocation5 + $0x21d8] sm:$0xff]
    %v1137 = vld [vmem:[#allocation5 + $0x21e0] sm:$0xff]
    %v1138 = vld [vmem:[#allocation5 + $0x21e8] sm:$0xff]
    %v1139 = vld [vmem:[#allocation5 + $0x21f0] sm:$0xff]
    %v1140 = vld [vmem:[#allocation5 + $0x21f8] sm:$0xff]
    %v1141 = vld [vmem:[#allocation5 + $0x2200] sm:$0xff]
    %v1142 = vld [vmem:[#allocation5 + $0x2208] sm:$0xff]
    %v1143 = vld [vmem:[#allocation5 + $0x2210] sm:$0xff]
    %v1144 = vld [vmem:[#allocation5 + $0x2218] sm:$0xff]
    %v1145 = vld [vmem:[#allocation5 + $0x2220] sm:$0xff]
    %v1146 = vld [vmem:[#allocation5 + $0x2228] sm:$0xff]
    %v1147 = vld [vmem:[#allocation5 + $0x2230] sm:$0xff]
    %v1148 = vld [vmem:[#allocation5 + $0x2238] sm:$0xff]
    %v1149 = vld [vmem:[#allocation5 + $0x2240] sm:$0xff]
    %v1150 = vld [vmem:[#allocation5 + $0x2248] sm:$0xff]
    %v1151 = vld [vmem:[#allocation5 + $0x2250] sm:$0xff]
    %v1152 = vld [vmem:[#allocation5 + $0x2258] sm:$0xff]
    %v1153 = vld [vmem:[#allocation5 + $0x2260] sm:$0xff]
    %v1154 = vld [vmem:[#allocation5 + $0x2268] sm:$0xff]
    %v1155 = vld [vmem:[#allocation5 + $0x2270] sm:$0xff]
    %v1156 = vld [vmem:[#allocation5 + $0x2278] sm:$0xff]
    %v1157 = vld [vmem:[#allocation5 + $0x2280] sm:$0xff]
    %v1158 = vld [vmem:[#allocation5 + $0x2288] sm:$0xff]
    %v1159 = vld [vmem:[#allocation5 + $0x2290] sm:$0xff]
    %v1160 = vld [vmem:[#allocation5 + $0x2298] sm:$0xff]
    %v1161 = vld [vmem:[#allocation5 + $0x22a0] sm:$0xff]
    %v1162 = vld [vmem:[#allocation5 + $0x22a8] sm:$0xff]
    %v1163 = vld [vmem:[#allocation5 + $0x22b0] sm:$0xff]
    %v1164 = vld [vmem:[#allocation5 + $0x22b8] sm:$0xff]
    %v1165 = vld [vmem:[#allocation5 + $0x22c0] sm:$0xff]
    %v1166 = vld [vmem:[#allocation5 + $0x22c8] sm:$0xff]
    %v1167 = vld [vmem:[#allocation5 + $0x22d0] sm:$0xff]
    %v1168 = vld [vmem:[#allocation5 + $0x22d8] sm:$0xff]
    %v1169 = vld [vmem:[#allocation5 + $0x22e0] sm:$0xff]
    %v1170 = vld [vmem:[#allocation5 + $0x22e8] sm:$0xff]
    %v1171 = vld [vmem:[#allocation5 + $0x22f0] sm:$0xff]
    %v1172 = vld [vmem:[#allocation5 + $0x22f8] sm:$0xff]
    %v1173 = vld [vmem:[#allocation5 + $0x2300] sm:$0xff]
    %v1174 = vld [vmem:[#allocation5 + $0x2308] sm:$0xff]
    %v1175 = vld [vmem:[#allocation5 + $0x2310] sm:$0xff]
    %v1176 = vld [vmem:[#allocation5 + $0x2318] sm:$0xff]
    %v1177 = vld [vmem:[#allocation5 + $0x2320] sm:$0xff]
    %v1178 = vld [vmem:[#allocation5 + $0x2328] sm:$0xff]
    %v1179 = vld [vmem:[#allocation5 + $0x2330] sm:$0xff]
    %v1180 = vld [vmem:[#allocation5 + $0x2338] sm:$0xff]
    %v1181 = vld [vmem:[#allocation5 + $0x2340] sm:$0xff]
    %v1182 = vld [vmem:[#allocation5 + $0x2348] sm:$0xff]
    %v1183 = vld [vmem:[#allocation5 + $0x2350] sm:$0xff]
    %v1184 = vld [vmem:[#allocation5 + $0x2358] sm:$0xff]
    %v1185 = vld [vmem:[#allocation5 + $0x2360] sm:$0xff]
    %v1186 = vld [vmem:[#allocation5 + $0x2368] sm:$0xff]
    %v1187 = vld [vmem:[#allocation5 + $0x2370] sm:$0xff]
    %v1188 = vld [vmem:[#allocation5 + $0x2378] sm:$0xff]
    %v1189 = vld [vmem:[#allocation5 + $0x2380] sm:$0xff]
    %v1190 = vld [vmem:[#allocation5 + $0x2388] sm:$0xff]
    %v1191 = vld [vmem:[#allocation5 + $0x2390] sm:$0xff]
    %v1192 = vld [vmem:[#allocation5 + $0x2398] sm:$0xff]
    %v1193 = vld [vmem:[#allocation5 + $0x23a0] sm:$0xff]
    %v1194 = vld [vmem:[#allocation5 + $0x23a8] sm:$0xff]
    %v1195 = vld [vmem:[#allocation5 + $0x23b0] sm:$0xff]
    %v1196 = vld [vmem:[#allocation5 + $0x23b8] sm:$0xff]
    %v1197 = vld [vmem:[#allocation5 + $0x23c0] sm:$0xff]
    %v1198 = vld [vmem:[#allocation5 + $0x23c8] sm:$0xff]
    %v1199 = vld [vmem:[#allocation5 + $0x23d0] sm:$0xff]
    %v1200 = vld [vmem:[#allocation5 + $0x23d8] sm:$0xff]
    %v1201 = vld [vmem:[#allocation5 + $0x23e0] sm:$0xff]
    %v1202 = vld [vmem:[#allocation5 + $0x23e8] sm:$0xff]
    %v1203 = vld [vmem:[#allocation5 + $0x23f0] sm:$0xff]
    %v1204 = vld [vmem:[#allocation5 + $0x23f8] sm:$0xff]
    %v1205 = vld [vmem:[#allocation5 + $0x2400] sm:$0xff]
    %v1206 = vld [vmem:[#allocation5 + $0x2408] sm:$0xff]
    %v1207 = vld [vmem:[#allocation5 + $0x2410] sm:$0xff]
    %v1208 = vld [vmem:[#allocation5 + $0x2418] sm:$0xff]
    %v1209 = vld [vmem:[#allocation5 + $0x2420] sm:$0xff]
    %v1210 = vld [vmem:[#allocation5 + $0x2428] sm:$0xff]
    %v1211 = vld [vmem:[#allocation5 + $0x2430] sm:$0xff]
    %v1212 = vld [vmem:[#allocation5 + $0x2438] sm:$0xff]
    %v1213 = vld [vmem:[#allocation5 + $0x2440] sm:$0xff]
    %v1214 = vld [vmem:[#allocation5 + $0x2448] sm:$0xff]
    %v1215 = vld [vmem:[#allocation5 + $0x2450] sm:$0xff]
    %v1216 = vld [vmem:[#allocation5 + $0x2458] sm:$0xff]
    %v1217 = vld [vmem:[#allocation5 + $0x2460] sm:$0xff]
    %v1218 = vld [vmem:[#allocation5 + $0x2468] sm:$0xff]
    %v1219 = vld [vmem:[#allocation5 + $0x2470] sm:$0xff]
    %v1220 = vld [vmem:[#allocation5 + $0x2478] sm:$0xff]
    %v1221 = vld [vmem:[#allocation5 + $0x2480] sm:$0xff]
    %v1222 = vld [vmem:[#allocation5 + $0x2488] sm:$0xff]
    %v1223 = vld [vmem:[#allocation5 + $0x2490] sm:$0xff]
    %v1224 = vld [vmem:[#allocation5 + $0x2498] sm:$0xff]
    %v1225 = vld [vmem:[#allocation5 + $0x24a0] sm:$0xff]
    %v1226 = vld [vmem:[#allocation5 + $0x24a8] sm:$0xff]
    %v1227 = vld [vmem:[#allocation5 + $0x24b0] sm:$0xff]
    %v1228 = vld [vmem:[#allocation5 + $0x24b8] sm:$0xff]
    %v1229 = vld [vmem:[#allocation5 + $0x24c0] sm:$0xff]
    %v1230 = vld [vmem:[#allocation5 + $0x24c8] sm:$0xff]
    %v1231 = vld [vmem:[#allocation5 + $0x24d0] sm:$0xff]
    %v1232 = vld [vmem:[#allocation5 + $0x24d8] sm:$0xff]
    %v1233 = vld [vmem:[#allocation5 + $0x24e0] sm:$0xff]
    %v1234 = vld [vmem:[#allocation5 + $0x24e8] sm:$0xff]
    %v1235 = vld [vmem:[#allocation5 + $0x24f0] sm:$0xff]
    %v1236 = vld [vmem:[#allocation5 + $0x24f8] sm:$0xff]
    %v1237 = vld [vmem:[#allocation5 + $0x2500] sm:$0xff]
    %v1238 = vld [vmem:[#allocation5 + $0x2508] sm:$0xff]
    %v1239 = vld [vmem:[#allocation5 + $0x2510] sm:$0xff]
    %v1240 = vld [vmem:[#allocation5 + $0x2518] sm:$0xff]
    %v1241 = vld [vmem:[#allocation5 + $0x2520] sm:$0xff]
    %v1242 = vld [vmem:[#allocation5 + $0x2528] sm:$0xff]
    %v1243 = vld [vmem:[#allocation5 + $0x2530] sm:$0xff]
    %v1244 = vld [vmem:[#allocation5 + $0x2538] sm:$0xff]
    %v1245 = vld [vmem:[#allocation5 + $0x2540] sm:$0xff]
    %v1246 = vld [vmem:[#allocation5 + $0x2548] sm:$0xff]
    %v1247 = vld [vmem:[#allocation5 + $0x2550] sm:$0xff]
    %v1248 = vld [vmem:[#allocation5 + $0x2558] sm:$0xff]
    %v1249 = vld [vmem:[#allocation5 + $0x2560] sm:$0xff]
    %v1250 = vld [vmem:[#allocation5 + $0x2568] sm:$0xff]
    %v1251 = vld [vmem:[#allocation5 + $0x2570] sm:$0xff]
    %v1252 = vld [vmem:[#allocation5 + $0x2578] sm:$0xff]
    %v1253 = vld [vmem:[#allocation5 + $0x2580] sm:$0xff]
    %v1254 = vld [vmem:[#allocation5 + $0x2588] sm:$0xff]
    %v1255 = vld [vmem:[#allocation5 + $0x2590] sm:$0xff]
    %v1256 = vld [vmem:[#allocation5 + $0x2598] sm:$0xff]
    %v1257 = vld [vmem:[#allocation5 + $0x25a0] sm:$0xff]
    %v1258 = vld [vmem:[#allocation5 + $0x25a8] sm:$0xff]
    %v1259 = vld [vmem:[#allocation5 + $0x25b0] sm:$0xff]
    %v1260 = vld [vmem:[#allocation5 + $0x25b8] sm:$0xff]
    %v1261 = vld [vmem:[#allocation5 + $0x25c0] sm:$0xff]
    %v1262 = vld [vmem:[#allocation5 + $0x25c8] sm:$0xff]
    %v1263 = vld [vmem:[#allocation5 + $0x25d0] sm:$0xff]
    %v1264 = vld [vmem:[#allocation5 + $0x25d8] sm:$0xff]
    %v1265 = vld [vmem:[#allocation5 + $0x25e0] sm:$0xff]
    %v1266 = vld [vmem:[#allocation5 + $0x25e8] sm:$0xff]
    %v1267 = vld [vmem:[#allocation5 + $0x25f0] sm:$0xff]
    %v1268 = vld [vmem:[#allocation5 + $0x25f8] sm:$0xff]
    %v1269 = vld [vmem:[#allocation5 + $0x2600] sm:$0xff]
    %v1270 = vld [vmem:[#allocation5 + $0x2608] sm:$0xff]
    %v1271 = vld [vmem:[#allocation5 + $0x2610] sm:$0xff]
    %v1272 = vld [vmem:[#allocation5 + $0x2618] sm:$0xff]
    %v1273 = vld [vmem:[#allocation5 + $0x2620] sm:$0xff]
    %v1274 = vld [vmem:[#allocation5 + $0x2628] sm:$0xff]
    %v1275 = vld [vmem:[#allocation5 + $0x2630] sm:$0xff]
    %v1276 = vld [vmem:[#allocation5 + $0x2638] sm:$0xff]
    %v1277 = vld [vmem:[#allocation5 + $0x2640] sm:$0xff]
    %v1278 = vld [vmem:[#allocation5 + $0x2648] sm:$0xff]
    %v1279 = vld [vmem:[#allocation5 + $0x2650] sm:$0xff]
    %v1280 = vld [vmem:[#allocation5 + $0x2658] sm:$0xff]
    %v1281 = vld [vmem:[#allocation5 + $0x2660] sm:$0xff]
    %v1282 = vld [vmem:[#allocation5 + $0x2668] sm:$0xff]
    %v1283 = vld [vmem:[#allocation5 + $0x2670] sm:$0xff]
    %v1284 = vld [vmem:[#allocation5 + $0x2678] sm:$0xff]
    %v1285 = vld [vmem:[#allocation7] sm:$0xff]
    %v1286 = vld [vmem:[#allocation7 + $0x8] sm:$0xff]
    %v1287 = vld [vmem:[#allocation7 + $0x10] sm:$0xff]
    %v1288 = vld [vmem:[#allocation7 + $0x18] sm:$0xff]
    %v1289 = vld [vmem:[#allocation7 + $0x20] sm:$0xff]
    %v1290 = vld [vmem:[#allocation7 + $0x28] sm:$0xff]
    %v1291 = vld [vmem:[#allocation7 + $0x30] sm:$0xff]
    %v1292 = vld [vmem:[#allocation7 + $0x38] sm:$0xff]
    %v1293 = vld [vmem:[#allocation7 + $0x40] sm:$0xff]
    %v1294 = vld [vmem:[#allocation7 + $0x48] sm:$0x1f]
    %v1305 = vlaneseq
    %v1306 = vshrl.u32 %v1305, 7
    %v1307 = vsub.s32 0, %v1306
    %v1308 = vrot.slane %v1285, %v1307
    %v1309 = vlaneseq
    %v1310 = vshrl.u32 %v1309, 7
    %v1311 = vsub.s32 1, %v1310
    %v1312 = vrot.slane %v1285, %v1311
    %v1313 = vlaneseq
    %v1314 = vshrl.u32 %v1313, 7
    %v1315 = vsub.s32 2, %v1314
    %v1316 = vrot.slane %v1285, %v1315
    %v1317 = vlaneseq
    %v1318 = vshrl.u32 %v1317, 7
    %v1319 = vsub.s32 3, %v1318
    %v1320 = vrot.slane %v1285, %v1319
    %v1321 = vlaneseq
    %v1322 = vshrl.u32 %v1321, 7
    %v1323 = vsub.s32 4, %v1322
    %v1324 = vrot.slane %v1285, %v1323
    %v1325 = vlaneseq
    %v1326 = vshrl.u32 %v1325, 7
    %v1327 = vsub.s32 5, %v1326
    %v1328 = vrot.slane %v1285, %v1327
    %v1329 = vlaneseq
    %v1330 = vshrl.u32 %v1329, 7
    %v1331 = vsub.s32 6, %v1330
    %v1332 = vrot.slane %v1285, %v1331
    %v1333 = vlaneseq
    %v1334 = vshrl.u32 %v1333, 7
    %v1335 = vsub.s32 7, %v1334
    %v1336 = vrot.slane %v1285, %v1335
    %v1337 = vlaneseq
    %v1338 = vshrl.u32 %v1337, 7
    %v1339 = vsub.s32 0, %v1338
    %v1340 = vrot.slane %v1286, %v1339
    %v1341 = vlaneseq
    %v1342 = vshrl.u32 %v1341, 7
    %v1343 = vsub.s32 1, %v1342
    %v1344 = vrot.slane %v1286, %v1343
    %v1345 = vlaneseq
    %v1346 = vshrl.u32 %v1345, 7
    %v1347 = vsub.s32 2, %v1346
    %v1348 = vrot.slane %v1286, %v1347
    %v1349 = vlaneseq
    %v1350 = vshrl.u32 %v1349, 7
    %v1351 = vsub.s32 3, %v1350
    %v1352 = vrot.slane %v1286, %v1351
    %v1353 = vlaneseq
    %v1354 = vshrl.u32 %v1353, 7
    %v1355 = vsub.s32 4, %v1354
    %v1356 = vrot.slane %v1286, %v1355
    %v1357 = vlaneseq
    %v1358 = vshrl.u32 %v1357, 7
    %v1359 = vsub.s32 5, %v1358
    %v1360 = vrot.slane %v1286, %v1359
    %v1361 = vlaneseq
    %v1362 = vshrl.u32 %v1361, 7
    %v1363 = vsub.s32 6, %v1362
    %v1364 = vrot.slane %v1286, %v1363
    %v1365 = vlaneseq
    %v1366 = vshrl.u32 %v1365, 7
    %v1367 = vsub.s32 7, %v1366
    %v1368 = vrot.slane %v1286, %v1367
    %v1369 = vlaneseq
    %v1370 = vshrl.u32 %v1369, 7
    %v1371 = vsub.s32 0, %v1370
    %v1372 = vrot.slane %v1287, %v1371
    %v1373 = vlaneseq
    %v1374 = vshrl.u32 %v1373, 7
    %v1375 = vsub.s32 1, %v1374
    %v1376 = vrot.slane %v1287, %v1375
    %v1377 = vlaneseq
    %v1378 = vshrl.u32 %v1377, 7
    %v1379 = vsub.s32 2, %v1378
    %v1380 = vrot.slane %v1287, %v1379
    %v1381 = vlaneseq
    %v1382 = vshrl.u32 %v1381, 7
    %v1383 = vsub.s32 3, %v1382
    %v1384 = vrot.slane %v1287, %v1383
    %v1385 = vlaneseq
    %v1386 = vshrl.u32 %v1385, 7
    %v1387 = vsub.s32 4, %v1386
    %v1388 = vrot.slane %v1287, %v1387
    %v1389 = vlaneseq
    %v1390 = vshrl.u32 %v1389, 7
    %v1391 = vsub.s32 5, %v1390
    %v1392 = vrot.slane %v1287, %v1391
    %v1393 = vlaneseq
    %v1394 = vshrl.u32 %v1393, 7
    %v1395 = vsub.s32 6, %v1394
    %v1396 = vrot.slane %v1287, %v1395
    %v1397 = vlaneseq
    %v1398 = vshrl.u32 %v1397, 7
    %v1399 = vsub.s32 7, %v1398
    %v1400 = vrot.slane %v1287, %v1399
    %v1401 = vlaneseq
    %v1402 = vshrl.u32 %v1401, 7
    %v1403 = vsub.s32 0, %v1402
    %v1404 = vrot.slane %v1288, %v1403
    %v1405 = vlaneseq
    %v1406 = vshrl.u32 %v1405, 7
    %v1407 = vsub.s32 1, %v1406
    %v1408 = vrot.slane %v1288, %v1407
    %v1409 = vlaneseq
    %v1410 = vshrl.u32 %v1409, 7
    %v1411 = vsub.s32 2, %v1410
    %v1412 = vrot.slane %v1288, %v1411
    %v1413 = vlaneseq
    %v1414 = vshrl.u32 %v1413, 7
    %v1415 = vsub.s32 3, %v1414
    %v1416 = vrot.slane %v1288, %v1415
    %v1417 = vlaneseq
    %v1418 = vshrl.u32 %v1417, 7
    %v1419 = vsub.s32 4, %v1418
    %v1420 = vrot.slane %v1288, %v1419
    %v1421 = vlaneseq
    %v1422 = vshrl.u32 %v1421, 7
    %v1423 = vsub.s32 5, %v1422
    %v1424 = vrot.slane %v1288, %v1423
    %v1425 = vlaneseq
    %v1426 = vshrl.u32 %v1425, 7
    %v1427 = vsub.s32 6, %v1426
    %v1428 = vrot.slane %v1288, %v1427
    %v1429 = vlaneseq
    %v1430 = vshrl.u32 %v1429, 7
    %v1431 = vsub.s32 7, %v1430
    %v1432 = vrot.slane %v1288, %v1431
    %v1433 = vlaneseq
    %v1434 = vshrl.u32 %v1433, 7
    %v1435 = vsub.s32 0, %v1434
    %v1436 = vrot.slane %v1289, %v1435
    %v1437 = vlaneseq
    %v1438 = vshrl.u32 %v1437, 7
    %v1439 = vsub.s32 1, %v1438
    %v1440 = vrot.slane %v1289, %v1439
    %v1441 = vlaneseq
    %v1442 = vshrl.u32 %v1441, 7
    %v1443 = vsub.s32 2, %v1442
    %v1444 = vrot.slane %v1289, %v1443
    %v1445 = vlaneseq
    %v1446 = vshrl.u32 %v1445, 7
    %v1447 = vsub.s32 3, %v1446
    %v1448 = vrot.slane %v1289, %v1447
    %v1449 = vlaneseq
    %v1450 = vshrl.u32 %v1449, 7
    %v1451 = vsub.s32 4, %v1450
    %v1452 = vrot.slane %v1289, %v1451
    %v1453 = vlaneseq
    %v1454 = vshrl.u32 %v1453, 7
    %v1455 = vsub.s32 5, %v1454
    %v1456 = vrot.slane %v1289, %v1455
    %v1457 = vlaneseq
    %v1458 = vshrl.u32 %v1457, 7
    %v1459 = vsub.s32 6, %v1458
    %v1460 = vrot.slane %v1289, %v1459
    %v1461 = vlaneseq
    %v1462 = vshrl.u32 %v1461, 7
    %v1463 = vsub.s32 7, %v1462
    %v1464 = vrot.slane %v1289, %v1463
    %v1465 = vlaneseq
    %v1466 = vshrl.u32 %v1465, 7
    %v1467 = vsub.s32 0, %v1466
    %v1468 = vrot.slane %v1290, %v1467
    %v1469 = vlaneseq
    %v1470 = vshrl.u32 %v1469, 7
    %v1471 = vsub.s32 1, %v1470
    %v1472 = vrot.slane %v1290, %v1471
    %v1473 = vlaneseq
    %v1474 = vshrl.u32 %v1473, 7
    %v1475 = vsub.s32 2, %v1474
    %v1476 = vrot.slane %v1290, %v1475
    %v1477 = vlaneseq
    %v1478 = vshrl.u32 %v1477, 7
    %v1479 = vsub.s32 3, %v1478
    %v1480 = vrot.slane %v1290, %v1479
    %v1481 = vlaneseq
    %v1482 = vshrl.u32 %v1481, 7
    %v1483 = vsub.s32 4, %v1482
    %v1484 = vrot.slane %v1290, %v1483
    %v1485 = vlaneseq
    %v1486 = vshrl.u32 %v1485, 7
    %v1487 = vsub.s32 5, %v1486
    %v1488 = vrot.slane %v1290, %v1487
    %v1489 = vlaneseq
    %v1490 = vshrl.u32 %v1489, 7
    %v1491 = vsub.s32 6, %v1490
    %v1492 = vrot.slane %v1290, %v1491
    %v1493 = vlaneseq
    %v1494 = vshrl.u32 %v1493, 7
    %v1495 = vsub.s32 7, %v1494
    %v1496 = vrot.slane %v1290, %v1495
    %v1497 = vlaneseq
    %v1498 = vshrl.u32 %v1497, 7
    %v1499 = vsub.s32 0, %v1498
    %v1500 = vrot.slane %v1291, %v1499
    %v1501 = vlaneseq
    %v1502 = vshrl.u32 %v1501, 7
    %v1503 = vsub.s32 1, %v1502
    %v1504 = vrot.slane %v1291, %v1503
    %v1505 = vlaneseq
    %v1506 = vshrl.u32 %v1505, 7
    %v1507 = vsub.s32 2, %v1506
    %v1508 = vrot.slane %v1291, %v1507
    %v1509 = vlaneseq
    %v1510 = vshrl.u32 %v1509, 7
    %v1511 = vsub.s32 3, %v1510
    %v1512 = vrot.slane %v1291, %v1511
    %v1513 = vlaneseq
    %v1514 = vshrl.u32 %v1513, 7
    %v1515 = vsub.s32 4, %v1514
    %v1516 = vrot.slane %v1291, %v1515
    %v1517 = vlaneseq
    %v1518 = vshrl.u32 %v1517, 7
    %v1519 = vsub.s32 5, %v1518
    %v1520 = vrot.slane %v1291, %v1519
    %v1521 = vlaneseq
    %v1522 = vshrl.u32 %v1521, 7
    %v1523 = vsub.s32 6, %v1522
    %v1524 = vrot.slane %v1291, %v1523
    %v1525 = vlaneseq
    %v1526 = vshrl.u32 %v1525, 7
    %v1527 = vsub.s32 7, %v1526
    %v1528 = vrot.slane %v1291, %v1527
    %v1529 = vlaneseq
    %v1530 = vshrl.u32 %v1529, 7
    %v1531 = vsub.s32 0, %v1530
    %v1532 = vrot.slane %v1292, %v1531
    %v1533 = vlaneseq
    %v1534 = vshrl.u32 %v1533, 7
    %v1535 = vsub.s32 1, %v1534
    %v1536 = vrot.slane %v1292, %v1535
    %v1537 = vlaneseq
    %v1538 = vshrl.u32 %v1537, 7
    %v1539 = vsub.s32 2, %v1538
    %v1540 = vrot.slane %v1292, %v1539
    %v1541 = vlaneseq
    %v1542 = vshrl.u32 %v1541, 7
    %v1543 = vsub.s32 3, %v1542
    %v1544 = vrot.slane %v1292, %v1543
    %v1545 = vlaneseq
    %v1546 = vshrl.u32 %v1545, 7
    %v1547 = vsub.s32 4, %v1546
    %v1548 = vrot.slane %v1292, %v1547
    %v1549 = vlaneseq
    %v1550 = vshrl.u32 %v1549, 7
    %v1551 = vsub.s32 5, %v1550
    %v1552 = vrot.slane %v1292, %v1551
    %v1553 = vlaneseq
    %v1554 = vshrl.u32 %v1553, 7
    %v1555 = vsub.s32 6, %v1554
    %v1556 = vrot.slane %v1292, %v1555
    %v1557 = vlaneseq
    %v1558 = vshrl.u32 %v1557, 7
    %v1559 = vsub.s32 7, %v1558
    %v1560 = vrot.slane %v1292, %v1559
    %v1561 = vlaneseq
    %v1562 = vshrl.u32 %v1561, 7
    %v1563 = vsub.s32 0, %v1562
    %v1564 = vrot.slane %v1293, %v1563
    %v1565 = vlaneseq
    %v1566 = vshrl.u32 %v1565, 7
    %v1567 = vsub.s32 1, %v1566
    %v1568 = vrot.slane %v1293, %v1567
    %v1569 = vlaneseq
    %v1570 = vshrl.u32 %v1569, 7
    %v1571 = vsub.s32 2, %v1570
    %v1572 = vrot.slane %v1293, %v1571
    %v1573 = vlaneseq
    %v1574 = vshrl.u32 %v1573, 7
    %v1575 = vsub.s32 3, %v1574
    %v1576 = vrot.slane %v1293, %v1575
    %v1577 = vlaneseq
    %v1578 = vshrl.u32 %v1577, 7
    %v1579 = vsub.s32 4, %v1578
    %v1580 = vrot.slane %v1293, %v1579
    %v1581 = vlaneseq
    %v1582 = vshrl.u32 %v1581, 7
    %v1583 = vsub.s32 5, %v1582
    %v1584 = vrot.slane %v1293, %v1583
    %v1585 = vlaneseq
    %v1586 = vshrl.u32 %v1585, 7
    %v1587 = vsub.s32 6, %v1586
    %v1588 = vrot.slane %v1293, %v1587
    %v1589 = vlaneseq
    %v1590 = vshrl.u32 %v1589, 7
    %v1591 = vsub.s32 7, %v1590
    %v1592 = vrot.slane %v1293, %v1591
    %v1593 = vlaneseq
    %v1594 = vshrl.u32 %v1593, 7
    %v1595 = vsub.s32 0, %v1594
    %v1596 = vrot.slane %v1294, %v1595
    %v1597 = vlaneseq
    %v1598 = vshrl.u32 %v1597, 7
    %v1599 = vsub.s32 1, %v1598
    %v1600 = vrot.slane %v1294, %v1599
    %v1601 = vlaneseq
    %v1602 = vshrl.u32 %v1601, 7
    %v1603 = vsub.s32 2, %v1602
    %v1604 = vrot.slane %v1294, %v1603
    %v1605 = vlaneseq
    %v1606 = vshrl.u32 %v1605, 7
    %v1607 = vsub.s32 3, %v1606
    %v1608 = vrot.slane %v1294, %v1607
    %v1609 = vlaneseq
    %v1610 = vshrl.u32 %v1609, 7
    %v1611 = vsub.s32 4, %v1610
    %v1612 = vrot.slane %v1294, %v1611
    %1690 = vmatprep.subr.mxu0 %v1209
    %1691 = vmatpush1.msra.mxu0 %v1208
    %1692 = vmatprep.subr.mxu0 %v1132
    %1693 = vmatpush1.msra.mxu0 %v1131
    %1694 = vmatprep.subr.mxu0 %v1055
    %1695 = vmatpush1.msra.mxu0 %v1054
    %1696 = vmatprep.subr.mxu0 %v978
    %1697 = vmatpush1.msra.mxu0 %v977
    %1698 = vmatprep.subr.mxu0 %v901
    %1699 = vmatpush1.msra.mxu0 %v900
    %1700 = vmatprep.subr.mxu0 %v824
    %1701 = vmatpush1.msra.mxu0 %v823
    %1702 = vmatprep.subr.mxu0 %v747
    %1703 = vmatpush1.msra.mxu0 %v746
    %1704 = vmatprep.subr.mxu0 %v670
    %1705 = vmatpush1.msra.mxu0 %v669
    %1706 = vmatprep.subr.mxu0 %v593
    %1707 = vmatpush1.msra.mxu0 %v592
    %1708 = vmatprep.subr.mxu0 %v516
    %1709 = vmatpush1.msra.mxu0 %v515
    %1710 = vmatprep.subr.mxu0 %v439
    %1711 = vmatpush1.msra.mxu0 %v438
    %1712 = vmatprep.subr.mxu0 %v362
    %1713 = vmatpush1.msra.mxu0 %v361
    %1714 = vmatprep.subr.mxu0 %v285
    %1715 = vmatpush1.msra.mxu0 %v284
    %1716 = vmatprep.subr.mxu0 %v208
    %1717 = vmatpush1.msra.mxu0 %v207
    %1718 = vmatprep.subr.mxu0 %v131
    %1719 = vmatpush1.msra.mxu0 %v130
    %1720 = vmatprep.subr.mxu0 %v54
    %1721 = vmatpush1.msra.mxu0 %v53
    %1722 = vmatprep.subr.mxu0 0.0
    %1723 = vmatpush2.msra.mxu0 0.0
    %1724 = vmatprep.subr.mxu0 0.0
    %1725 = vmatpush2.msra.mxu0 0.0
    %1726 = vmatprep.subr.mxu0 0.0
    %1727 = vmatpush2.msra.mxu0 0.0
    %1728 = vmatprep.subr.mxu0 0.0
    %1729 = vmatpush2.msra.mxu0 0.0
    %1730 = vmatprep.subr.mxu0 0.0
    %1731 = vmatpush2.msra.mxu0 0.0
    %1732 = vmatprep.subr.mxu0 0.0
    %1733 = vmatpush2.msra.mxu0 0.0
    %1734 = vmatprep.subr.mxu0 0.0
    %1735 = vmatpush2.msra.mxu0 0.0
    %1736 = vmatprep.subr.mxu0 0.0
    %1737 = vmatpush2.msra.mxu0 0.0
    %1738 = vmatprep.subr.mxu0 0.0
    %1739 = vmatpush2.msra.mxu0 0.0
    %1740 = vmatprep.subr.mxu0 0.0
    %1741 = vmatpush2.msra.mxu0 0.0
    %1742 = vmatprep.subr.mxu0 0.0
    %1743 = vmatpush2.msra.mxu0 0.0
    %1744 = vmatprep.subr.mxu0 0.0
    %1745 = vmatpush2.msra.mxu0 0.0
    %1746 = vmatprep.subr.mxu0 0.0
    %1747 = vmatpush2.msra.mxu0 0.0
    %1748 = vmatprep.subr.mxu0 0.0
    %1749 = vmatpush2.msra.mxu0 0.0
    %1750 = vmatprep.subr.mxu0 0.0
    %1751 = vmatpush2.msra.mxu0 0.0
    %1752 = vmatprep.subr.mxu0 0.0
    %1753 = vmatpush2.msra.mxu0 0.0
    %1754 = vmatprep.mubr.f32.mxu0 0.0
    %1755 = vmatmul.mubr.f32.gmra.mxu0 %v52
    %v1756 = vpop.f32.mrf.mxu0
    %v1757 = vadd.f32 %v1308, %v1756
    %v1758 = vpop.f32.mrf.mxu0
    %v1759 = vadd.f32 %v1312, %v1758
    %1760 = vdwg.mxu0
    %1761 = vmatprep.subr.mxu0 %v1211
    %1762 = vmatpush1.msra.mxu0 %v1210
    %1763 = vmatprep.subr.mxu0 %v1134
    %1764 = vmatpush1.msra.mxu0 %v1133
    %1765 = vmatprep.subr.mxu0 %v1057
    %1766 = vmatpush1.msra.mxu0 %v1056
    %1767 = vmatprep.subr.mxu0 %v980
    %1768 = vmatpush1.msra.mxu0 %v979
    %1769 = vmatprep.subr.mxu0 %v903
    %1770 = vmatpush1.msra.mxu0 %v902
    %1771 = vmatprep.subr.mxu0 %v826
    %1772 = vmatpush1.msra.mxu0 %v825
    %1773 = vmatprep.subr.mxu0 %v749
    %1774 = vmatpush1.msra.mxu0 %v748
    %1775 = vmatprep.subr.mxu0 %v672
    %1776 = vmatpush1.msra.mxu0 %v671
    %1777 = vmatprep.subr.mxu0 %v595
    %1778 = vmatpush1.msra.mxu0 %v594
    %1779 = vmatprep.subr.mxu0 %v518
    %1780 = vmatpush1.msra.mxu0 %v517
    %1781 = vmatprep.subr.mxu0 %v441
    %1782 = vmatpush1.msra.mxu0 %v440
    %1783 = vmatprep.subr.mxu0 %v364
    %1784 = vmatpush1.msra.mxu0 %v363
    %1785 = vmatprep.subr.mxu0 %v287
    %1786 = vmatpush1.msra.mxu0 %v286
    %1787 = vmatprep.subr.mxu0 %v210
    %1788 = vmatpush1.msra.mxu0 %v209
    %1789 = vmatprep.subr.mxu0 %v133
    %1790 = vmatpush1.msra.mxu0 %v132
    %1791 = vmatprep.subr.mxu0 %v56
    %1792 = vmatpush1.msra.mxu0 %v55
    %1793 = vmatprep.subr.mxu0 0.0
    %1794 = vmatpush2.msra.mxu0 0.0
    %1795 = vmatprep.subr.mxu0 0.0
    %1796 = vmatpush2.msra.mxu0 0.0
    %1797 = vmatprep.subr.mxu0 0.0
    %1798 = vmatpush2.msra.mxu0 0.0
    %1799 = vmatprep.subr.mxu0 0.0
    %1800 = vmatpush2.msra.mxu0 0.0
    %1801 = vmatprep.subr.mxu0 0.0
    %1802 = vmatpush2.msra.mxu0 0.0
    %1803 = vmatprep.subr.mxu0 0.0
    %1804 = vmatpush2.msra.mxu0 0.0
    %1805 = vmatprep.subr.mxu0 0.0
    %1806 = vmatpush2.msra.mxu0 0.0
    %1807 = vmatprep.subr.mxu0 0.0
    %1808 = vmatpush2.msra.mxu0 0.0
    %1809 = vmatprep.subr.mxu0 0.0
    %1810 = vmatpush2.msra.mxu0 0.0
    %1811 = vmatprep.subr.mxu0 0.0
    %1812 = vmatpush2.msra.mxu0 0.0
    %1813 = vmatprep.subr.mxu0 0.0
    %1814 = vmatpush2.msra.mxu0 0.0
    %1815 = vmatprep.subr.mxu0 0.0
    %1816 = vmatpush2.msra.mxu0 0.0
    %1817 = vmatprep.subr.mxu0 0.0
    %1818 = vmatpush2.msra.mxu0 0.0
    %1819 = vmatprep.subr.mxu0 0.0
    %1820 = vmatpush2.msra.mxu0 0.0
    %1821 = vmatprep.subr.mxu0 0.0
    %1822 = vmatpush2.msra.mxu0 0.0
    %1823 = vmatprep.subr.mxu0 0.0
    %1824 = vmatpush2.msra.mxu0 0.0
    %1825 = vmatprep.mubr.f32.mxu0 0.0
    %1826 = vmatmul.mubr.f32.gmra.mxu0 %v52
    %v1827 = vpop.f32.mrf.mxu0
    %v1828 = vadd.f32 %v1316, %v1827
    %v1829 = vpop.f32.mrf.mxu0
    %v1830 = vadd.f32 %v1320, %v1829
    %1831 = vdwg.mxu0
    %1832 = vmatprep.subr.mxu0 %v1213
    %1833 = vmatpush1.msra.mxu0 %v1212
    %1834 = vmatprep.subr.mxu0 %v1136
    %1835 = vmatpush1.msra.mxu0 %v1135
    %1836 = vmatprep.subr.mxu0 %v1059
    %1837 = vmatpush1.msra.mxu0 %v1058
    %1838 = vmatprep.subr.mxu0 %v982
    %1839 = vmatpush1.msra.mxu0 %v981
    %1840 = vmatprep.subr.mxu0 %v905
    %1841 = vmatpush1.msra.mxu0 %v904
    %1842 = vmatprep.subr.mxu0 %v828
    %1843 = vmatpush1.msra.mxu0 %v827
    %1844 = vmatprep.subr.mxu0 %v751
    %1845 = vmatpush1.msra.mxu0 %v750
    %1846 = vmatprep.subr.mxu0 %v674
    %1847 = vmatpush1.msra.mxu0 %v673
    %1848 = vmatprep.subr.mxu0 %v597
    %1849 = vmatpush1.msra.mxu0 %v596
    %1850 = vmatprep.subr.mxu0 %v520
    %1851 = vmatpush1.msra.mxu0 %v519
    %1852 = vmatprep.subr.mxu0 %v443
    %1853 = vmatpush1.msra.mxu0 %v442
    %1854 = vmatprep.subr.mxu0 %v366
    %1855 = vmatpush1.msra.mxu0 %v365
    %1856 = vmatprep.subr.mxu0 %v289
    %1857 = vmatpush1.msra.mxu0 %v288
    %1858 = vmatprep.subr.mxu0 %v212
    %1859 = vmatpush1.msra.mxu0 %v211
    %1860 = vmatprep.subr.mxu0 %v135
    %1861 = vmatpush1.msra.mxu0 %v134
    %1862 = vmatprep.subr.mxu0 %v58
    %1863 = vmatpush1.msra.mxu0 %v57
    %1864 = vmatprep.subr.mxu0 0.0
    %1865 = vmatpush2.msra.mxu0 0.0
    %1866 = vmatprep.subr.mxu0 0.0
    %1867 = vmatpush2.msra.mxu0 0.0
    %1868 = vmatprep.subr.mxu0 0.0
    %1869 = vmatpush2.msra.mxu0 0.0
    %1870 = vmatprep.subr.mxu0 0.0
    %1871 = vmatpush2.msra.mxu0 0.0
    %1872 = vmatprep.subr.mxu0 0.0
    %1873 = vmatpush2.msra.mxu0 0.0
    %1874 = vmatprep.subr.mxu0 0.0
    %1875 = vmatpush2.msra.mxu0 0.0
    %1876 = vmatprep.subr.mxu0 0.0
    %1877 = vmatpush2.msra.mxu0 0.0
    %1878 = vmatprep.subr.mxu0 0.0
    %1879 = vmatpush2.msra.mxu0 0.0
    %1880 = vmatprep.subr.mxu0 0.0
    %1881 = vmatpush2.msra.mxu0 0.0
    %1882 = vmatprep.subr.mxu0 0.0
    %1883 = vmatpush2.msra.mxu0 0.0
    %1884 = vmatprep.subr.mxu0 0.0
    %1885 = vmatpush2.msra.mxu0 0.0
    %1886 = vmatprep.subr.mxu0 0.0
    %1887 = vmatpush2.msra.mxu0 0.0
    %1888 = vmatprep.subr.mxu0 0.0
    %1889 = vmatpush2.msra.mxu0 0.0
    %1890 = vmatprep.subr.mxu0 0.0
    %1891 = vmatpush2.msra.mxu0 0.0
    %1892 = vmatprep.subr.mxu0 0.0
    %1893 = vmatpush2.msra.mxu0 0.0
    %1894 = vmatprep.subr.mxu0 0.0
    %1895 = vmatpush2.msra.mxu0 0.0
    %1896 = vmatprep.mubr.f32.mxu0 0.0
    %1897 = vmatmul.mubr.f32.gmra.mxu0 %v52
    %v1898 = vpop.f32.mrf.mxu0
    %v1899 = vadd.f32 %v1324, %v1898
    %v1900 = vpop.f32.mrf.mxu0
    %v1901 = vadd.f32 %v1328, %v1900
    %1902 = vdwg.mxu0
    %1903 = vmatprep.subr.mxu0 %v1215
    %1904 = vmatpush1.msra.mxu0 %v1214
    %1905 = vmatprep.subr.mxu0 %v1138
    %1906 = vmatpush1.msra.mxu0 %v1137
    %1907 = vmatprep.subr.mxu0 %v1061
    %1908 = vmatpush1.msra.mxu0 %v1060
    %1909 = vmatprep.subr.mxu0 %v984
    %1910 = vmatpush1.msra.mxu0 %v983
    %1911 = vmatprep.subr.mxu0 %v907
    %1912 = vmatpush1.msra.mxu0 %v906
    %1913 = vmatprep.subr.mxu0 %v830
    %1914 = vmatpush1.msra.mxu0 %v829
    %1915 = vmatprep.subr.mxu0 %v753
    %1916 = vmatpush1.msra.mxu0 %v752
    %1917 = vmatprep.subr.mxu0 %v676
    %1918 = vmatpush1.msra.mxu0 %v675
    %1919 = vmatprep.subr.mxu0 %v599
    %1920 = vmatpush1.msra.mxu0 %v598
    %1921 = vmatprep.subr.mxu0 %v522
    %1922 = vmatpush1.msra.mxu0 %v521
    %1923 = vmatprep.subr.mxu0 %v445
    %1924 = vmatpush1.msra.mxu0 %v444
    %1925 = vmatprep.subr.mxu0 %v368
    %1926 = vmatpush1.msra.mxu0 %v367
    %1927 = vmatprep.subr.mxu0 %v291
    %1928 = vmatpush1.msra.mxu0 %v290
    %1929 = vmatprep.subr.mxu0 %v214
    %1930 = vmatpush1.msra.mxu0 %v213
    %1931 = vmatprep.subr.mxu0 %v137
    %1932 = vmatpush1.msra.mxu0 %v136
    %1933 = vmatprep.subr.mxu0 %v60
    %1934 = vmatpush1.msra.mxu0 %v59
    %1935 = vmatprep.subr.mxu0 0.0
    %1936 = vmatpush2.msra.mxu0 0.0
    %1937 = vmatprep.subr.mxu0 0.0
    %1938 = vmatpush2.msra.mxu0 0.0
    %1939 = vmatprep.subr.mxu0 0.0
    %1940 = vmatpush2.msra.mxu0 0.0
    %1941 = vmatprep.subr.mxu0 0.0
    %1942 = vmatpush2.msra.mxu0 0.0
    %1943 = vmatprep.subr.mxu0 0.0
    %1944 = vmatpush2.msra.mxu0 0.0
    %1945 = vmatprep.subr.mxu0 0.0
    %1946 = vmatpush2.msra.mxu0 0.0
    %1947 = vmatprep.subr.mxu0 0.0
    %1948 = vmatpush2.msra.mxu0 0.0
    %1949 = vmatprep.subr.mxu0 0.0
    %1950 = vmatpush2.msra.mxu0 0.0
    %1951 = vmatprep.subr.mxu0 0.0
    %1952 = vmatpush2.msra.mxu0 0.0
    %1953 = vmatprep.subr.mxu0 0.0
    %1954 = vmatpush2.msra.mxu0 0.0
    %1955 = vmatprep.subr.mxu0 0.0
    %1956 = vmatpush2.msra.mxu0 0.0
    %1957 = vmatprep.subr.mxu0 0.0
    %1958 = vmatpush2.msra.mxu0 0.0
    %1959 = vmatprep.subr.mxu0 0.0
    %1960 = vmatpush2.msra.mxu0 0.0
    %1961 = vmatprep.subr.mxu0 0.0
    %1962 = vmatpush2.msra.mxu0 0.0
    %1963 = vmatprep.subr.mxu0 0.0
    %1964 = vmatpush2.msra.mxu0 0.0
    %1965 = vmatprep.subr.mxu0 0.0
    %1966 = vmatpush2.msra.mxu0 0.0
    %1967 = vmatprep.mubr.f32.mxu0 0.0
    %1968 = vmatmul.mubr.f32.gmra.mxu0 %v52
    %v1969 = vpop.f32.mrf.mxu0
    %v1970 = vadd.f32 %v1332, %v1969
    %v1971 = vpop.f32.mrf.mxu0
    %v1972 = vadd.f32 %v1336, %v1971
    %1973 = vdwg.mxu0
    %1974 = vmatprep.subr.mxu0 %v1217
    %1975 = vmatpush1.msra.mxu0 %v1216
    %1976 = vmatprep.subr.mxu0 %v1140
    %1977 = vmatpush1.msra.mxu0 %v1139
    %1978 = vmatprep.subr.mxu0 %v1063
    %1979 = vmatpush1.msra.mxu0 %v1062
    %1980 = vmatprep.subr.mxu0 %v986
    %1981 = vmatpush1.msra.mxu0 %v985
    %1982 = vmatprep.subr.mxu0 %v909
    %1983 = vmatpush1.msra.mxu0 %v908
    %1984 = vmatprep.subr.mxu0 %v832
    %1985 = vmatpush1.msra.mxu0 %v831
    %1986 = vmatprep.subr.mxu0 %v755
    %1987 = vmatpush1.msra.mxu0 %v754
    %1988 = vmatprep.subr.mxu0 %v678
    %1989 = vmatpush1.msra.mxu0 %v677
    %1990 = vmatprep.subr.mxu0 %v601
    %1991 = vmatpush1.msra.mxu0 %v600
    %1992 = vmatprep.subr.mxu0 %v524
    %1993 = vmatpush1.msra.mxu0 %v523
    %1994 = vmatprep.subr.mxu0 %v447
    %1995 = vmatpush1.msra.mxu0 %v446
    %1996 = vmatprep.subr.mxu0 %v370
    %1997 = vmatpush1.msra.mxu0 %v369
    %1998 = vmatprep.subr.mxu0 %v293
    %1999 = vmatpush1.msra.mxu0 %v292
    %2000 = vmatprep.subr.mxu0 %v216
    %2001 = vmatpush1.msra.mxu0 %v215
    %2002 = vmatprep.subr.mxu0 %v139
    %2003 = vmatpush1.msra.mxu0 %v138
    %2004 = vmatprep.subr.mxu0 %v62
    %2005 = vmatpush1.msra.mxu0 %v61
    %2006 = vmatprep.subr.mxu0 0.0
    %2007 = vmatpush2.msra.mxu0 0.0
    %2008 = vmatprep.subr.mxu0 0.0
    %2009 = vmatpush2.msra.mxu0 0.0
    %2010 = vmatprep.subr.mxu0 0.0
    %2011 = vmatpush2.msra.mxu0 0.0
    %2012 = vmatprep.subr.mxu0 0.0
    %2013 = vmatpush2.msra.mxu0 0.0
    %2014 = vmatprep.subr.mxu0 0.0
    %2015 = vmatpush2.msra.mxu0 0.0
    %2016 = vmatprep.subr.mxu0 0.0
    %2017 = vmatpush2.msra.mxu0 0.0
    %2018 = vmatprep.subr.mxu0 0.0
    %2019 = vmatpush2.msra.mxu0 0.0
    %2020 = vmatprep.subr.mxu0 0.0
    %2021 = vmatpush2.msra.mxu0 0.0
    %2022 = vmatprep.subr.mxu0 0.0
    %2023 = vmatpush2.msra.mxu0 0.0
    %2024 = vmatprep.subr.mxu0 0.0
    %2025 = vmatpush2.msra.mxu0 0.0
    %2026 = vmatprep.subr.mxu0 0.0
    %2027 = vmatpush2.msra.mxu0 0.0
    %2028 = vmatprep.subr.mxu0 0.0
    %2029 = vmatpush2.msra.mxu0 0.0
    %2030 = vmatprep.subr.mxu0 0.0
    %2031 = vmatpush2.msra.mxu0 0.0
    %2032 = vmatprep.subr.mxu0 0.0
    %2033 = vmatpush2.msra.mxu0 0.0
    %2034 = vmatprep.subr.mxu0 0.0
    %2035 = vmatpush2.msra.mxu0 0.0
    %2036 = vmatprep.subr.mxu0 0.0
    %2037 = vmatpush2.msra.mxu0 0.0
    %2038 = vmatprep.mubr.f32.mxu0 0.0
    %2039 = vmatmul.mubr.f32.gmra.mxu0 %v52
    %v2040 = vpop.f32.mrf.mxu0
    %v2041 = vadd.f32 %v1340, %v2040
    %v2042 = vpop.f32.mrf.mxu0
    %v2043 = vadd.f32 %v1344, %v2042
    %2044 = vdwg.mxu0
    %2045 = vmatprep.subr.mxu0 %v1219
    %2046 = vmatpush1.msra.mxu0 %v1218
    %2047 = vmatprep.subr.mxu0 %v1142
    %2048 = vmatpush1.msra.mxu0 %v1141
    %2049 = vmatprep.subr.mxu0 %v1065
    %2050 = vmatpush1.msra.mxu0 %v1064
    %2051 = vmatprep.subr.mxu0 %v988
    %2052 = vmatpush1.msra.mxu0 %v987
    %2053 = vmatprep.subr.mxu0 %v911
    %2054 = vmatpush1.msra.mxu0 %v910
    %2055 = vmatprep.subr.mxu0 %v834
    %2056 = vmatpush1.msra.mxu0 %v833
    %2057 = vmatprep.subr.mxu0 %v757
    %2058 = vmatpush1.msra.mxu0 %v756
    %2059 = vmatprep.subr.mxu0 %v680
    %2060 = vmatpush1.msra.mxu0 %v679
    %2061 = vmatprep.subr.mxu0 %v603
    %2062 = vmatpush1.msra.mxu0 %v602
    %2063 = vmatprep.subr.mxu0 %v526
    %2064 = vmatpush1.msra.mxu0 %v525
    %2065 = vmatprep.subr.mxu0 %v449
    %2066 = vmatpush1.msra.mxu0 %v448
    %2067 = vmatprep.subr.mxu0 %v372
    %2068 = vmatpush1.msra.mxu0 %v371
    %2069 = vmatprep.subr.mxu0 %v295
    %2070 = vmatpush1.msra.mxu0 %v294
    %2071 = vmatprep.subr.mxu0 %v218
    %2072 = vmatpush1.msra.mxu0 %v217
    %2073 = vmatprep.subr.mxu0 %v141
    %2074 = vmatpush1.msra.mxu0 %v140
    %2075 = vmatprep.subr.mxu0 %v64
    %2076 = vmatpush1.msra.mxu0 %v63
    %2077 = vmatprep.subr.mxu0 0.0
    %2078 = vmatpush2.msra.mxu0 0.0
    %2079 = vmatprep.subr.mxu0 0.0
    %2080 = vmatpush2.msra.mxu0 0.0
    %2081 = vmatprep.subr.mxu0 0.0
    %2082 = vmatpush2.msra.mxu0 0.0
    %2083 = vmatprep.subr.mxu0 0.0
    %2084 = vmatpush2.msra.mxu0 0.0
    %2085 = vmatprep.subr.mxu0 0.0
    %2086 = vmatpush2.msra.mxu0 0.0
    %2087 = vmatprep.subr.mxu0 0.0
    %2088 = vmatpush2.msra.mxu0 0.0
    %2089 = vmatprep.subr.mxu0 0.0
    %2090 = vmatpush2.msra.mxu0 0.0
    %2091 = vmatprep.subr.mxu0 0.0
    %2092 = vmatpush2.msra.mxu0 0.0
    %2093 = vmatprep.subr.mxu0 0.0
    %2094 = vmatpush2.msra.mxu0 0.0
    %2095 = vmatprep.subr.mxu0 0.0
    %2096 = vmatpush2.msra.mxu0 0.0
    %2097 = vmatprep.subr.mxu0 0.0
    %2098 = vmatpush2.msra.mxu0 0.0
    %2099 = vmatprep.subr.mxu0 0.0
    %2100 = vmatpush2.msra.mxu0 0.0
    %2101 = vmatprep.subr.mxu0 0.0
    %2102 = vmatpush2.msra.mxu0 0.0
    %2103 = vmatprep.subr.mxu0 0.0
    %2104 = vmatpush2.msra.mxu0 0.0
    %2105 = vmatprep.subr.mxu0 0.0
    %2106 = vmatpush2.msra.mxu0 0.0
    %2107 = vmatprep.subr.mxu0 0.0
    %2108 = vmatpush2.msra.mxu0 0.0
    %2109 = vmatprep.mubr.f32.mxu0 0.0
    %2110 = vmatmul.mubr.f32.gmra.mxu0 %v52
    %v2111 = vpop.f32.mrf.mxu0
    %v2112 = vadd.f32 %v1348, %v2111
    %v2113 = vpop.f32.mrf.mxu0
    %v2114 = vadd.f32 %v1352, %v2113
    %2115 = vdwg.mxu0
    %2116 = vmatprep.subr.mxu0 %v1221
    %2117 = vmatpush1.msra.mxu0 %v1220
    %2118 = vmatprep.subr.mxu0 %v1144
    %2119 = vmatpush1.msra.mxu0 %v1143
    %2120 = vmatprep.subr.mxu0 %v1067
    %2121 = vmatpush1.msra.mxu0 %v1066
    %2122 = vmatprep.subr.mxu0 %v990
    %2123 = vmatpush1.msra.mxu0 %v989
    %2124 = vmatprep.subr.mxu0 %v913
    %2125 = vmatpush1.msra.mxu0 %v912
    %2126 = vmatprep.subr.mxu0 %v836
    %2127 = vmatpush1.msra.mxu0 %v835
    %2128 = vmatprep.subr.mxu0 %v759
    %2129 = vmatpush1.msra.mxu0 %v758
    %2130 = vmatprep.subr.mxu0 %v682
    %2131 = vmatpush1.msra.mxu0 %v681
    %2132 = vmatprep.subr.mxu0 %v605
    %2133 = vmatpush1.msra.mxu0 %v604
    %2134 = vmatprep.subr.mxu0 %v528
    %2135 = vmatpush1.msra.mxu0 %v527
    %2136 = vmatprep.subr.mxu0 %v451
    %2137 = vmatpush1.msra.mxu0 %v450
    %2138 = vmatprep.subr.mxu0 %v374
    %2139 = vmatpush1.msra.mxu0 %v373
    %2140 = vmatprep.subr.mxu0 %v297
    %2141 = vmatpush1.msra.mxu0 %v296
    %2142 = vmatprep.subr.mxu0 %v220
    %2143 = vmatpush1.msra.mxu0 %v219
    %2144 = vmatprep.subr.mxu0 %v143
    %2145 = vmatpush1.msra.mxu0 %v142
    %2146 = vmatprep.subr.mxu0 %v66
    %2147 = vmatpush1.msra.mxu0 %v65
    %2148 = vmatprep.subr.mxu0 0.0
    %2149 = vmatpush2.msra.mxu0 0.0
    %2150 = vmatprep.subr.mxu0 0.0
    %2151 = vmatpush2.msra.mxu0 0.0
    %2152 = vmatprep.subr.mxu0 0.0
    %2153 = vmatpush2.msra.mxu0 0.0
    %2154 = vmatprep.subr.mxu0 0.0
    %2155 = vmatpush2.msra.mxu0 0.0
    %2156 = vmatprep.subr.mxu0 0.0
    %2157 = vmatpush2.msra.mxu0 0.0
    %2158 = vmatprep.subr.mxu0 0.0
    %2159 = vmatpush2.msra.mxu0 0.0
    %2160 = vmatprep.subr.mxu0 0.0
    %2161 = vmatpush2.msra.mxu0 0.0
    %2162 = vmatprep.subr.mxu0 0.0
    %2163 = vmatpush2.msra.mxu0 0.0
    %2164 = vmatprep.subr.mxu0 0.0
    %2165 = vmatpush2.msra.mxu0 0.0
    %2166 = vmatprep.subr.mxu0 0.0
    %2167 = vmatpush2.msra.mxu0 0.0
    %2168 = vmatprep.subr.mxu0 0.0
    %2169 = vmatpush2.msra.mxu0 0.0
    %2170 = vmatprep.subr.mxu0 0.0
    %2171 = vmatpush2.msra.mxu0 0.0
    %2172 = vmatprep.subr.mxu0 0.0
    %2173 = vmatpush2.msra.mxu0 0.0
    %2174 = vmatprep.subr.mxu0 0.0
    %2175 = vmatpush2.msra.mxu0 0.0
    %2176 = vmatprep.subr.mxu0 0.0
    %2177 = vmatpush2.msra.mxu0 0.0
    %2178 = vmatprep.subr.mxu0 0.0
    %2179 = vmatpush2.msra.mxu0 0.0
    %2180 = vmatprep.mubr.f32.mxu0 0.0
    %2181 = vmatmul.mubr.f32.gmra.mxu0 %v52
    %v2182 = vpop.f32.mrf.mxu0
    %v2183 = vadd.f32 %v1356, %v2182
    %v2184 = vpop.f32.mrf.mxu0
    %v2185 = vadd.f32 %v1360, %v2184
    %2186 = vdwg.mxu0
    %2187 = vmatprep.subr.mxu0 %v1223
    %2188 = vmatpush1.msra.mxu0 %v1222
    %2189 = vmatprep.subr.mxu0 %v1146
    %2190 = vmatpush1.msra.mxu0 %v1145
    %2191 = vmatprep.subr.mxu0 %v1069
    %2192 = vmatpush1.msra.mxu0 %v1068
    %2193 = vmatprep.subr.mxu0 %v992
    %2194 = vmatpush1.msra.mxu0 %v991
    %2195 = vmatprep.subr.mxu0 %v915
    %2196 = vmatpush1.msra.mxu0 %v914
    %2197 = vmatprep.subr.mxu0 %v838
    %2198 = vmatpush1.msra.mxu0 %v837
    %2199 = vmatprep.subr.mxu0 %v761
    %2200 = vmatpush1.msra.mxu0 %v760
    %2201 = vmatprep.subr.mxu0 %v684
    %2202 = vmatpush1.msra.mxu0 %v683
    %2203 = vmatprep.subr.mxu0 %v607
    %2204 = vmatpush1.msra.mxu0 %v606
    %2205 = vmatprep.subr.mxu0 %v530
    %2206 = vmatpush1.msra.mxu0 %v529
    %2207 = vmatprep.subr.mxu0 %v453
    %2208 = vmatpush1.msra.mxu0 %v452
    %2209 = vmatprep.subr.mxu0 %v376
    %2210 = vmatpush1.msra.mxu0 %v375
    %2211 = vmatprep.subr.mxu0 %v299
    %2212 = vmatpush1.msra.mxu0 %v298
    %2213 = vmatprep.subr.mxu0 %v222
    %2214 = vmatpush1.msra.mxu0 %v221
    %2215 = vmatprep.subr.mxu0 %v145
    %2216 = vmatpush1.msra.mxu0 %v144
    %2217 = vmatprep.subr.mxu0 %v68
    %2218 = vmatpush1.msra.mxu0 %v67
    %2219 = vmatprep.subr.mxu0 0.0
    %2220 = vmatpush2.msra.mxu0 0.0
    %2221 = vmatprep.subr.mxu0 0.0
    %2222 = vmatpush2.msra.mxu0 0.0
    %2223 = vmatprep.subr.mxu0 0.0
    %2224 = vmatpush2.msra.mxu0 0.0
    %2225 = vmatprep.subr.mxu0 0.0
    %2226 = vmatpush2.msra.mxu0 0.0
    %2227 = vmatprep.subr.mxu0 0.0
    %2228 = vmatpush2.msra.mxu0 0.0
    %2229 = vmatprep.subr.mxu0 0.0
    %2230 = vmatpush2.msra.mxu0 0.0
    %2231 = vmatprep.subr.mxu0 0.0
    %2232 = vmatpush2.msra.mxu0 0.0
    %2233 = vmatprep.subr.mxu0 0.0
    %2234 = vmatpush2.msra.mxu0 0.0
    %2235 = vmatprep.subr.mxu0 0.0
    %2236 = vmatpush2.msra.mxu0 0.0
    %2237 = vmatprep.subr.mxu0 0.0
    %2238 = vmatpush2.msra.mxu0 0.0
    %2239 = vmatprep.subr.mxu0 0.0
    %2240 = vmatpush2.msra.mxu0 0.0
    %2241 = vmatprep.subr.mxu0 0.0
    %2242 = vmatpush2.msra.mxu0 0.0
    %2243 = vmatprep.subr.mxu0 0.0
    %2244 = vmatpush2.msra.mxu0 0.0
    %2245 = vmatprep.subr.mxu0 0.0
    %2246 = vmatpush2.msra.mxu0 0.0
    %2247 = vmatprep.subr.mxu0 0.0
    %2248 = vmatpush2.msra.mxu0 0.0
    %2249 = vmatprep.subr.mxu0 0.0
    %2250 = vmatpush2.msra.mxu0 0.0
    %2251 = vmatprep.mubr.f32.mxu0 0.0
    %2252 = vmatmul.mubr.f32.gmra.mxu0 %v52
    %v2253 = vpop.f32.mrf.mxu0
    %v2254 = vadd.f32 %v1364, %v2253
    %v2255 = vpop.f32.mrf.mxu0
    %v2256 = vadd.f32 %v1368, %v2255
    %2257 = vdwg.mxu0
    %2258 = vmatprep.subr.mxu0 %v1225
    %2259 = vmatpush1.msra.mxu0 %v1224
    %2260 = vmatprep.subr.mxu0 %v1148
    %2261 = vmatpush1.msra.mxu0 %v1147
    %2262 = vmatprep.subr.mxu0 %v1071
    %2263 = vmatpush1.msra.mxu0 %v1070
    %2264 = vmatprep.subr.mxu0 %v994
    %2265 = vmatpush1.msra.mxu0 %v993
    %2266 = vmatprep.subr.mxu0 %v917
    %2267 = vmatpush1.msra.mxu0 %v916
    %2268 = vmatprep.subr.mxu0 %v840
    %2269 = vmatpush1.msra.mxu0 %v839
    %2270 = vmatprep.subr.mxu0 %v763
    %2271 = vmatpush1.msra.mxu0 %v762
    %2272 = vmatprep.subr.mxu0 %v686
    %2273 = vmatpush1.msra.mxu0 %v685
    %2274 = vmatprep.subr.mxu0 %v609
    %2275 = vmatpush1.msra.mxu0 %v608
    %2276 = vmatprep.subr.mxu0 %v532
    %2277 = vmatpush1.msra.mxu0 %v531
    %2278 = vmatprep.subr.mxu0 %v455
    %2279 = vmatpush1.msra.mxu0 %v454
    %2280 = vmatprep.subr.mxu0 %v378
    %2281 = vmatpush1.msra.mxu0 %v377
    %2282 = vmatprep.subr.mxu0 %v301
    %2283 = vmatpush1.msra.mxu0 %v300
    %2284 = vmatprep.subr.mxu0 %v224
    %2285 = vmatpush1.msra.mxu0 %v223
    %2286 = vmatprep.subr.mxu0 %v147
    %2287 = vmatpush1.msra.mxu0 %v146
    %2288 = vmatprep.subr.mxu0 %v70
    %2289 = vmatpush1.msra.mxu0 %v69
    %2290 = vmatprep.subr.mxu0 0.0
    %2291 = vmatpush2.msra.mxu0 0.0
    %2292 = vmatprep.subr.mxu0 0.0
    %2293 = vmatpush2.msra.mxu0 0.0
    %2294 = vmatprep.subr.mxu0 0.0
    %2295 = vmatpush2.msra.mxu0 0.0
    %2296 = vmatprep.subr.mxu0 0.0
    %2297 = vmatpush2.msra.mxu0 0.0
    %2298 = vmatprep.subr.mxu0 0.0
    %2299 = vmatpush2.msra.mxu0 0.0
    %2300 = vmatprep.subr.mxu0 0.0
    %2301 = vmatpush2.msra.mxu0 0.0
    %2302 = vmatprep.subr.mxu0 0.0
    %2303 = vmatpush2.msra.mxu0 0.0
    %2304 = vmatprep.subr.mxu0 0.0
    %2305 = vmatpush2.msra.mxu0 0.0
    %2306 = vmatprep.subr.mxu0 0.0
    %2307 = vmatpush2.msra.mxu0 0.0
    %2308 = vmatprep.subr.mxu0 0.0
    %2309 = vmatpush2.msra.mxu0 0.0
    %2310 = vmatprep.subr.mxu0 0.0
    %2311 = vmatpush2.msra.mxu0 0.0
    %2312 = vmatprep.subr.mxu0 0.0
    %2313 = vmatpush2.msra.mxu0 0.0
    %2314 = vmatprep.subr.mxu0 0.0
    %2315 = vmatpush2.msra.mxu0 0.0
    %2316 = vmatprep.subr.mxu0 0.0
    %2317 = vmatpush2.msra.mxu0 0.0
    %2318 = vmatprep.subr.mxu0 0.0
    %2319 = vmatpush2.msra.mxu0 0.0
    %2320 = vmatprep.subr.mxu0 0.0
    %2321 = vmatpush2.msra.mxu0 0.0
    %2322 = vmatprep.mubr.f32.mxu0 0.0
    %2323 = vmatmul.mubr.f32.gmra.mxu0 %v52
    %v2324 = vpop.f32.mrf.mxu0
    %v2325 = vadd.f32 %v1372, %v2324
    %v2326 = vpop.f32.mrf.mxu0
    %v2327 = vadd.f32 %v1376, %v2326
    %2328 = vdwg.mxu0
    %2329 = vmatprep.subr.mxu0 %v1227
    %2330 = vmatpush1.msra.mxu0 %v1226
    %2331 = vmatprep.subr.mxu0 %v1150
    %2332 = vmatpush1.msra.mxu0 %v1149
    %2333 = vmatprep.subr.mxu0 %v1073
    %2334 = vmatpush1.msra.mxu0 %v1072
    %2335 = vmatprep.subr.mxu0 %v996
    %2336 = vmatpush1.msra.mxu0 %v995
    %2337 = vmatprep.subr.mxu0 %v919
    %2338 = vmatpush1.msra.mxu0 %v918
    %2339 = vmatprep.subr.mxu0 %v842
    %2340 = vmatpush1.msra.mxu0 %v841
    %2341 = vmatprep.subr.mxu0 %v765
    %2342 = vmatpush1.msra.mxu0 %v764
    %2343 = vmatprep.subr.mxu0 %v688
    %2344 = vmatpush1.msra.mxu0 %v687
    %2345 = vmatprep.subr.mxu0 %v611
    %2346 = vmatpush1.msra.mxu0 %v610
    %2347 = vmatprep.subr.mxu0 %v534
    %2348 = vmatpush1.msra.mxu0 %v533
    %2349 = vmatprep.subr.mxu0 %v457
    %2350 = vmatpush1.msra.mxu0 %v456
    %2351 = vmatprep.subr.mxu0 %v380
    %2352 = vmatpush1.msra.mxu0 %v379
    %2353 = vmatprep.subr.mxu0 %v303
    %2354 = vmatpush1.msra.mxu0 %v302
    %2355 = vmatprep.subr.mxu0 %v226
    %2356 = vmatpush1.msra.mxu0 %v225
    %2357 = vmatprep.subr.mxu0 %v149
    %2358 = vmatpush1.msra.mxu0 %v148
    %2359 = vmatprep.subr.mxu0 %v72
    %2360 = vmatpush1.msra.mxu0 %v71
    %2361 = vmatprep.subr.mxu0 0.0
    %2362 = vmatpush2.msra.mxu0 0.0
    %2363 = vmatprep.subr.mxu0 0.0
    %2364 = vmatpush2.msra.mxu0 0.0
    %2365 = vmatprep.subr.mxu0 0.0
    %2366 = vmatpush2.msra.mxu0 0.0
    %2367 = vmatprep.subr.mxu0 0.0
    %2368 = vmatpush2.msra.mxu0 0.0
    %2369 = vmatprep.subr.mxu0 0.0
    %2370 = vmatpush2.msra.mxu0 0.0
    %2371 = vmatprep.subr.mxu0 0.0
    %2372 = vmatpush2.msra.mxu0 0.0
    %2373 = vmatprep.subr.mxu0 0.0
    %2374 = vmatpush2.msra.mxu0 0.0
    %2375 = vmatprep.subr.mxu0 0.0
    %2376 = vmatpush2.msra.mxu0 0.0
    %2377 = vmatprep.subr.mxu0 0.0
    %2378 = vmatpush2.msra.mxu0 0.0
    %2379 = vmatprep.subr.mxu0 0.0
    %2380 = vmatpush2.msra.mxu0 0.0
    %2381 = vmatprep.subr.mxu0 0.0
    %2382 = vmatpush2.msra.mxu0 0.0
    %2383 = vmatprep.subr.mxu0 0.0
    %2384 = vmatpush2.msra.mxu0 0.0
    %2385 = vmatprep.subr.mxu0 0.0
    %2386 = vmatpush2.msra.mxu0 0.0
    %2387 = vmatprep.subr.mxu0 0.0
    %2388 = vmatpush2.msra.mxu0 0.0
    %2389 = vmatprep.subr.mxu0 0.0
    %2390 = vmatpush2.msra.mxu0 0.0
    %2391 = vmatprep.subr.mxu0 0.0
    %2392 = vmatpush2.msra.mxu0 0.0
    %2393 = vmatprep.mubr.f32.mxu0 0.0
    %2394 = vmatmul.mubr.f32.gmra.mxu0 %v52
    %v2395 = vpop.f32.mrf.mxu0
    %v2396 = vadd.f32 %v1380, %v2395
    %v2397 = vpop.f32.mrf.mxu0
    %v2398 = vadd.f32 %v1384, %v2397
    %2399 = vdwg.mxu0
    %2400 = vmatprep.subr.mxu0 %v1229
    %2401 = vmatpush1.msra.mxu0 %v1228
    %2402 = vmatprep.subr.mxu0 %v1152
    %2403 = vmatpush1.msra.mxu0 %v1151
    %2404 = vmatprep.subr.mxu0 %v1075
    %2405 = vmatpush1.msra.mxu0 %v1074
    %2406 = vmatprep.subr.mxu0 %v998
    %2407 = vmatpush1.msra.mxu0 %v997
    %2408 = vmatprep.subr.mxu0 %v921
    %2409 = vmatpush1.msra.mxu0 %v920
    %2410 = vmatprep.subr.mxu0 %v844
    %2411 = vmatpush1.msra.mxu0 %v843
    %2412 = vmatprep.subr.mxu0 %v767
    %2413 = vmatpush1.msra.mxu0 %v766
    %2414 = vmatprep.subr.mxu0 %v690
    %2415 = vmatpush1.msra.mxu0 %v689
    %2416 = vmatprep.subr.mxu0 %v613
    %2417 = vmatpush1.msra.mxu0 %v612
    %2418 = vmatprep.subr.mxu0 %v536
    %2419 = vmatpush1.msra.mxu0 %v535
    %2420 = vmatprep.subr.mxu0 %v459
    %2421 = vmatpush1.msra.mxu0 %v458
    %2422 = vmatprep.subr.mxu0 %v382
    %2423 = vmatpush1.msra.mxu0 %v381
    %2424 = vmatprep.subr.mxu0 %v305
    %2425 = vmatpush1.msra.mxu0 %v304
    %2426 = vmatprep.subr.mxu0 %v228
    %2427 = vmatpush1.msra.mxu0 %v227
    %2428 = vmatprep.subr.mxu0 %v151
    %2429 = vmatpush1.msra.mxu0 %v150
    %2430 = vmatprep.subr.mxu0 %v74
    %2431 = vmatpush1.msra.mxu0 %v73
    %2432 = vmatprep.subr.mxu0 0.0
    %2433 = vmatpush2.msra.mxu0 0.0
    %2434 = vmatprep.subr.mxu0 0.0
    %2435 = vmatpush2.msra.mxu0 0.0
    %2436 = vmatprep.subr.mxu0 0.0
    %2437 = vmatpush2.msra.mxu0 0.0
    %2438 = vmatprep.subr.mxu0 0.0
    %2439 = vmatpush2.msra.mxu0 0.0
    %2440 = vmatprep.subr.mxu0 0.0
    %2441 = vmatpush2.msra.mxu0 0.0
    %2442 = vmatprep.subr.mxu0 0.0
    %2443 = vmatpush2.msra.mxu0 0.0
    %2444 = vmatprep.subr.mxu0 0.0
    %2445 = vmatpush2.msra.mxu0 0.0
    %2446 = vmatprep.subr.mxu0 0.0
    %2447 = vmatpush2.msra.mxu0 0.0
    %2448 = vmatprep.subr.mxu0 0.0
    %2449 = vmatpush2.msra.mxu0 0.0
    %2450 = vmatprep.subr.mxu0 0.0
    %2451 = vmatpush2.msra.mxu0 0.0
    %2452 = vmatprep.subr.mxu0 0.0
    %2453 = vmatpush2.msra.mxu0 0.0
    %2454 = vmatprep.subr.mxu0 0.0
    %2455 = vmatpush2.msra.mxu0 0.0
    %2456 = vmatprep.subr.mxu0 0.0
    %2457 = vmatpush2.msra.mxu0 0.0
    %2458 = vmatprep.subr.mxu0 0.0
    %2459 = vmatpush2.msra.mxu0 0.0
    %2460 = vmatprep.subr.mxu0 0.0
    %2461 = vmatpush2.msra.mxu0 0.0
    %2462 = vmatprep.subr.mxu0 0.0
    %2463 = vmatpush2.msra.mxu0 0.0
    %2464 = vmatprep.mubr.f32.mxu0 0.0
    %2465 = vmatmul.mubr.f32.gmra.mxu0 %v52
    %v2466 = vpop.f32.mrf.mxu0
    %v2467 = vadd.f32 %v1388, %v2466
    %v2468 = vpop.f32.mrf.mxu0
    %v2469 = vadd.f32 %v1392, %v2468
    %2470 = vdwg.mxu0
    %2471 = vmatprep.subr.mxu0 %v1231
    %2472 = vmatpush1.msra.mxu0 %v1230
    %2473 = vmatprep.subr.mxu0 %v1154
    %2474 = vmatpush1.msra.mxu0 %v1153
    %2475 = vmatprep.subr.mxu0 %v1077
    %2476 = vmatpush1.msra.mxu0 %v1076
    %2477 = vmatprep.subr.mxu0 %v1000
    %2478 = vmatpush1.msra.mxu0 %v999
    %2479 = vmatprep.subr.mxu0 %v923
    %2480 = vmatpush1.msra.mxu0 %v922
    %2481 = vmatprep.subr.mxu0 %v846
    %2482 = vmatpush1.msra.mxu0 %v845
    %2483 = vmatprep.subr.mxu0 %v769
    %2484 = vmatpush1.msra.mxu0 %v768
    %2485 = vmatprep.subr.mxu0 %v692
    %2486 = vmatpush1.msra.mxu0 %v691
    %2487 = vmatprep.subr.mxu0 %v615
    %2488 = vmatpush1.msra.mxu0 %v614
    %2489 = vmatprep.subr.mxu0 %v538
    %2490 = vmatpush1.msra.mxu0 %v537
    %2491 = vmatprep.subr.mxu0 %v461
    %2492 = vmatpush1.msra.mxu0 %v460
    %2493 = vmatprep.subr.mxu0 %v384
    %2494 = vmatpush1.msra.mxu0 %v383
    %2495 = vmatprep.subr.mxu0 %v307
    %2496 = vmatpush1.msra.mxu0 %v306
    %2497 = vmatprep.subr.mxu0 %v230
    %2498 = vmatpush1.msra.mxu0 %v229
    %2499 = vmatprep.subr.mxu0 %v153
    %2500 = vmatpush1.msra.mxu0 %v152
    %2501 = vmatprep.subr.mxu0 %v76
    %2502 = vmatpush1.msra.mxu0 %v75
    %2503 = vmatprep.subr.mxu0 0.0
    %2504 = vmatpush2.msra.mxu0 0.0
    %2505 = vmatprep.subr.mxu0 0.0
    %2506 = vmatpush2.msra.mxu0 0.0
    %2507 = vmatprep.subr.mxu0 0.0
    %2508 = vmatpush2.msra.mxu0 0.0
    %2509 = vmatprep.subr.mxu0 0.0
    %2510 = vmatpush2.msra.mxu0 0.0
    %2511 = vmatprep.subr.mxu0 0.0
    %2512 = vmatpush2.msra.mxu0 0.0
    %2513 = vmatprep.subr.mxu0 0.0
    %2514 = vmatpush2.msra.mxu0 0.0
    %2515 = vmatprep.subr.mxu0 0.0
    %2516 = vmatpush2.msra.mxu0 0.0
    %2517 = vmatprep.subr.mxu0 0.0
    %2518 = vmatpush2.msra.mxu0 0.0
    %2519 = vmatprep.subr.mxu0 0.0
    %2520 = vmatpush2.msra.mxu0 0.0
    %2521 = vmatprep.subr.mxu0 0.0
    %2522 = vmatpush2.msra.mxu0 0.0
    %2523 = vmatprep.subr.mxu0 0.0
    %2524 = vmatpush2.msra.mxu0 0.0
    %2525 = vmatprep.subr.mxu0 0.0
    %2526 = vmatpush2.msra.mxu0 0.0
    %2527 = vmatprep.subr.mxu0 0.0
    %2528 = vmatpush2.msra.mxu0 0.0
    %2529 = vmatprep.subr.mxu0 0.0
    %2530 = vmatpush2.msra.mxu0 0.0
    %2531 = vmatprep.subr.mxu0 0.0
    %2532 = vmatpush2.msra.mxu0 0.0
    %2533 = vmatprep.subr.mxu0 0.0
    %2534 = vmatpush2.msra.mxu0 0.0
    %2535 = vmatprep.mubr.f32.mxu0 0.0
    %2536 = vmatmul.mubr.f32.gmra.mxu0 %v52
    %v2537 = vpop.f32.mrf.mxu0
    %v2538 = vadd.f32 %v1396, %v2537
    %v2539 = vpop.f32.mrf.mxu0
    %v2540 = vadd.f32 %v1400, %v2539
    %2541 = vdwg.mxu0
    %2542 = vmatprep.subr.mxu0 %v1233
    %2543 = vmatpush1.msra.mxu0 %v1232
    %2544 = vmatprep.subr.mxu0 %v1156
    %2545 = vmatpush1.msra.mxu0 %v1155
    %2546 = vmatprep.subr.mxu0 %v1079
    %2547 = vmatpush1.msra.mxu0 %v1078
    %2548 = vmatprep.subr.mxu0 %v1002
    %2549 = vmatpush1.msra.mxu0 %v1001
    %2550 = vmatprep.subr.mxu0 %v925
    %2551 = vmatpush1.msra.mxu0 %v924
    %2552 = vmatprep.subr.mxu0 %v848
    %2553 = vmatpush1.msra.mxu0 %v847
    %2554 = vmatprep.subr.mxu0 %v771
    %2555 = vmatpush1.msra.mxu0 %v770
    %2556 = vmatprep.subr.mxu0 %v694
    %2557 = vmatpush1.msra.mxu0 %v693
    %2558 = vmatprep.subr.mxu0 %v617
    %2559 = vmatpush1.msra.mxu0 %v616
    %2560 = vmatprep.subr.mxu0 %v540
    %2561 = vmatpush1.msra.mxu0 %v539
    %2562 = vmatprep.subr.mxu0 %v463
    %2563 = vmatpush1.msra.mxu0 %v462
    %2564 = vmatprep.subr.mxu0 %v386
    %2565 = vmatpush1.msra.mxu0 %v385
    %2566 = vmatprep.subr.mxu0 %v309
    %2567 = vmatpush1.msra.mxu0 %v308
    %2568 = vmatprep.subr.mxu0 %v232
    %2569 = vmatpush1.msra.mxu0 %v231
    %2570 = vmatprep.subr.mxu0 %v155
    %2571 = vmatpush1.msra.mxu0 %v154
    %2572 = vmatprep.subr.mxu0 %v78
    %2573 = vmatpush1.msra.mxu0 %v77
    %2574 = vmatprep.subr.mxu0 0.0
    %2575 = vmatpush2.msra.mxu0 0.0
    %2576 = vmatprep.subr.mxu0 0.0
    %2577 = vmatpush2.msra.mxu0 0.0
    %2578 = vmatprep.subr.mxu0 0.0
    %2579 = vmatpush2.msra.mxu0 0.0
    %2580 = vmatprep.subr.mxu0 0.0
    %2581 = vmatpush2.msra.mxu0 0.0
    %2582 = vmatprep.subr.mxu0 0.0
    %2583 = vmatpush2.msra.mxu0 0.0
    %2584 = vmatprep.subr.mxu0 0.0
    %2585 = vmatpush2.msra.mxu0 0.0
    %2586 = vmatprep.subr.mxu0 0.0
    %2587 = vmatpush2.msra.mxu0 0.0
    %2588 = vmatprep.subr.mxu0 0.0
    %2589 = vmatpush2.msra.mxu0 0.0
    %2590 = vmatprep.subr.mxu0 0.0
    %2591 = vmatpush2.msra.mxu0 0.0
    %2592 = vmatprep.subr.mxu0 0.0
    %2593 = vmatpush2.msra.mxu0 0.0
    %2594 = vmatprep.subr.mxu0 0.0
    %2595 = vmatpush2.msra.mxu0 0.0
    %2596 = vmatprep.subr.mxu0 0.0
    %2597 = vmatpush2.msra.mxu0 0.0
    %2598 = vmatprep.subr.mxu0 0.0
    %2599 = vmatpush2.msra.mxu0 0.0
    %2600 = vmatprep.subr.mxu0 0.0
    %2601 = vmatpush2.msra.mxu0 0.0
    %2602 = vmatprep.subr.mxu0 0.0
    %2603 = vmatpush2.msra.mxu0 0.0
    %2604 = vmatprep.subr.mxu0 0.0
    %2605 = vmatpush2.msra.mxu0 0.0
    %2606 = vmatprep.mubr.f32.mxu0 0.0
    %2607 = vmatmul.mubr.f32.gmra.mxu0 %v52
    %v2608 = vpop.f32.mrf.mxu0
    %v2609 = vadd.f32 %v1404, %v2608
    %v2610 = vpop.f32.mrf.mxu0
    %v2611 = vadd.f32 %v1408, %v2610
    %2612 = vdwg.mxu0
    %2613 = vmatprep.subr.mxu0 %v1235
    %2614 = vmatpush1.msra.mxu0 %v1234
    %2615 = vmatprep.subr.mxu0 %v1158
    %2616 = vmatpush1.msra.mxu0 %v1157
    %2617 = vmatprep.subr.mxu0 %v1081
    %2618 = vmatpush1.msra.mxu0 %v1080
    %2619 = vmatprep.subr.mxu0 %v1004
    %2620 = vmatpush1.msra.mxu0 %v1003
    %2621 = vmatprep.subr.mxu0 %v927
    %2622 = vmatpush1.msra.mxu0 %v926
    %2623 = vmatprep.subr.mxu0 %v850
    %2624 = vmatpush1.msra.mxu0 %v849
    %2625 = vmatprep.subr.mxu0 %v773
    %2626 = vmatpush1.msra.mxu0 %v772
    %2627 = vmatprep.subr.mxu0 %v696
    %2628 = vmatpush1.msra.mxu0 %v695
    %2629 = vmatprep.subr.mxu0 %v619
    %2630 = vmatpush1.msra.mxu0 %v618
    %2631 = vmatprep.subr.mxu0 %v542
    %2632 = vmatpush1.msra.mxu0 %v541
    %2633 = vmatprep.subr.mxu0 %v465
    %2634 = vmatpush1.msra.mxu0 %v464
    %2635 = vmatprep.subr.mxu0 %v388
    %2636 = vmatpush1.msra.mxu0 %v387
    %2637 = vmatprep.subr.mxu0 %v311
    %2638 = vmatpush1.msra.mxu0 %v310
    %2639 = vmatprep.subr.mxu0 %v234
    %2640 = vmatpush1.msra.mxu0 %v233
    %2641 = vmatprep.subr.mxu0 %v157
    %2642 = vmatpush1.msra.mxu0 %v156
    %2643 = vmatprep.subr.mxu0 %v80
    %2644 = vmatpush1.msra.mxu0 %v79
    %2645 = vmatprep.subr.mxu0 0.0
    %2646 = vmatpush2.msra.mxu0 0.0
    %2647 = vmatprep.subr.mxu0 0.0
    %2648 = vmatpush2.msra.mxu0 0.0
    %2649 = vmatprep.subr.mxu0 0.0
    %2650 = vmatpush2.msra.mxu0 0.0
    %2651 = vmatprep.subr.mxu0 0.0
    %2652 = vmatpush2.msra.mxu0 0.0
    %2653 = vmatprep.subr.mxu0 0.0
    %2654 = vmatpush2.msra.mxu0 0.0
    %2655 = vmatprep.subr.mxu0 0.0
    %2656 = vmatpush2.msra.mxu0 0.0
    %2657 = vmatprep.subr.mxu0 0.0
    %2658 = vmatpush2.msra.mxu0 0.0
    %2659 = vmatprep.subr.mxu0 0.0
    %2660 = vmatpush2.msra.mxu0 0.0
    %2661 = vmatprep.subr.mxu0 0.0
    %2662 = vmatpush2.msra.mxu0 0.0
    %2663 = vmatprep.subr.mxu0 0.0
    %2664 = vmatpush2.msra.mxu0 0.0
    %2665 = vmatprep.subr.mxu0 0.0
    %2666 = vmatpush2.msra.mxu0 0.0
    %2667 = vmatprep.subr.mxu0 0.0
    %2668 = vmatpush2.msra.mxu0 0.0
    %2669 = vmatprep.subr.mxu0 0.0
    %2670 = vmatpush2.msra.mxu0 0.0
    %2671 = vmatprep.subr.mxu0 0.0
    %2672 = vmatpush2.msra.mxu0 0.0
    %2673 = vmatprep.subr.mxu0 0.0
    %2674 = vmatpush2.msra.mxu0 0.0
    %2675 = vmatprep.subr.mxu0 0.0
    %2676 = vmatpush2.msra.mxu0 0.0
    %2677 = vmatprep.mubr.f32.mxu0 0.0
    %2678 = vmatmul.mubr.f32.gmra.mxu0 %v52
    %v2679 = vpop.f32.mrf.mxu0
    %v2680 = vadd.f32 %v1412, %v2679
    %v2681 = vpop.f32.mrf.mxu0
    %v2682 = vadd.f32 %v1416, %v2681
    %2683 = vdwg.mxu0
    %2684 = vmatprep.subr.mxu0 %v1237
    %2685 = vmatpush1.msra.mxu0 %v1236
    %2686 = vmatprep.subr.mxu0 %v1160
    %2687 = vmatpush1.msra.mxu0 %v1159
    %2688 = vmatprep.subr.mxu0 %v1083
    %2689 = vmatpush1.msra.mxu0 %v1082
    %2690 = vmatprep.subr.mxu0 %v1006
    %2691 = vmatpush1.msra.mxu0 %v1005
    %2692 = vmatprep.subr.mxu0 %v929
    %2693 = vmatpush1.msra.mxu0 %v928
    %2694 = vmatprep.subr.mxu0 %v852
    %2695 = vmatpush1.msra.mxu0 %v851
    %2696 = vmatprep.subr.mxu0 %v775
    %2697 = vmatpush1.msra.mxu0 %v774
    %2698 = vmatprep.subr.mxu0 %v698
    %2699 = vmatpush1.msra.mxu0 %v697
    %2700 = vmatprep.subr.mxu0 %v621
    %2701 = vmatpush1.msra.mxu0 %v620
    %2702 = vmatprep.subr.mxu0 %v544
    %2703 = vmatpush1.msra.mxu0 %v543
    %2704 = vmatprep.subr.mxu0 %v467
    %2705 = vmatpush1.msra.mxu0 %v466
    %2706 = vmatprep.subr.mxu0 %v390
    %2707 = vmatpush1.msra.mxu0 %v389
    %2708 = vmatprep.subr.mxu0 %v313
    %2709 = vmatpush1.msra.mxu0 %v312
    %2710 = vmatprep.subr.mxu0 %v236
    %2711 = vmatpush1.msra.mxu0 %v235
    %2712 = vmatprep.subr.mxu0 %v159
    %2713 = vmatpush1.msra.mxu0 %v158
    %2714 = vmatprep.subr.mxu0 %v82
    %2715 = vmatpush1.msra.mxu0 %v81
    %2716 = vmatprep.subr.mxu0 0.0
    %2717 = vmatpush2.msra.mxu0 0.0
    %2718 = vmatprep.subr.mxu0 0.0
    %2719 = vmatpush2.msra.mxu0 0.0
    %2720 = vmatprep.subr.mxu0 0.0
    %2721 = vmatpush2.msra.mxu0 0.0
    %2722 = vmatprep.subr.mxu0 0.0
    %2723 = vmatpush2.msra.mxu0 0.0
    %2724 = vmatprep.subr.mxu0 0.0
    %2725 = vmatpush2.msra.mxu0 0.0
    %2726 = vmatprep.subr.mxu0 0.0
    %2727 = vmatpush2.msra.mxu0 0.0
    %2728 = vmatprep.subr.mxu0 0.0
    %2729 = vmatpush2.msra.mxu0 0.0
    %2730 = vmatprep.subr.mxu0 0.0
    %2731 = vmatpush2.msra.mxu0 0.0
    %2732 = vmatprep.subr.mxu0 0.0
    %2733 = vmatpush2.msra.mxu0 0.0
    %2734 = vmatprep.subr.mxu0 0.0
    %2735 = vmatpush2.msra.mxu0 0.0
    %2736 = vmatprep.subr.mxu0 0.0
    %2737 = vmatpush2.msra.mxu0 0.0
    %2738 = vmatprep.subr.mxu0 0.0
    %2739 = vmatpush2.msra.mxu0 0.0
    %2740 = vmatprep.subr.mxu0 0.0
    %2741 = vmatpush2.msra.mxu0 0.0
    %2742 = vmatprep.subr.mxu0 0.0
    %2743 = vmatpush2.msra.mxu0 0.0
    %2744 = vmatprep.subr.mxu0 0.0
    %2745 = vmatpush2.msra.mxu0 0.0
    %2746 = vmatprep.subr.mxu0 0.0
    %2747 = vmatpush2.msra.mxu0 0.0
    %2748 = vmatprep.mubr.f32.mxu0 0.0
    %2749 = vmatmul.mubr.f32.gmra.mxu0 %v52
    %v2750 = vpop.f32.mrf.mxu0
    %v2751 = vadd.f32 %v1420, %v2750
    %v2752 = vpop.f32.mrf.mxu0
    %v2753 = vadd.f32 %v1424, %v2752
    %2754 = vdwg.mxu0
    %2755 = vmatprep.subr.mxu0 %v1239
    %2756 = vmatpush1.msra.mxu0 %v1238
    %2757 = vmatprep.subr.mxu0 %v1162
    %2758 = vmatpush1.msra.mxu0 %v1161
    %2759 = vmatprep.subr.mxu0 %v1085
    %2760 = vmatpush1.msra.mxu0 %v1084
    %2761 = vmatprep.subr.mxu0 %v1008
    %2762 = vmatpush1.msra.mxu0 %v1007
    %2763 = vmatprep.subr.mxu0 %v931
    %2764 = vmatpush1.msra.mxu0 %v930
    %2765 = vmatprep.subr.mxu0 %v854
    %2766 = vmatpush1.msra.mxu0 %v853
    %2767 = vmatprep.subr.mxu0 %v777
    %2768 = vmatpush1.msra.mxu0 %v776
    %2769 = vmatprep.subr.mxu0 %v700
    %2770 = vmatpush1.msra.mxu0 %v699
    %2771 = vmatprep.subr.mxu0 %v623
    %2772 = vmatpush1.msra.mxu0 %v622
    %2773 = vmatprep.subr.mxu0 %v546
    %2774 = vmatpush1.msra.mxu0 %v545
    %2775 = vmatprep.subr.mxu0 %v469
    %2776 = vmatpush1.msra.mxu0 %v468
    %2777 = vmatprep.subr.mxu0 %v392
    %2778 = vmatpush1.msra.mxu0 %v391
    %2779 = vmatprep.subr.mxu0 %v315
    %2780 = vmatpush1.msra.mxu0 %v314
    %2781 = vmatprep.subr.mxu0 %v238
    %2782 = vmatpush1.msra.mxu0 %v237
    %2783 = vmatprep.subr.mxu0 %v161
    %2784 = vmatpush1.msra.mxu0 %v160
    %2785 = vmatprep.subr.mxu0 %v84
    %2786 = vmatpush1.msra.mxu0 %v83
    %2787 = vmatprep.subr.mxu0 0.0
    %2788 = vmatpush2.msra.mxu0 0.0
    %2789 = vmatprep.subr.mxu0 0.0
    %2790 = vmatpush2.msra.mxu0 0.0
    %2791 = vmatprep.subr.mxu0 0.0
    %2792 = vmatpush2.msra.mxu0 0.0
    %2793 = vmatprep.subr.mxu0 0.0
    %2794 = vmatpush2.msra.mxu0 0.0
    %2795 = vmatprep.subr.mxu0 0.0
    %2796 = vmatpush2.msra.mxu0 0.0
    %2797 = vmatprep.subr.mxu0 0.0
    %2798 = vmatpush2.msra.mxu0 0.0
    %2799 = vmatprep.subr.mxu0 0.0
    %2800 = vmatpush2.msra.mxu0 0.0
    %2801 = vmatprep.subr.mxu0 0.0
    %2802 = vmatpush2.msra.mxu0 0.0
    %2803 = vmatprep.subr.mxu0 0.0
    %2804 = vmatpush2.msra.mxu0 0.0
    %2805 = vmatprep.subr.mxu0 0.0
    %2806 = vmatpush2.msra.mxu0 0.0
    %2807 = vmatprep.subr.mxu0 0.0
    %2808 = vmatpush2.msra.mxu0 0.0
    %2809 = vmatprep.subr.mxu0 0.0
    %2810 = vmatpush2.msra.mxu0 0.0
    %2811 = vmatprep.subr.mxu0 0.0
    %2812 = vmatpush2.msra.mxu0 0.0
    %2813 = vmatprep.subr.mxu0 0.0
    %2814 = vmatpush2.msra.mxu0 0.0
    %2815 = vmatprep.subr.mxu0 0.0
    %2816 = vmatpush2.msra.mxu0 0.0
    %2817 = vmatprep.subr.mxu0 0.0
    %2818 = vmatpush2.msra.mxu0 0.0
    %2819 = vmatprep.mubr.f32.mxu0 0.0
    %2820 = vmatmul.mubr.f32.gmra.mxu0 %v52
    %v2821 = vpop.f32.mrf.mxu0
    %v2822 = vadd.f32 %v1428, %v2821
    %v2823 = vpop.f32.mrf.mxu0
    %v2824 = vadd.f32 %v1432, %v2823
    %2825 = vdwg.mxu0
    %2826 = vmatprep.subr.mxu0 %v1241
    %2827 = vmatpush1.msra.mxu0 %v1240
    %2828 = vmatprep.subr.mxu0 %v1164
    %2829 = vmatpush1.msra.mxu0 %v1163
    %2830 = vmatprep.subr.mxu0 %v1087
    %2831 = vmatpush1.msra.mxu0 %v1086
    %2832 = vmatprep.subr.mxu0 %v1010
    %2833 = vmatpush1.msra.mxu0 %v1009
    %2834 = vmatprep.subr.mxu0 %v933
    %2835 = vmatpush1.msra.mxu0 %v932
    %2836 = vmatprep.subr.mxu0 %v856
    %2837 = vmatpush1.msra.mxu0 %v855
    %2838 = vmatprep.subr.mxu0 %v779
    %2839 = vmatpush1.msra.mxu0 %v778
    %2840 = vmatprep.subr.mxu0 %v702
    %2841 = vmatpush1.msra.mxu0 %v701
    %2842 = vmatprep.subr.mxu0 %v625
    %2843 = vmatpush1.msra.mxu0 %v624
    %2844 = vmatprep.subr.mxu0 %v548
    %2845 = vmatpush1.msra.mxu0 %v547
    %2846 = vmatprep.subr.mxu0 %v471
    %2847 = vmatpush1.msra.mxu0 %v470
    %2848 = vmatprep.subr.mxu0 %v394
    %2849 = vmatpush1.msra.mxu0 %v393
    %2850 = vmatprep.subr.mxu0 %v317
    %2851 = vmatpush1.msra.mxu0 %v316
    %2852 = vmatprep.subr.mxu0 %v240
    %2853 = vmatpush1.msra.mxu0 %v239
    %2854 = vmatprep.subr.mxu0 %v163
    %2855 = vmatpush1.msra.mxu0 %v162
    %2856 = vmatprep.subr.mxu0 %v86
    %2857 = vmatpush1.msra.mxu0 %v85
    %2858 = vmatprep.subr.mxu0 0.0
    %2859 = vmatpush2.msra.mxu0 0.0
    %2860 = vmatprep.subr.mxu0 0.0
    %2861 = vmatpush2.msra.mxu0 0.0
    %2862 = vmatprep.subr.mxu0 0.0
    %2863 = vmatpush2.msra.mxu0 0.0
    %2864 = vmatprep.subr.mxu0 0.0
    %2865 = vmatpush2.msra.mxu0 0.0
    %2866 = vmatprep.subr.mxu0 0.0
    %2867 = vmatpush2.msra.mxu0 0.0
    %2868 = vmatprep.subr.mxu0 0.0
    %2869 = vmatpush2.msra.mxu0 0.0
    %2870 = vmatprep.subr.mxu0 0.0
    %2871 = vmatpush2.msra.mxu0 0.0
    %2872 = vmatprep.subr.mxu0 0.0
    %2873 = vmatpush2.msra.mxu0 0.0
    %2874 = vmatprep.subr.mxu0 0.0
    %2875 = vmatpush2.msra.mxu0 0.0
    %2876 = vmatprep.subr.mxu0 0.0
    %2877 = vmatpush2.msra.mxu0 0.0
    %2878 = vmatprep.subr.mxu0 0.0
    %2879 = vmatpush2.msra.mxu0 0.0
    %2880 = vmatprep.subr.mxu0 0.0
    %2881 = vmatpush2.msra.mxu0 0.0
    %2882 = vmatprep.subr.mxu0 0.0
    %2883 = vmatpush2.msra.mxu0 0.0
    %2884 = vmatprep.subr.mxu0 0.0
    %2885 = vmatpush2.msra.mxu0 0.0
    %2886 = vmatprep.subr.mxu0 0.0
    %2887 = vmatpush2.msra.mxu0 0.0
    %2888 = vmatprep.subr.mxu0 0.0
    %2889 = vmatpush2.msra.mxu0 0.0
    %2890 = vmatprep.mubr.f32.mxu0 0.0
    %2891 = vmatmul.mubr.f32.gmra.mxu0 %v52
    %v2892 = vpop.f32.mrf.mxu0
    %v2893 = vadd.f32 %v1436, %v2892
    %v2894 = vpop.f32.mrf.mxu0
    %v2895 = vadd.f32 %v1440, %v2894
    %2896 = vdwg.mxu0
    %2897 = vmatprep.subr.mxu0 %v1243
    %2898 = vmatpush1.msra.mxu0 %v1242
    %2899 = vmatprep.subr.mxu0 %v1166
    %2900 = vmatpush1.msra.mxu0 %v1165
    %2901 = vmatprep.subr.mxu0 %v1089
    %2902 = vmatpush1.msra.mxu0 %v1088
    %2903 = vmatprep.subr.mxu0 %v1012
    %2904 = vmatpush1.msra.mxu0 %v1011
    %2905 = vmatprep.subr.mxu0 %v935
    %2906 = vmatpush1.msra.mxu0 %v934
    %2907 = vmatprep.subr.mxu0 %v858
    %2908 = vmatpush1.msra.mxu0 %v857
    %2909 = vmatprep.subr.mxu0 %v781
    %2910 = vmatpush1.msra.mxu0 %v780
    %2911 = vmatprep.subr.mxu0 %v704
    %2912 = vmatpush1.msra.mxu0 %v703
    %2913 = vmatprep.subr.mxu0 %v627
    %2914 = vmatpush1.msra.mxu0 %v626
    %2915 = vmatprep.subr.mxu0 %v550
    %2916 = vmatpush1.msra.mxu0 %v549
    %2917 = vmatprep.subr.mxu0 %v473
    %2918 = vmatpush1.msra.mxu0 %v472
    %2919 = vmatprep.subr.mxu0 %v396
    %2920 = vmatpush1.msra.mxu0 %v395
    %2921 = vmatprep.subr.mxu0 %v319
    %2922 = vmatpush1.msra.mxu0 %v318
    %2923 = vmatprep.subr.mxu0 %v242
    %2924 = vmatpush1.msra.mxu0 %v241
    %2925 = vmatprep.subr.mxu0 %v165
    %2926 = vmatpush1.msra.mxu0 %v164
    %2927 = vmatprep.subr.mxu0 %v88
    %2928 = vmatpush1.msra.mxu0 %v87
    %2929 = vmatprep.subr.mxu0 0.0
    %2930 = vmatpush2.msra.mxu0 0.0
    %2931 = vmatprep.subr.mxu0 0.0
    %2932 = vmatpush2.msra.mxu0 0.0
    %2933 = vmatprep.subr.mxu0 0.0
    %2934 = vmatpush2.msra.mxu0 0.0
    %2935 = vmatprep.subr.mxu0 0.0
    %2936 = vmatpush2.msra.mxu0 0.0
    %2937 = vmatprep.subr.mxu0 0.0
    %2938 = vmatpush2.msra.mxu0 0.0
    %2939 = vmatprep.subr.mxu0 0.0
    %2940 = vmatpush2.msra.mxu0 0.0
    %2941 = vmatprep.subr.mxu0 0.0
    %2942 = vmatpush2.msra.mxu0 0.0
    %2943 = vmatprep.subr.mxu0 0.0
    %2944 = vmatpush2.msra.mxu0 0.0
    %2945 = vmatprep.subr.mxu0 0.0
    %2946 = vmatpush2.msra.mxu0 0.0
    %2947 = vmatprep.subr.mxu0 0.0
    %2948 = vmatpush2.msra.mxu0 0.0
    %2949 = vmatprep.subr.mxu0 0.0
    %2950 = vmatpush2.msra.mxu0 0.0
    %2951 = vmatprep.subr.mxu0 0.0
    %2952 = vmatpush2.msra.mxu0 0.0
    %2953 = vmatprep.subr.mxu0 0.0
    %2954 = vmatpush2.msra.mxu0 0.0
    %2955 = vmatprep.subr.mxu0 0.0
    %2956 = vmatpush2.msra.mxu0 0.0
    %2957 = vmatprep.subr.mxu0 0.0
    %2958 = vmatpush2.msra.mxu0 0.0
    %2959 = vmatprep.subr.mxu0 0.0
    %2960 = vmatpush2.msra.mxu0 0.0
    %2961 = vmatprep.mubr.f32.mxu0 0.0
    %2962 = vmatmul.mubr.f32.gmra.mxu0 %v52
    %v2963 = vpop.f32.mrf.mxu0
    %v2964 = vadd.f32 %v1444, %v2963
    %v2965 = vpop.f32.mrf.mxu0
    %v2966 = vadd.f32 %v1448, %v2965
    %2967 = vdwg.mxu0
    %2968 = vmatprep.subr.mxu0 %v1245
    %2969 = vmatpush1.msra.mxu0 %v1244
    %2970 = vmatprep.subr.mxu0 %v1168
    %2971 = vmatpush1.msra.mxu0 %v1167
    %2972 = vmatprep.subr.mxu0 %v1091
    %2973 = vmatpush1.msra.mxu0 %v1090
    %2974 = vmatprep.subr.mxu0 %v1014
    %2975 = vmatpush1.msra.mxu0 %v1013
    %2976 = vmatprep.subr.mxu0 %v937
    %2977 = vmatpush1.msra.mxu0 %v936
    %2978 = vmatprep.subr.mxu0 %v860
    %2979 = vmatpush1.msra.mxu0 %v859
    %2980 = vmatprep.subr.mxu0 %v783
    %2981 = vmatpush1.msra.mxu0 %v782
    %2982 = vmatprep.subr.mxu0 %v706
    %2983 = vmatpush1.msra.mxu0 %v705
    %2984 = vmatprep.subr.mxu0 %v629
    %2985 = vmatpush1.msra.mxu0 %v628
    %2986 = vmatprep.subr.mxu0 %v552
    %2987 = vmatpush1.msra.mxu0 %v551
    %2988 = vmatprep.subr.mxu0 %v475
    %2989 = vmatpush1.msra.mxu0 %v474
    %2990 = vmatprep.subr.mxu0 %v398
    %2991 = vmatpush1.msra.mxu0 %v397
    %2992 = vmatprep.subr.mxu0 %v321
    %2993 = vmatpush1.msra.mxu0 %v320
    %2994 = vmatprep.subr.mxu0 %v244
    %2995 = vmatpush1.msra.mxu0 %v243
    %2996 = vmatprep.subr.mxu0 %v167
    %2997 = vmatpush1.msra.mxu0 %v166
    %2998 = vmatprep.subr.mxu0 %v90
    %2999 = vmatpush1.msra.mxu0 %v89
    %3000 = vmatprep.subr.mxu0 0.0
    %3001 = vmatpush2.msra.mxu0 0.0
    %3002 = vmatprep.subr.mxu0 0.0
    %3003 = vmatpush2.msra.mxu0 0.0
    %3004 = vmatprep.subr.mxu0 0.0
    %3005 = vmatpush2.msra.mxu0 0.0
    %3006 = vmatprep.subr.mxu0 0.0
    %3007 = vmatpush2.msra.mxu0 0.0
    %3008 = vmatprep.subr.mxu0 0.0
    %3009 = vmatpush2.msra.mxu0 0.0
    %3010 = vmatprep.subr.mxu0 0.0
    %3011 = vmatpush2.msra.mxu0 0.0
    %3012 = vmatprep.subr.mxu0 0.0
    %3013 = vmatpush2.msra.mxu0 0.0
    %3014 = vmatprep.subr.mxu0 0.0
    %3015 = vmatpush2.msra.mxu0 0.0
    %3016 = vmatprep.subr.mxu0 0.0
    %3017 = vmatpush2.msra.mxu0 0.0
    %3018 = vmatprep.subr.mxu0 0.0
    %3019 = vmatpush2.msra.mxu0 0.0
    %3020 = vmatprep.subr.mxu0 0.0
    %3021 = vmatpush2.msra.mxu0 0.0
    %3022 = vmatprep.subr.mxu0 0.0
    %3023 = vmatpush2.msra.mxu0 0.0
    %3024 = vmatprep.subr.mxu0 0.0
    %3025 = vmatpush2.msra.mxu0 0.0
    %3026 = vmatprep.subr.mxu0 0.0
    %3027 = vmatpush2.msra.mxu0 0.0
    %3028 = vmatprep.subr.mxu0 0.0
    %3029 = vmatpush2.msra.mxu0 0.0
    %3030 = vmatprep.subr.mxu0 0.0
    %3031 = vmatpush2.msra.mxu0 0.0
    %3032 = vmatprep.mubr.f32.mxu0 0.0
    %3033 = vmatmul.mubr.f32.gmra.mxu0 %v52
    %v3034 = vpop.f32.mrf.mxu0
    %v3035 = vadd.f32 %v1452, %v3034
    %v3036 = vpop.f32.mrf.mxu0
    %v3037 = vadd.f32 %v1456, %v3036
    %3038 = vdwg.mxu0
    %3039 = vmatprep.subr.mxu0 %v1247
    %3040 = vmatpush1.msra.mxu0 %v1246
    %3041 = vmatprep.subr.mxu0 %v1170
    %3042 = vmatpush1.msra.mxu0 %v1169
    %3043 = vmatprep.subr.mxu0 %v1093
    %3044 = vmatpush1.msra.mxu0 %v1092
    %3045 = vmatprep.subr.mxu0 %v1016
    %3046 = vmatpush1.msra.mxu0 %v1015
    %3047 = vmatprep.subr.mxu0 %v939
    %3048 = vmatpush1.msra.mxu0 %v938
    %3049 = vmatprep.subr.mxu0 %v862
    %3050 = vmatpush1.msra.mxu0 %v861
    %3051 = vmatprep.subr.mxu0 %v785
    %3052 = vmatpush1.msra.mxu0 %v784
    %3053 = vmatprep.subr.mxu0 %v708
    %3054 = vmatpush1.msra.mxu0 %v707
    %3055 = vmatprep.subr.mxu0 %v631
    %3056 = vmatpush1.msra.mxu0 %v630
    %3057 = vmatprep.subr.mxu0 %v554
    %3058 = vmatpush1.msra.mxu0 %v553
    %3059 = vmatprep.subr.mxu0 %v477
    %3060 = vmatpush1.msra.mxu0 %v476
    %3061 = vmatprep.subr.mxu0 %v400
    %3062 = vmatpush1.msra.mxu0 %v399
    %3063 = vmatprep.subr.mxu0 %v323
    %3064 = vmatpush1.msra.mxu0 %v322
    %3065 = vmatprep.subr.mxu0 %v246
    %3066 = vmatpush1.msra.mxu0 %v245
    %3067 = vmatprep.subr.mxu0 %v169
    %3068 = vmatpush1.msra.mxu0 %v168
    %3069 = vmatprep.subr.mxu0 %v92
    %3070 = vmatpush1.msra.mxu0 %v91
    %3071 = vmatprep.subr.mxu0 0.0
    %3072 = vmatpush2.msra.mxu0 0.0
    %3073 = vmatprep.subr.mxu0 0.0
    %3074 = vmatpush2.msra.mxu0 0.0
    %3075 = vmatprep.subr.mxu0 0.0
    %3076 = vmatpush2.msra.mxu0 0.0
    %3077 = vmatprep.subr.mxu0 0.0
    %3078 = vmatpush2.msra.mxu0 0.0
    %3079 = vmatprep.subr.mxu0 0.0
    %3080 = vmatpush2.msra.mxu0 0.0
    %3081 = vmatprep.subr.mxu0 0.0
    %3082 = vmatpush2.msra.mxu0 0.0
    %3083 = vmatprep.subr.mxu0 0.0
    %3084 = vmatpush2.msra.mxu0 0.0
    %3085 = vmatprep.subr.mxu0 0.0
    %3086 = vmatpush2.msra.mxu0 0.0
    %3087 = vmatprep.subr.mxu0 0.0
    %3088 = vmatpush2.msra.mxu0 0.0
    %3089 = vmatprep.subr.mxu0 0.0
    %3090 = vmatpush2.msra.mxu0 0.0
    %3091 = vmatprep.subr.mxu0 0.0
    %3092 = vmatpush2.msra.mxu0 0.0
    %3093 = vmatprep.subr.mxu0 0.0
    %3094 = vmatpush2.msra.mxu0 0.0
    %3095 = vmatprep.subr.mxu0 0.0
    %3096 = vmatpush2.msra.mxu0 0.0
    %3097 = vmatprep.subr.mxu0 0.0
    %3098 = vmatpush2.msra.mxu0 0.0
    %3099 = vmatprep.subr.mxu0 0.0
    %3100 = vmatpush2.msra.mxu0 0.0
    %3101 = vmatprep.subr.mxu0 0.0
    %3102 = vmatpush2.msra.mxu0 0.0
    %3103 = vmatprep.mubr.f32.mxu0 0.0
    %3104 = vmatmul.mubr.f32.gmra.mxu0 %v52
    %v3105 = vpop.f32.mrf.mxu0
    %v3106 = vadd.f32 %v1460, %v3105
    %v3107 = vpop.f32.mrf.mxu0
    %v3108 = vadd.f32 %v1464, %v3107
    %3109 = vdwg.mxu0
    %3110 = vmatprep.subr.mxu0 %v1249
    %3111 = vmatpush1.msra.mxu0 %v1248
    %3112 = vmatprep.subr.mxu0 %v1172
    %3113 = vmatpush1.msra.mxu0 %v1171
    %3114 = vmatprep.subr.mxu0 %v1095
    %3115 = vmatpush1.msra.mxu0 %v1094
    %3116 = vmatprep.subr.mxu0 %v1018
    %3117 = vmatpush1.msra.mxu0 %v1017
    %3118 = vmatprep.subr.mxu0 %v941
    %3119 = vmatpush1.msra.mxu0 %v940
    %3120 = vmatprep.subr.mxu0 %v864
    %3121 = vmatpush1.msra.mxu0 %v863
    %3122 = vmatprep.subr.mxu0 %v787
    %3123 = vmatpush1.msra.mxu0 %v786
    %3124 = vmatprep.subr.mxu0 %v710
    %3125 = vmatpush1.msra.mxu0 %v709
    %3126 = vmatprep.subr.mxu0 %v633
    %3127 = vmatpush1.msra.mxu0 %v632
    %3128 = vmatprep.subr.mxu0 %v556
    %3129 = vmatpush1.msra.mxu0 %v555
    %3130 = vmatprep.subr.mxu0 %v479
    %3131 = vmatpush1.msra.mxu0 %v478
    %3132 = vmatprep.subr.mxu0 %v402
    %3133 = vmatpush1.msra.mxu0 %v401
    %3134 = vmatprep.subr.mxu0 %v325
    %3135 = vmatpush1.msra.mxu0 %v324
    %3136 = vmatprep.subr.mxu0 %v248
    %3137 = vmatpush1.msra.mxu0 %v247
    %3138 = vmatprep.subr.mxu0 %v171
    %3139 = vmatpush1.msra.mxu0 %v170
    %3140 = vmatprep.subr.mxu0 %v94
    %3141 = vmatpush1.msra.mxu0 %v93
    %3142 = vmatprep.subr.mxu0 0.0
    %3143 = vmatpush2.msra.mxu0 0.0
    %3144 = vmatprep.subr.mxu0 0.0
    %3145 = vmatpush2.msra.mxu0 0.0
    %3146 = vmatprep.subr.mxu0 0.0
    %3147 = vmatpush2.msra.mxu0 0.0
    %3148 = vmatprep.subr.mxu0 0.0
    %3149 = vmatpush2.msra.mxu0 0.0
    %3150 = vmatprep.subr.mxu0 0.0
    %3151 = vmatpush2.msra.mxu0 0.0
    %3152 = vmatprep.subr.mxu0 0.0
    %3153 = vmatpush2.msra.mxu0 0.0
    %3154 = vmatprep.subr.mxu0 0.0
    %3155 = vmatpush2.msra.mxu0 0.0
    %3156 = vmatprep.subr.mxu0 0.0
    %3157 = vmatpush2.msra.mxu0 0.0
    %3158 = vmatprep.subr.mxu0 0.0
    %3159 = vmatpush2.msra.mxu0 0.0
    %3160 = vmatprep.subr.mxu0 0.0
    %3161 = vmatpush2.msra.mxu0 0.0
    %3162 = vmatprep.subr.mxu0 0.0
    %3163 = vmatpush2.msra.mxu0 0.0
    %3164 = vmatprep.subr.mxu0 0.0
    %3165 = vmatpush2.msra.mxu0 0.0
    %3166 = vmatprep.subr.mxu0 0.0
    %3167 = vmatpush2.msra.mxu0 0.0
    %3168 = vmatprep.subr.mxu0 0.0
    %3169 = vmatpush2.msra.mxu0 0.0
    %3170 = vmatprep.subr.mxu0 0.0
    %3171 = vmatpush2.msra.mxu0 0.0
    %3172 = vmatprep.subr.mxu0 0.0
    %3173 = vmatpush2.msra.mxu0 0.0
    %3174 = vmatprep.mubr.f32.mxu0 0.0
    %3175 = vmatmul.mubr.f32.gmra.mxu0 %v52
    %v3176 = vpop.f32.mrf.mxu0
    %v3177 = vadd.f32 %v1468, %v3176
    %v3178 = vpop.f32.mrf.mxu0
    %v3179 = vadd.f32 %v1472, %v3178
    %3180 = vdwg.mxu0
    %3181 = vmatprep.subr.mxu0 %v1251
    %3182 = vmatpush1.msra.mxu0 %v1250
    %3183 = vmatprep.subr.mxu0 %v1174
    %3184 = vmatpush1.msra.mxu0 %v1173
    %3185 = vmatprep.subr.mxu0 %v1097
    %3186 = vmatpush1.msra.mxu0 %v1096
    %3187 = vmatprep.subr.mxu0 %v1020
    %3188 = vmatpush1.msra.mxu0 %v1019
    %3189 = vmatprep.subr.mxu0 %v943
    %3190 = vmatpush1.msra.mxu0 %v942
    %3191 = vmatprep.subr.mxu0 %v866
    %3192 = vmatpush1.msra.mxu0 %v865
    %3193 = vmatprep.subr.mxu0 %v789
    %3194 = vmatpush1.msra.mxu0 %v788
    %3195 = vmatprep.subr.mxu0 %v712
    %3196 = vmatpush1.msra.mxu0 %v711
    %3197 = vmatprep.subr.mxu0 %v635
    %3198 = vmatpush1.msra.mxu0 %v634
    %3199 = vmatprep.subr.mxu0 %v558
    %3200 = vmatpush1.msra.mxu0 %v557
    %3201 = vmatprep.subr.mxu0 %v481
    %3202 = vmatpush1.msra.mxu0 %v480
    %3203 = vmatprep.subr.mxu0 %v404
    %3204 = vmatpush1.msra.mxu0 %v403
    %3205 = vmatprep.subr.mxu0 %v327
    %3206 = vmatpush1.msra.mxu0 %v326
    %3207 = vmatprep.subr.mxu0 %v250
    %3208 = vmatpush1.msra.mxu0 %v249
    %3209 = vmatprep.subr.mxu0 %v173
    %3210 = vmatpush1.msra.mxu0 %v172
    %3211 = vmatprep.subr.mxu0 %v96
    %3212 = vmatpush1.msra.mxu0 %v95
    %3213 = vmatprep.subr.mxu0 0.0
    %3214 = vmatpush2.msra.mxu0 0.0
    %3215 = vmatprep.subr.mxu0 0.0
    %3216 = vmatpush2.msra.mxu0 0.0
    %3217 = vmatprep.subr.mxu0 0.0
    %3218 = vmatpush2.msra.mxu0 0.0
    %3219 = vmatprep.subr.mxu0 0.0
    %3220 = vmatpush2.msra.mxu0 0.0
    %3221 = vmatprep.subr.mxu0 0.0
    %3222 = vmatpush2.msra.mxu0 0.0
    %3223 = vmatprep.subr.mxu0 0.0
    %3224 = vmatpush2.msra.mxu0 0.0
    %3225 = vmatprep.subr.mxu0 0.0
    %3226 = vmatpush2.msra.mxu0 0.0
    %3227 = vmatprep.subr.mxu0 0.0
    %3228 = vmatpush2.msra.mxu0 0.0
    %3229 = vmatprep.subr.mxu0 0.0
    %3230 = vmatpush2.msra.mxu0 0.0
    %3231 = vmatprep.subr.mxu0 0.0
    %3232 = vmatpush2.msra.mxu0 0.0
    %3233 = vmatprep.subr.mxu0 0.0
    %3234 = vmatpush2.msra.mxu0 0.0
    %3235 = vmatprep.subr.mxu0 0.0
    %3236 = vmatpush2.msra.mxu0 0.0
    %3237 = vmatprep.subr.mxu0 0.0
    %3238 = vmatpush2.msra.mxu0 0.0
    %3239 = vmatprep.subr.mxu0 0.0
    %3240 = vmatpush2.msra.mxu0 0.0
    %3241 = vmatprep.subr.mxu0 0.0
    %3242 = vmatpush2.msra.mxu0 0.0
    %3243 = vmatprep.subr.mxu0 0.0
    %3244 = vmatpush2.msra.mxu0 0.0
    %3245 = vmatprep.mubr.f32.mxu0 0.0
    %3246 = vmatmul.mubr.f32.gmra.mxu0 %v52
    %v3247 = vpop.f32.mrf.mxu0
    %v3248 = vadd.f32 %v1476, %v3247
    %v3249 = vpop.f32.mrf.mxu0
    %v3250 = vadd.f32 %v1480, %v3249
    %3251 = vdwg.mxu0
    %3252 = vmatprep.subr.mxu0 %v1253
    %3253 = vmatpush1.msra.mxu0 %v1252
    %3254 = vmatprep.subr.mxu0 %v1176
    %3255 = vmatpush1.msra.mxu0 %v1175
    %3256 = vmatprep.subr.mxu0 %v1099
    %3257 = vmatpush1.msra.mxu0 %v1098
    %3258 = vmatprep.subr.mxu0 %v1022
    %3259 = vmatpush1.msra.mxu0 %v1021
    %3260 = vmatprep.subr.mxu0 %v945
    %3261 = vmatpush1.msra.mxu0 %v944
    %3262 = vmatprep.subr.mxu0 %v868
    %3263 = vmatpush1.msra.mxu0 %v867
    %3264 = vmatprep.subr.mxu0 %v791
    %3265 = vmatpush1.msra.mxu0 %v790
    %3266 = vmatprep.subr.mxu0 %v714
    %3267 = vmatpush1.msra.mxu0 %v713
    %3268 = vmatprep.subr.mxu0 %v637
    %3269 = vmatpush1.msra.mxu0 %v636
    %3270 = vmatprep.subr.mxu0 %v560
    %3271 = vmatpush1.msra.mxu0 %v559
    %3272 = vmatprep.subr.mxu0 %v483
    %3273 = vmatpush1.msra.mxu0 %v482
    %3274 = vmatprep.subr.mxu0 %v406
    %3275 = vmatpush1.msra.mxu0 %v405
    %3276 = vmatprep.subr.mxu0 %v329
    %3277 = vmatpush1.msra.mxu0 %v328
    %3278 = vmatprep.subr.mxu0 %v252
    %3279 = vmatpush1.msra.mxu0 %v251
    %3280 = vmatprep.subr.mxu0 %v175
    %3281 = vmatpush1.msra.mxu0 %v174
    %3282 = vmatprep.subr.mxu0 %v98
    %3283 = vmatpush1.msra.mxu0 %v97
    %3284 = vmatprep.subr.mxu0 0.0
    %3285 = vmatpush2.msra.mxu0 0.0
    %3286 = vmatprep.subr.mxu0 0.0
    %3287 = vmatpush2.msra.mxu0 0.0
    %3288 = vmatprep.subr.mxu0 0.0
    %3289 = vmatpush2.msra.mxu0 0.0
    %3290 = vmatprep.subr.mxu0 0.0
    %3291 = vmatpush2.msra.mxu0 0.0
    %3292 = vmatprep.subr.mxu0 0.0
    %3293 = vmatpush2.msra.mxu0 0.0
    %3294 = vmatprep.subr.mxu0 0.0
    %3295 = vmatpush2.msra.mxu0 0.0
    %3296 = vmatprep.subr.mxu0 0.0
    %3297 = vmatpush2.msra.mxu0 0.0
    %3298 = vmatprep.subr.mxu0 0.0
    %3299 = vmatpush2.msra.mxu0 0.0
    %3300 = vmatprep.subr.mxu0 0.0
    %3301 = vmatpush2.msra.mxu0 0.0
    %3302 = vmatprep.subr.mxu0 0.0
    %3303 = vmatpush2.msra.mxu0 0.0
    %3304 = vmatprep.subr.mxu0 0.0
    %3305 = vmatpush2.msra.mxu0 0.0
    %3306 = vmatprep.subr.mxu0 0.0
    %3307 = vmatpush2.msra.mxu0 0.0
    %3308 = vmatprep.subr.mxu0 0.0
    %3309 = vmatpush2.msra.mxu0 0.0
    %3310 = vmatprep.subr.mxu0 0.0
    %3311 = vmatpush2.msra.mxu0 0.0
    %3312 = vmatprep.subr.mxu0 0.0
    %3313 = vmatpush2.msra.mxu0 0.0
    %3314 = vmatprep.subr.mxu0 0.0
    %3315 = vmatpush2.msra.mxu0 0.0
    %3316 = vmatprep.mubr.f32.mxu0 0.0
    %3317 = vmatmul.mubr.f32.gmra.mxu0 %v52
    %v3318 = vpop.f32.mrf.mxu0
    %v3319 = vadd.f32 %v1484, %v3318
    %v3320 = vpop.f32.mrf.mxu0
    %v3321 = vadd.f32 %v1488, %v3320
    %3322 = vdwg.mxu0
    %3323 = vmatprep.subr.mxu0 %v1255
    %3324 = vmatpush1.msra.mxu0 %v1254
    %3325 = vmatprep.subr.mxu0 %v1178
    %3326 = vmatpush1.msra.mxu0 %v1177
    %3327 = vmatprep.subr.mxu0 %v1101
    %3328 = vmatpush1.msra.mxu0 %v1100
    %3329 = vmatprep.subr.mxu0 %v1024
    %3330 = vmatpush1.msra.mxu0 %v1023
    %3331 = vmatprep.subr.mxu0 %v947
    %3332 = vmatpush1.msra.mxu0 %v946
    %3333 = vmatprep.subr.mxu0 %v870
    %3334 = vmatpush1.msra.mxu0 %v869
    %3335 = vmatprep.subr.mxu0 %v793
    %3336 = vmatpush1.msra.mxu0 %v792
    %3337 = vmatprep.subr.mxu0 %v716
    %3338 = vmatpush1.msra.mxu0 %v715
    %3339 = vmatprep.subr.mxu0 %v639
    %3340 = vmatpush1.msra.mxu0 %v638
    %3341 = vmatprep.subr.mxu0 %v562
    %3342 = vmatpush1.msra.mxu0 %v561
    %3343 = vmatprep.subr.mxu0 %v485
    %3344 = vmatpush1.msra.mxu0 %v484
    %3345 = vmatprep.subr.mxu0 %v408
    %3346 = vmatpush1.msra.mxu0 %v407
    %3347 = vmatprep.subr.mxu0 %v331
    %3348 = vmatpush1.msra.mxu0 %v330
    %3349 = vmatprep.subr.mxu0 %v254
    %3350 = vmatpush1.msra.mxu0 %v253
    %3351 = vmatprep.subr.mxu0 %v177
    %3352 = vmatpush1.msra.mxu0 %v176
    %3353 = vmatprep.subr.mxu0 %v100
    %3354 = vmatpush1.msra.mxu0 %v99
    %3355 = vmatprep.subr.mxu0 0.0
    %3356 = vmatpush2.msra.mxu0 0.0
    %3357 = vmatprep.subr.mxu0 0.0
    %3358 = vmatpush2.msra.mxu0 0.0
    %3359 = vmatprep.subr.mxu0 0.0
    %3360 = vmatpush2.msra.mxu0 0.0
    %3361 = vmatprep.subr.mxu0 0.0
    %3362 = vmatpush2.msra.mxu0 0.0
    %3363 = vmatprep.subr.mxu0 0.0
    %3364 = vmatpush2.msra.mxu0 0.0
    %3365 = vmatprep.subr.mxu0 0.0
    %3366 = vmatpush2.msra.mxu0 0.0
    %3367 = vmatprep.subr.mxu0 0.0
    %3368 = vmatpush2.msra.mxu0 0.0
    %3369 = vmatprep.subr.mxu0 0.0
    %3370 = vmatpush2.msra.mxu0 0.0
    %3371 = vmatprep.subr.mxu0 0.0
    %3372 = vmatpush2.msra.mxu0 0.0
    %3373 = vmatprep.subr.mxu0 0.0
    %3374 = vmatpush2.msra.mxu0 0.0
    %3375 = vmatprep.subr.mxu0 0.0
    %3376 = vmatpush2.msra.mxu0 0.0
    %3377 = vmatprep.subr.mxu0 0.0
    %3378 = vmatpush2.msra.mxu0 0.0
    %3379 = vmatprep.subr.mxu0 0.0
    %3380 = vmatpush2.msra.mxu0 0.0
    %3381 = vmatprep.subr.mxu0 0.0
    %3382 = vmatpush2.msra.mxu0 0.0
    %3383 = vmatprep.subr.mxu0 0.0
    %3384 = vmatpush2.msra.mxu0 0.0
    %3385 = vmatprep.subr.mxu0 0.0
    %3386 = vmatpush2.msra.mxu0 0.0
    %3387 = vmatprep.mubr.f32.mxu0 0.0
    %3388 = vmatmul.mubr.f32.gmra.mxu0 %v52
    %v3389 = vpop.f32.mrf.mxu0
    %v3390 = vadd.f32 %v1492, %v3389
    %v3391 = vpop.f32.mrf.mxu0
    %v3392 = vadd.f32 %v1496, %v3391
    %3393 = vdwg.mxu0
    %3394 = vmatprep.subr.mxu0 %v1257
    %3395 = vmatpush1.msra.mxu0 %v1256
    %3396 = vmatprep.subr.mxu0 %v1180
    %3397 = vmatpush1.msra.mxu0 %v1179
    %3398 = vmatprep.subr.mxu0 %v1103
    %3399 = vmatpush1.msra.mxu0 %v1102
    %3400 = vmatprep.subr.mxu0 %v1026
    %3401 = vmatpush1.msra.mxu0 %v1025
    %3402 = vmatprep.subr.mxu0 %v949
    %3403 = vmatpush1.msra.mxu0 %v948
    %3404 = vmatprep.subr.mxu0 %v872
    %3405 = vmatpush1.msra.mxu0 %v871
    %3406 = vmatprep.subr.mxu0 %v795
    %3407 = vmatpush1.msra.mxu0 %v794
    %3408 = vmatprep.subr.mxu0 %v718
    %3409 = vmatpush1.msra.mxu0 %v717
    %3410 = vmatprep.subr.mxu0 %v641
    %3411 = vmatpush1.msra.mxu0 %v640
    %3412 = vmatprep.subr.mxu0 %v564
    %3413 = vmatpush1.msra.mxu0 %v563
    %3414 = vmatprep.subr.mxu0 %v487
    %3415 = vmatpush1.msra.mxu0 %v486
    %3416 = vmatprep.subr.mxu0 %v410
    %3417 = vmatpush1.msra.mxu0 %v409
    %3418 = vmatprep.subr.mxu0 %v333
    %3419 = vmatpush1.msra.mxu0 %v332
    %3420 = vmatprep.subr.mxu0 %v256
    %3421 = vmatpush1.msra.mxu0 %v255
    %3422 = vmatprep.subr.mxu0 %v179
    %3423 = vmatpush1.msra.mxu0 %v178
    %3424 = vmatprep.subr.mxu0 %v102
    %3425 = vmatpush1.msra.mxu0 %v101
    %3426 = vmatprep.subr.mxu0 0.0
    %3427 = vmatpush2.msra.mxu0 0.0
    %3428 = vmatprep.subr.mxu0 0.0
    %3429 = vmatpush2.msra.mxu0 0.0
    %3430 = vmatprep.subr.mxu0 0.0
    %3431 = vmatpush2.msra.mxu0 0.0
    %3432 = vmatprep.subr.mxu0 0.0
    %3433 = vmatpush2.msra.mxu0 0.0
    %3434 = vmatprep.subr.mxu0 0.0
    %3435 = vmatpush2.msra.mxu0 0.0
    %3436 = vmatprep.subr.mxu0 0.0
    %3437 = vmatpush2.msra.mxu0 0.0
    %3438 = vmatprep.subr.mxu0 0.0
    %3439 = vmatpush2.msra.mxu0 0.0
    %3440 = vmatprep.subr.mxu0 0.0
    %3441 = vmatpush2.msra.mxu0 0.0
    %3442 = vmatprep.subr.mxu0 0.0
    %3443 = vmatpush2.msra.mxu0 0.0
    %3444 = vmatprep.subr.mxu0 0.0
    %3445 = vmatpush2.msra.mxu0 0.0
    %3446 = vmatprep.subr.mxu0 0.0
    %3447 = vmatpush2.msra.mxu0 0.0
    %3448 = vmatprep.subr.mxu0 0.0
    %3449 = vmatpush2.msra.mxu0 0.0
    %3450 = vmatprep.subr.mxu0 0.0
    %3451 = vmatpush2.msra.mxu0 0.0
    %3452 = vmatprep.subr.mxu0 0.0
    %3453 = vmatpush2.msra.mxu0 0.0
    %3454 = vmatprep.subr.mxu0 0.0
    %3455 = vmatpush2.msra.mxu0 0.0
    %3456 = vmatprep.subr.mxu0 0.0
    %3457 = vmatpush2.msra.mxu0 0.0
    %3458 = vmatprep.mubr.f32.mxu0 0.0
    %3459 = vmatmul.mubr.f32.gmra.mxu0 %v52
    %v3460 = vpop.f32.mrf.mxu0
    %v3461 = vadd.f32 %v1500, %v3460
    %v3462 = vpop.f32.mrf.mxu0
    %v3463 = vadd.f32 %v1504, %v3462
    %3464 = vdwg.mxu0
    %3465 = vmatprep.subr.mxu0 %v1259
    %3466 = vmatpush1.msra.mxu0 %v1258
    %3467 = vmatprep.subr.mxu0 %v1182
    %3468 = vmatpush1.msra.mxu0 %v1181
    %3469 = vmatprep.subr.mxu0 %v1105
    %3470 = vmatpush1.msra.mxu0 %v1104
    %3471 = vmatprep.subr.mxu0 %v1028
    %3472 = vmatpush1.msra.mxu0 %v1027
    %3473 = vmatprep.subr.mxu0 %v951
    %3474 = vmatpush1.msra.mxu0 %v950
    %3475 = vmatprep.subr.mxu0 %v874
    %3476 = vmatpush1.msra.mxu0 %v873
    %3477 = vmatprep.subr.mxu0 %v797
    %3478 = vmatpush1.msra.mxu0 %v796
    %3479 = vmatprep.subr.mxu0 %v720
    %3480 = vmatpush1.msra.mxu0 %v719
    %3481 = vmatprep.subr.mxu0 %v643
    %3482 = vmatpush1.msra.mxu0 %v642
    %3483 = vmatprep.subr.mxu0 %v566
    %3484 = vmatpush1.msra.mxu0 %v565
    %3485 = vmatprep.subr.mxu0 %v489
    %3486 = vmatpush1.msra.mxu0 %v488
    %3487 = vmatprep.subr.mxu0 %v412
    %3488 = vmatpush1.msra.mxu0 %v411
    %3489 = vmatprep.subr.mxu0 %v335
    %3490 = vmatpush1.msra.mxu0 %v334
    %3491 = vmatprep.subr.mxu0 %v258
    %3492 = vmatpush1.msra.mxu0 %v257
    %3493 = vmatprep.subr.mxu0 %v181
    %3494 = vmatpush1.msra.mxu0 %v180
    %3495 = vmatprep.subr.mxu0 %v104
    %3496 = vmatpush1.msra.mxu0 %v103
    %3497 = vmatprep.subr.mxu0 0.0
    %3498 = vmatpush2.msra.mxu0 0.0
    %3499 = vmatprep.subr.mxu0 0.0
    %3500 = vmatpush2.msra.mxu0 0.0
    %3501 = vmatprep.subr.mxu0 0.0
    %3502 = vmatpush2.msra.mxu0 0.0
    %3503 = vmatprep.subr.mxu0 0.0
    %3504 = vmatpush2.msra.mxu0 0.0
    %3505 = vmatprep.subr.mxu0 0.0
    %3506 = vmatpush2.msra.mxu0 0.0
    %3507 = vmatprep.subr.mxu0 0.0
    %3508 = vmatpush2.msra.mxu0 0.0
    %3509 = vmatprep.subr.mxu0 0.0
    %3510 = vmatpush2.msra.mxu0 0.0
    %3511 = vmatprep.subr.mxu0 0.0
    %3512 = vmatpush2.msra.mxu0 0.0
    %3513 = vmatprep.subr.mxu0 0.0
    %3514 = vmatpush2.msra.mxu0 0.0
    %3515 = vmatprep.subr.mxu0 0.0
    %3516 = vmatpush2.msra.mxu0 0.0
    %3517 = vmatprep.subr.mxu0 0.0
    %3518 = vmatpush2.msra.mxu0 0.0
    %3519 = vmatprep.subr.mxu0 0.0
    %3520 = vmatpush2.msra.mxu0 0.0
    %3521 = vmatprep.subr.mxu0 0.0
    %3522 = vmatpush2.msra.mxu0 0.0
    %3523 = vmatprep.subr.mxu0 0.0
    %3524 = vmatpush2.msra.mxu0 0.0
    %3525 = vmatprep.subr.mxu0 0.0
    %3526 = vmatpush2.msra.mxu0 0.0
    %3527 = vmatprep.subr.mxu0 0.0
    %3528 = vmatpush2.msra.mxu0 0.0
    %3529 = vmatprep.mubr.f32.mxu0 0.0
    %3530 = vmatmul.mubr.f32.gmra.mxu0 %v52
    %v3531 = vpop.f32.mrf.mxu0
    %v3532 = vadd.f32 %v1508, %v3531
    %v3533 = vpop.f32.mrf.mxu0
    %v3534 = vadd.f32 %v1512, %v3533
    %3535 = vdwg.mxu0
    %3536 = vmatprep.subr.mxu0 %v1261
    %3537 = vmatpush1.msra.mxu0 %v1260
    %3538 = vmatprep.subr.mxu0 %v1184
    %3539 = vmatpush1.msra.mxu0 %v1183
    %3540 = vmatprep.subr.mxu0 %v1107
    %3541 = vmatpush1.msra.mxu0 %v1106
    %3542 = vmatprep.subr.mxu0 %v1030
    %3543 = vmatpush1.msra.mxu0 %v1029
    %3544 = vmatprep.subr.mxu0 %v953
    %3545 = vmatpush1.msra.mxu0 %v952
    %3546 = vmatprep.subr.mxu0 %v876
    %3547 = vmatpush1.msra.mxu0 %v875
    %3548 = vmatprep.subr.mxu0 %v799
    %3549 = vmatpush1.msra.mxu0 %v798
    %3550 = vmatprep.subr.mxu0 %v722
    %3551 = vmatpush1.msra.mxu0 %v721
    %3552 = vmatprep.subr.mxu0 %v645
    %3553 = vmatpush1.msra.mxu0 %v644
    %3554 = vmatprep.subr.mxu0 %v568
    %3555 = vmatpush1.msra.mxu0 %v567
    %3556 = vmatprep.subr.mxu0 %v491
    %3557 = vmatpush1.msra.mxu0 %v490
    %3558 = vmatprep.subr.mxu0 %v414
    %3559 = vmatpush1.msra.mxu0 %v413
    %3560 = vmatprep.subr.mxu0 %v337
    %3561 = vmatpush1.msra.mxu0 %v336
    %3562 = vmatprep.subr.mxu0 %v260
    %3563 = vmatpush1.msra.mxu0 %v259
    %3564 = vmatprep.subr.mxu0 %v183
    %3565 = vmatpush1.msra.mxu0 %v182
    %3566 = vmatprep.subr.mxu0 %v106
    %3567 = vmatpush1.msra.mxu0 %v105
    %3568 = vmatprep.subr.mxu0 0.0
    %3569 = vmatpush2.msra.mxu0 0.0
    %3570 = vmatprep.subr.mxu0 0.0
    %3571 = vmatpush2.msra.mxu0 0.0
    %3572 = vmatprep.subr.mxu0 0.0
    %3573 = vmatpush2.msra.mxu0 0.0
    %3574 = vmatprep.subr.mxu0 0.0
    %3575 = vmatpush2.msra.mxu0 0.0
    %3576 = vmatprep.subr.mxu0 0.0
    %3577 = vmatpush2.msra.mxu0 0.0
    %3578 = vmatprep.subr.mxu0 0.0
    %3579 = vmatpush2.msra.mxu0 0.0
    %3580 = vmatprep.subr.mxu0 0.0
    %3581 = vmatpush2.msra.mxu0 0.0
    %3582 = vmatprep.subr.mxu0 0.0
    %3583 = vmatpush2.msra.mxu0 0.0
    %3584 = vmatprep.subr.mxu0 0.0
    %3585 = vmatpush2.msra.mxu0 0.0
    %3586 = vmatprep.subr.mxu0 0.0
    %3587 = vmatpush2.msra.mxu0 0.0
    %3588 = vmatprep.subr.mxu0 0.0
    %3589 = vmatpush2.msra.mxu0 0.0
    %3590 = vmatprep.subr.mxu0 0.0
    %3591 = vmatpush2.msra.mxu0 0.0
    %3592 = vmatprep.subr.mxu0 0.0
    %3593 = vmatpush2.msra.mxu0 0.0
    %3594 = vmatprep.subr.mxu0 0.0
    %3595 = vmatpush2.msra.mxu0 0.0
    %3596 = vmatprep.subr.mxu0 0.0
    %3597 = vmatpush2.msra.mxu0 0.0
    %3598 = vmatprep.subr.mxu0 0.0
    %3599 = vmatpush2.msra.mxu0 0.0
    %3600 = vmatprep.mubr.f32.mxu0 0.0
    %3601 = vmatmul.mubr.f32.gmra.mxu0 %v52
    %v3602 = vpop.f32.mrf.mxu0
    %v3603 = vadd.f32 %v1516, %v3602
    %v3604 = vpop.f32.mrf.mxu0
    %v3605 = vadd.f32 %v1520, %v3604
    %3606 = vdwg.mxu0
    %3607 = vmatprep.subr.mxu0 %v1263
    %3608 = vmatpush1.msra.mxu0 %v1262
    %3609 = vmatprep.subr.mxu0 %v1186
    %3610 = vmatpush1.msra.mxu0 %v1185
    %3611 = vmatprep.subr.mxu0 %v1109
    %3612 = vmatpush1.msra.mxu0 %v1108
    %3613 = vmatprep.subr.mxu0 %v1032
    %3614 = vmatpush1.msra.mxu0 %v1031
    %3615 = vmatprep.subr.mxu0 %v955
    %3616 = vmatpush1.msra.mxu0 %v954
    %3617 = vmatprep.subr.mxu0 %v878
    %3618 = vmatpush1.msra.mxu0 %v877
    %3619 = vmatprep.subr.mxu0 %v801
    %3620 = vmatpush1.msra.mxu0 %v800
    %3621 = vmatprep.subr.mxu0 %v724
    %3622 = vmatpush1.msra.mxu0 %v723
    %3623 = vmatprep.subr.mxu0 %v647
    %3624 = vmatpush1.msra.mxu0 %v646
    %3625 = vmatprep.subr.mxu0 %v570
    %3626 = vmatpush1.msra.mxu0 %v569
    %3627 = vmatprep.subr.mxu0 %v493
    %3628 = vmatpush1.msra.mxu0 %v492
    %3629 = vmatprep.subr.mxu0 %v416
    %3630 = vmatpush1.msra.mxu0 %v415
    %3631 = vmatprep.subr.mxu0 %v339
    %3632 = vmatpush1.msra.mxu0 %v338
    %3633 = vmatprep.subr.mxu0 %v262
    %3634 = vmatpush1.msra.mxu0 %v261
    %3635 = vmatprep.subr.mxu0 %v185
    %3636 = vmatpush1.msra.mxu0 %v184
    %3637 = vmatprep.subr.mxu0 %v108
    %3638 = vmatpush1.msra.mxu0 %v107
    %3639 = vmatprep.subr.mxu0 0.0
    %3640 = vmatpush2.msra.mxu0 0.0
    %3641 = vmatprep.subr.mxu0 0.0
    %3642 = vmatpush2.msra.mxu0 0.0
    %3643 = vmatprep.subr.mxu0 0.0
    %3644 = vmatpush2.msra.mxu0 0.0
    %3645 = vmatprep.subr.mxu0 0.0
    %3646 = vmatpush2.msra.mxu0 0.0
    %3647 = vmatprep.subr.mxu0 0.0
    %3648 = vmatpush2.msra.mxu0 0.0
    %3649 = vmatprep.subr.mxu0 0.0
    %3650 = vmatpush2.msra.mxu0 0.0
    %3651 = vmatprep.subr.mxu0 0.0
    %3652 = vmatpush2.msra.mxu0 0.0
    %3653 = vmatprep.subr.mxu0 0.0
    %3654 = vmatpush2.msra.mxu0 0.0
    %3655 = vmatprep.subr.mxu0 0.0
    %3656 = vmatpush2.msra.mxu0 0.0
    %3657 = vmatprep.subr.mxu0 0.0
    %3658 = vmatpush2.msra.mxu0 0.0
    %3659 = vmatprep.subr.mxu0 0.0
    %3660 = vmatpush2.msra.mxu0 0.0
    %3661 = vmatprep.subr.mxu0 0.0
    %3662 = vmatpush2.msra.mxu0 0.0
    %3663 = vmatprep.subr.mxu0 0.0
    %3664 = vmatpush2.msra.mxu0 0.0
    %3665 = vmatprep.subr.mxu0 0.0
    %3666 = vmatpush2.msra.mxu0 0.0
    %3667 = vmatprep.subr.mxu0 0.0
    %3668 = vmatpush2.msra.mxu0 0.0
    %3669 = vmatprep.subr.mxu0 0.0
    %3670 = vmatpush2.msra.mxu0 0.0
    %3671 = vmatprep.mubr.f32.mxu0 0.0
    %3672 = vmatmul.mubr.f32.gmra.mxu0 %v52
    %v3673 = vpop.f32.mrf.mxu0
    %v3674 = vadd.f32 %v1524, %v3673
    %v3675 = vpop.f32.mrf.mxu0
    %v3676 = vadd.f32 %v1528, %v3675
    %3677 = vdwg.mxu0
    %3678 = vmatprep.subr.mxu0 %v1265
    %3679 = vmatpush1.msra.mxu0 %v1264
    %3680 = vmatprep.subr.mxu0 %v1188
    %3681 = vmatpush1.msra.mxu0 %v1187
    %3682 = vmatprep.subr.mxu0 %v1111
    %3683 = vmatpush1.msra.mxu0 %v1110
    %3684 = vmatprep.subr.mxu0 %v1034
    %3685 = vmatpush1.msra.mxu0 %v1033
    %3686 = vmatprep.subr.mxu0 %v957
    %3687 = vmatpush1.msra.mxu0 %v956
    %3688 = vmatprep.subr.mxu0 %v880
    %3689 = vmatpush1.msra.mxu0 %v879
    %3690 = vmatprep.subr.mxu0 %v803
    %3691 = vmatpush1.msra.mxu0 %v802
    %3692 = vmatprep.subr.mxu0 %v726
    %3693 = vmatpush1.msra.mxu0 %v725
    %3694 = vmatprep.subr.mxu0 %v649
    %3695 = vmatpush1.msra.mxu0 %v648
    %3696 = vmatprep.subr.mxu0 %v572
    %3697 = vmatpush1.msra.mxu0 %v571
    %3698 = vmatprep.subr.mxu0 %v495
    %3699 = vmatpush1.msra.mxu0 %v494
    %3700 = vmatprep.subr.mxu0 %v418
    %3701 = vmatpush1.msra.mxu0 %v417
    %3702 = vmatprep.subr.mxu0 %v341
    %3703 = vmatpush1.msra.mxu0 %v340
    %3704 = vmatprep.subr.mxu0 %v264
    %3705 = vmatpush1.msra.mxu0 %v263
    %3706 = vmatprep.subr.mxu0 %v187
    %3707 = vmatpush1.msra.mxu0 %v186
    %3708 = vmatprep.subr.mxu0 %v110
    %3709 = vmatpush1.msra.mxu0 %v109
    %3710 = vmatprep.subr.mxu0 0.0
    %3711 = vmatpush2.msra.mxu0 0.0
    %3712 = vmatprep.subr.mxu0 0.0
    %3713 = vmatpush2.msra.mxu0 0.0
    %3714 = vmatprep.subr.mxu0 0.0
    %3715 = vmatpush2.msra.mxu0 0.0
    %3716 = vmatprep.subr.mxu0 0.0
    %3717 = vmatpush2.msra.mxu0 0.0
    %3718 = vmatprep.subr.mxu0 0.0
    %3719 = vmatpush2.msra.mxu0 0.0
    %3720 = vmatprep.subr.mxu0 0.0
    %3721 = vmatpush2.msra.mxu0 0.0
    %3722 = vmatprep.subr.mxu0 0.0
    %3723 = vmatpush2.msra.mxu0 0.0
    %3724 = vmatprep.subr.mxu0 0.0
    %3725 = vmatpush2.msra.mxu0 0.0
    %3726 = vmatprep.subr.mxu0 0.0
    %3727 = vmatpush2.msra.mxu0 0.0
    %3728 = vmatprep.subr.mxu0 0.0
    %3729 = vmatpush2.msra.mxu0 0.0
    %3730 = vmatprep.subr.mxu0 0.0
    %3731 = vmatpush2.msra.mxu0 0.0
    %3732 = vmatprep.subr.mxu0 0.0
    %3733 = vmatpush2.msra.mxu0 0.0
    %3734 = vmatprep.subr.mxu0 0.0
    %3735 = vmatpush2.msra.mxu0 0.0
    %3736 = vmatprep.subr.mxu0 0.0
    %3737 = vmatpush2.msra.mxu0 0.0
    %3738 = vmatprep.subr.mxu0 0.0
    %3739 = vmatpush2.msra.mxu0 0.0
    %3740 = vmatprep.subr.mxu0 0.0
    %3741 = vmatpush2.msra.mxu0 0.0
    %3742 = vmatprep.mubr.f32.mxu0 0.0
    %3743 = vmatmul.mubr.f32.gmra.mxu0 %v52
    %v3744 = vpop.f32.mrf.mxu0
    %v3745 = vadd.f32 %v1532, %v3744
    %v3746 = vpop.f32.mrf.mxu0
    %v3747 = vadd.f32 %v1536, %v3746
    %3748 = vdwg.mxu0
    %3749 = vmatprep.subr.mxu0 %v1267
    %3750 = vmatpush1.msra.mxu0 %v1266
    %3751 = vmatprep.subr.mxu0 %v1190
    %3752 = vmatpush1.msra.mxu0 %v1189
    %3753 = vmatprep.subr.mxu0 %v1113
    %3754 = vmatpush1.msra.mxu0 %v1112
    %3755 = vmatprep.subr.mxu0 %v1036
    %3756 = vmatpush1.msra.mxu0 %v1035
    %3757 = vmatprep.subr.mxu0 %v959
    %3758 = vmatpush1.msra.mxu0 %v958
    %3759 = vmatprep.subr.mxu0 %v882
    %3760 = vmatpush1.msra.mxu0 %v881
    %3761 = vmatprep.subr.mxu0 %v805
    %3762 = vmatpush1.msra.mxu0 %v804
    %3763 = vmatprep.subr.mxu0 %v728
    %3764 = vmatpush1.msra.mxu0 %v727
    %3765 = vmatprep.subr.mxu0 %v651
    %3766 = vmatpush1.msra.mxu0 %v650
    %3767 = vmatprep.subr.mxu0 %v574
    %3768 = vmatpush1.msra.mxu0 %v573
    %3769 = vmatprep.subr.mxu0 %v497
    %3770 = vmatpush1.msra.mxu0 %v496
    %3771 = vmatprep.subr.mxu0 %v420
    %3772 = vmatpush1.msra.mxu0 %v419
    %3773 = vmatprep.subr.mxu0 %v343
    %3774 = vmatpush1.msra.mxu0 %v342
    %3775 = vmatprep.subr.mxu0 %v266
    %3776 = vmatpush1.msra.mxu0 %v265
    %3777 = vmatprep.subr.mxu0 %v189
    %3778 = vmatpush1.msra.mxu0 %v188
    %3779 = vmatprep.subr.mxu0 %v112
    %3780 = vmatpush1.msra.mxu0 %v111
    %3781 = vmatprep.subr.mxu0 0.0
    %3782 = vmatpush2.msra.mxu0 0.0
    %3783 = vmatprep.subr.mxu0 0.0
    %3784 = vmatpush2.msra.mxu0 0.0
    %3785 = vmatprep.subr.mxu0 0.0
    %3786 = vmatpush2.msra.mxu0 0.0
    %3787 = vmatprep.subr.mxu0 0.0
    %3788 = vmatpush2.msra.mxu0 0.0
    %3789 = vmatprep.subr.mxu0 0.0
    %3790 = vmatpush2.msra.mxu0 0.0
    %3791 = vmatprep.subr.mxu0 0.0
    %3792 = vmatpush2.msra.mxu0 0.0
    %3793 = vmatprep.subr.mxu0 0.0
    %3794 = vmatpush2.msra.mxu0 0.0
    %3795 = vmatprep.subr.mxu0 0.0
    %3796 = vmatpush2.msra.mxu0 0.0
    %3797 = vmatprep.subr.mxu0 0.0
    %3798 = vmatpush2.msra.mxu0 0.0
    %3799 = vmatprep.subr.mxu0 0.0
    %3800 = vmatpush2.msra.mxu0 0.0
    %3801 = vmatprep.subr.mxu0 0.0
    %3802 = vmatpush2.msra.mxu0 0.0
    %3803 = vmatprep.subr.mxu0 0.0
    %3804 = vmatpush2.msra.mxu0 0.0
    %3805 = vmatprep.subr.mxu0 0.0
    %3806 = vmatpush2.msra.mxu0 0.0
    %3807 = vmatprep.subr.mxu0 0.0
    %3808 = vmatpush2.msra.mxu0 0.0
    %3809 = vmatprep.subr.mxu0 0.0
    %3810 = vmatpush2.msra.mxu0 0.0
    %3811 = vmatprep.subr.mxu0 0.0
    %3812 = vmatpush2.msra.mxu0 0.0
    %3813 = vmatprep.mubr.f32.mxu0 0.0
    %3814 = vmatmul.mubr.f32.gmra.mxu0 %v52
    %v3815 = vpop.f32.mrf.mxu0
    %v3816 = vadd.f32 %v1540, %v3815
    %v3817 = vpop.f32.mrf.mxu0
    %v3818 = vadd.f32 %v1544, %v3817
    %3819 = vdwg.mxu0
    %3820 = vmatprep.subr.mxu0 %v1269
    %3821 = vmatpush1.msra.mxu0 %v1268
    %3822 = vmatprep.subr.mxu0 %v1192
    %3823 = vmatpush1.msra.mxu0 %v1191
    %3824 = vmatprep.subr.mxu0 %v1115
    %3825 = vmatpush1.msra.mxu0 %v1114
    %3826 = vmatprep.subr.mxu0 %v1038
    %3827 = vmatpush1.msra.mxu0 %v1037
    %3828 = vmatprep.subr.mxu0 %v961
    %3829 = vmatpush1.msra.mxu0 %v960
    %3830 = vmatprep.subr.mxu0 %v884
    %3831 = vmatpush1.msra.mxu0 %v883
    %3832 = vmatprep.subr.mxu0 %v807
    %3833 = vmatpush1.msra.mxu0 %v806
    %3834 = vmatprep.subr.mxu0 %v730
    %3835 = vmatpush1.msra.mxu0 %v729
    %3836 = vmatprep.subr.mxu0 %v653
    %3837 = vmatpush1.msra.mxu0 %v652
    %3838 = vmatprep.subr.mxu0 %v576
    %3839 = vmatpush1.msra.mxu0 %v575
    %3840 = vmatprep.subr.mxu0 %v499
    %3841 = vmatpush1.msra.mxu0 %v498
    %3842 = vmatprep.subr.mxu0 %v422
    %3843 = vmatpush1.msra.mxu0 %v421
    %3844 = vmatprep.subr.mxu0 %v345
    %3845 = vmatpush1.msra.mxu0 %v344
    %3846 = vmatprep.subr.mxu0 %v268
    %3847 = vmatpush1.msra.mxu0 %v267
    %3848 = vmatprep.subr.mxu0 %v191
    %3849 = vmatpush1.msra.mxu0 %v190
    %3850 = vmatprep.subr.mxu0 %v114
    %3851 = vmatpush1.msra.mxu0 %v113
    %3852 = vmatprep.subr.mxu0 0.0
    %3853 = vmatpush2.msra.mxu0 0.0
    %3854 = vmatprep.subr.mxu0 0.0
    %3855 = vmatpush2.msra.mxu0 0.0
    %3856 = vmatprep.subr.mxu0 0.0
    %3857 = vmatpush2.msra.mxu0 0.0
    %3858 = vmatprep.subr.mxu0 0.0
    %3859 = vmatpush2.msra.mxu0 0.0
    %3860 = vmatprep.subr.mxu0 0.0
    %3861 = vmatpush2.msra.mxu0 0.0
    %3862 = vmatprep.subr.mxu0 0.0
    %3863 = vmatpush2.msra.mxu0 0.0
    %3864 = vmatprep.subr.mxu0 0.0
    %3865 = vmatpush2.msra.mxu0 0.0
    %3866 = vmatprep.subr.mxu0 0.0
    %3867 = vmatpush2.msra.mxu0 0.0
    %3868 = vmatprep.subr.mxu0 0.0
    %3869 = vmatpush2.msra.mxu0 0.0
    %3870 = vmatprep.subr.mxu0 0.0
    %3871 = vmatpush2.msra.mxu0 0.0
    %3872 = vmatprep.subr.mxu0 0.0
    %3873 = vmatpush2.msra.mxu0 0.0
    %3874 = vmatprep.subr.mxu0 0.0
    %3875 = vmatpush2.msra.mxu0 0.0
    %3876 = vmatprep.subr.mxu0 0.0
    %3877 = vmatpush2.msra.mxu0 0.0
    %3878 = vmatprep.subr.mxu0 0.0
    %3879 = vmatpush2.msra.mxu0 0.0
    %3880 = vmatprep.subr.mxu0 0.0
    %3881 = vmatpush2.msra.mxu0 0.0
    %3882 = vmatprep.subr.mxu0 0.0
    %3883 = vmatpush2.msra.mxu0 0.0
    %3884 = vmatprep.mubr.f32.mxu0 0.0
    %3885 = vmatmul.mubr.f32.gmra.mxu0 %v52
    %v3886 = vpop.f32.mrf.mxu0
    %v3887 = vadd.f32 %v1548, %v3886
    %v3888 = vpop.f32.mrf.mxu0
    %v3889 = vadd.f32 %v1552, %v3888
    %3890 = vdwg.mxu0
    %3891 = vmatprep.subr.mxu0 %v1271
    %3892 = vmatpush1.msra.mxu0 %v1270
    %3893 = vmatprep.subr.mxu0 %v1194
    %3894 = vmatpush1.msra.mxu0 %v1193
    %3895 = vmatprep.subr.mxu0 %v1117
    %3896 = vmatpush1.msra.mxu0 %v1116
    %3897 = vmatprep.subr.mxu0 %v1040
    %3898 = vmatpush1.msra.mxu0 %v1039
    %3899 = vmatprep.subr.mxu0 %v963
    %3900 = vmatpush1.msra.mxu0 %v962
    %3901 = vmatprep.subr.mxu0 %v886
    %3902 = vmatpush1.msra.mxu0 %v885
    %3903 = vmatprep.subr.mxu0 %v809
    %3904 = vmatpush1.msra.mxu0 %v808
    %3905 = vmatprep.subr.mxu0 %v732
    %3906 = vmatpush1.msra.mxu0 %v731
    %3907 = vmatprep.subr.mxu0 %v655
    %3908 = vmatpush1.msra.mxu0 %v654
    %3909 = vmatprep.subr.mxu0 %v578
    %3910 = vmatpush1.msra.mxu0 %v577
    %3911 = vmatprep.subr.mxu0 %v501
    %3912 = vmatpush1.msra.mxu0 %v500
    %3913 = vmatprep.subr.mxu0 %v424
    %3914 = vmatpush1.msra.mxu0 %v423
    %3915 = vmatprep.subr.mxu0 %v347
    %3916 = vmatpush1.msra.mxu0 %v346
    %3917 = vmatprep.subr.mxu0 %v270
    %3918 = vmatpush1.msra.mxu0 %v269
    %3919 = vmatprep.subr.mxu0 %v193
    %3920 = vmatpush1.msra.mxu0 %v192
    %3921 = vmatprep.subr.mxu0 %v116
    %3922 = vmatpush1.msra.mxu0 %v115
    %3923 = vmatprep.subr.mxu0 0.0
    %3924 = vmatpush2.msra.mxu0 0.0
    %3925 = vmatprep.subr.mxu0 0.0
    %3926 = vmatpush2.msra.mxu0 0.0
    %3927 = vmatprep.subr.mxu0 0.0
    %3928 = vmatpush2.msra.mxu0 0.0
    %3929 = vmatprep.subr.mxu0 0.0
    %3930 = vmatpush2.msra.mxu0 0.0
    %3931 = vmatprep.subr.mxu0 0.0
    %3932 = vmatpush2.msra.mxu0 0.0
    %3933 = vmatprep.subr.mxu0 0.0
    %3934 = vmatpush2.msra.mxu0 0.0
    %3935 = vmatprep.subr.mxu0 0.0
    %3936 = vmatpush2.msra.mxu0 0.0
    %3937 = vmatprep.subr.mxu0 0.0
    %3938 = vmatpush2.msra.mxu0 0.0
    %3939 = vmatprep.subr.mxu0 0.0
    %3940 = vmatpush2.msra.mxu0 0.0
    %3941 = vmatprep.subr.mxu0 0.0
    %3942 = vmatpush2.msra.mxu0 0.0
    %3943 = vmatprep.subr.mxu0 0.0
    %3944 = vmatpush2.msra.mxu0 0.0
    %3945 = vmatprep.subr.mxu0 0.0
    %3946 = vmatpush2.msra.mxu0 0.0
    %3947 = vmatprep.subr.mxu0 0.0
    %3948 = vmatpush2.msra.mxu0 0.0
    %3949 = vmatprep.subr.mxu0 0.0
    %3950 = vmatpush2.msra.mxu0 0.0
    %3951 = vmatprep.subr.mxu0 0.0
    %3952 = vmatpush2.msra.mxu0 0.0
    %3953 = vmatprep.subr.mxu0 0.0
    %3954 = vmatpush2.msra.mxu0 0.0
    %3955 = vmatprep.mubr.f32.mxu0 0.0
    %3956 = vmatmul.mubr.f32.gmra.mxu0 %v52
    %v3957 = vpop.f32.mrf.mxu0
    %v3958 = vadd.f32 %v1556, %v3957
    %v3959 = vpop.f32.mrf.mxu0
    %v3960 = vadd.f32 %v1560, %v3959
    %3961 = vdwg.mxu0
    %3962 = vmatprep.subr.mxu0 %v1273
    %3963 = vmatpush1.msra.mxu0 %v1272
    %3964 = vmatprep.subr.mxu0 %v1196
    %3965 = vmatpush1.msra.mxu0 %v1195
    %3966 = vmatprep.subr.mxu0 %v1119
    %3967 = vmatpush1.msra.mxu0 %v1118
    %3968 = vmatprep.subr.mxu0 %v1042
    %3969 = vmatpush1.msra.mxu0 %v1041
    %3970 = vmatprep.subr.mxu0 %v965
    %3971 = vmatpush1.msra.mxu0 %v964
    %3972 = vmatprep.subr.mxu0 %v888
    %3973 = vmatpush1.msra.mxu0 %v887
    %3974 = vmatprep.subr.mxu0 %v811
    %3975 = vmatpush1.msra.mxu0 %v810
    %3976 = vmatprep.subr.mxu0 %v734
    %3977 = vmatpush1.msra.mxu0 %v733
    %3978 = vmatprep.subr.mxu0 %v657
    %3979 = vmatpush1.msra.mxu0 %v656
    %3980 = vmatprep.subr.mxu0 %v580
    %3981 = vmatpush1.msra.mxu0 %v579
    %3982 = vmatprep.subr.mxu0 %v503
    %3983 = vmatpush1.msra.mxu0 %v502
    %3984 = vmatprep.subr.mxu0 %v426
    %3985 = vmatpush1.msra.mxu0 %v425
    %3986 = vmatprep.subr.mxu0 %v349
    %3987 = vmatpush1.msra.mxu0 %v348
    %3988 = vmatprep.subr.mxu0 %v272
    %3989 = vmatpush1.msra.mxu0 %v271
    %3990 = vmatprep.subr.mxu0 %v195
    %3991 = vmatpush1.msra.mxu0 %v194
    %3992 = vmatprep.subr.mxu0 %v118
    %3993 = vmatpush1.msra.mxu0 %v117
    %3994 = vmatprep.subr.mxu0 0.0
    %3995 = vmatpush2.msra.mxu0 0.0
    %3996 = vmatprep.subr.mxu0 0.0
    %3997 = vmatpush2.msra.mxu0 0.0
    %3998 = vmatprep.subr.mxu0 0.0
    %3999 = vmatpush2.msra.mxu0 0.0
    %4000 = vmatprep.subr.mxu0 0.0
    %4001 = vmatpush2.msra.mxu0 0.0
    %4002 = vmatprep.subr.mxu0 0.0
    %4003 = vmatpush2.msra.mxu0 0.0
    %4004 = vmatprep.subr.mxu0 0.0
    %4005 = vmatpush2.msra.mxu0 0.0
    %4006 = vmatprep.subr.mxu0 0.0
    %4007 = vmatpush2.msra.mxu0 0.0
    %4008 = vmatprep.subr.mxu0 0.0
    %4009 = vmatpush2.msra.mxu0 0.0
    %4010 = vmatprep.subr.mxu0 0.0
    %4011 = vmatpush2.msra.mxu0 0.0
    %4012 = vmatprep.subr.mxu0 0.0
    %4013 = vmatpush2.msra.mxu0 0.0
    %4014 = vmatprep.subr.mxu0 0.0
    %4015 = vmatpush2.msra.mxu0 0.0
    %4016 = vmatprep.subr.mxu0 0.0
    %4017 = vmatpush2.msra.mxu0 0.0
    %4018 = vmatprep.subr.mxu0 0.0
    %4019 = vmatpush2.msra.mxu0 0.0
    %4020 = vmatprep.subr.mxu0 0.0
    %4021 = vmatpush2.msra.mxu0 0.0
    %4022 = vmatprep.subr.mxu0 0.0
    %4023 = vmatpush2.msra.mxu0 0.0
    %4024 = vmatprep.subr.mxu0 0.0
    %4025 = vmatpush2.msra.mxu0 0.0
    %4026 = vmatprep.mubr.f32.mxu0 0.0
    %4027 = vmatmul.mubr.f32.gmra.mxu0 %v52
    %v4028 = vpop.f32.mrf.mxu0
    %v4029 = vadd.f32 %v1564, %v4028
    %v4030 = vpop.f32.mrf.mxu0
    %v4031 = vadd.f32 %v1568, %v4030
    %4032 = vdwg.mxu0
    %4033 = vmatprep.subr.mxu0 %v1275
    %4034 = vmatpush1.msra.mxu0 %v1274
    %4035 = vmatprep.subr.mxu0 %v1198
    %4036 = vmatpush1.msra.mxu0 %v1197
    %4037 = vmatprep.subr.mxu0 %v1121
    %4038 = vmatpush1.msra.mxu0 %v1120
    %4039 = vmatprep.subr.mxu0 %v1044
    %4040 = vmatpush1.msra.mxu0 %v1043
    %4041 = vmatprep.subr.mxu0 %v967
    %4042 = vmatpush1.msra.mxu0 %v966
    %4043 = vmatprep.subr.mxu0 %v890
    %4044 = vmatpush1.msra.mxu0 %v889
    %4045 = vmatprep.subr.mxu0 %v813
    %4046 = vmatpush1.msra.mxu0 %v812
    %4047 = vmatprep.subr.mxu0 %v736
    %4048 = vmatpush1.msra.mxu0 %v735
    %4049 = vmatprep.subr.mxu0 %v659
    %4050 = vmatpush1.msra.mxu0 %v658
    %4051 = vmatprep.subr.mxu0 %v582
    %4052 = vmatpush1.msra.mxu0 %v581
    %4053 = vmatprep.subr.mxu0 %v505
    %4054 = vmatpush1.msra.mxu0 %v504
    %4055 = vmatprep.subr.mxu0 %v428
    %4056 = vmatpush1.msra.mxu0 %v427
    %4057 = vmatprep.subr.mxu0 %v351
    %4058 = vmatpush1.msra.mxu0 %v350
    %4059 = vmatprep.subr.mxu0 %v274
    %4060 = vmatpush1.msra.mxu0 %v273
    %4061 = vmatprep.subr.mxu0 %v197
    %4062 = vmatpush1.msra.mxu0 %v196
    %4063 = vmatprep.subr.mxu0 %v120
    %4064 = vmatpush1.msra.mxu0 %v119
    %4065 = vmatprep.subr.mxu0 0.0
    %4066 = vmatpush2.msra.mxu0 0.0
    %4067 = vmatprep.subr.mxu0 0.0
    %4068 = vmatpush2.msra.mxu0 0.0
    %4069 = vmatprep.subr.mxu0 0.0
    %4070 = vmatpush2.msra.mxu0 0.0
    %4071 = vmatprep.subr.mxu0 0.0
    %4072 = vmatpush2.msra.mxu0 0.0
    %4073 = vmatprep.subr.mxu0 0.0
    %4074 = vmatpush2.msra.mxu0 0.0
    %4075 = vmatprep.subr.mxu0 0.0
    %4076 = vmatpush2.msra.mxu0 0.0
    %4077 = vmatprep.subr.mxu0 0.0
    %4078 = vmatpush2.msra.mxu0 0.0
    %4079 = vmatprep.subr.mxu0 0.0
    %4080 = vmatpush2.msra.mxu0 0.0
    %4081 = vmatprep.subr.mxu0 0.0
    %4082 = vmatpush2.msra.mxu0 0.0
    %4083 = vmatprep.subr.mxu0 0.0
    %4084 = vmatpush2.msra.mxu0 0.0
    %4085 = vmatprep.subr.mxu0 0.0
    %4086 = vmatpush2.msra.mxu0 0.0
    %4087 = vmatprep.subr.mxu0 0.0
    %4088 = vmatpush2.msra.mxu0 0.0
    %4089 = vmatprep.subr.mxu0 0.0
    %4090 = vmatpush2.msra.mxu0 0.0
    %4091 = vmatprep.subr.mxu0 0.0
    %4092 = vmatpush2.msra.mxu0 0.0
    %4093 = vmatprep.subr.mxu0 0.0
    %4094 = vmatpush2.msra.mxu0 0.0
    %4095 = vmatprep.subr.mxu0 0.0
    %4096 = vmatpush2.msra.mxu0 0.0
    %4097 = vmatprep.mubr.f32.mxu0 0.0
    %4098 = vmatmul.mubr.f32.gmra.mxu0 %v52
    %v4099 = vpop.f32.mrf.mxu0
    %v4100 = vadd.f32 %v1572, %v4099
    %v4101 = vpop.f32.mrf.mxu0
    %v4102 = vadd.f32 %v1576, %v4101
    %4103 = vdwg.mxu0
    %4104 = vmatprep.subr.mxu0 %v1277
    %4105 = vmatpush1.msra.mxu0 %v1276
    %4106 = vmatprep.subr.mxu0 %v1200
    %4107 = vmatpush1.msra.mxu0 %v1199
    %4108 = vmatprep.subr.mxu0 %v1123
    %4109 = vmatpush1.msra.mxu0 %v1122
    %4110 = vmatprep.subr.mxu0 %v1046
    %4111 = vmatpush1.msra.mxu0 %v1045
    %4112 = vmatprep.subr.mxu0 %v969
    %4113 = vmatpush1.msra.mxu0 %v968
    %4114 = vmatprep.subr.mxu0 %v892
    %4115 = vmatpush1.msra.mxu0 %v891
    %4116 = vmatprep.subr.mxu0 %v815
    %4117 = vmatpush1.msra.mxu0 %v814
    %4118 = vmatprep.subr.mxu0 %v738
    %4119 = vmatpush1.msra.mxu0 %v737
    %4120 = vmatprep.subr.mxu0 %v661
    %4121 = vmatpush1.msra.mxu0 %v660
    %4122 = vmatprep.subr.mxu0 %v584
    %4123 = vmatpush1.msra.mxu0 %v583
    %4124 = vmatprep.subr.mxu0 %v507
    %4125 = vmatpush1.msra.mxu0 %v506
    %4126 = vmatprep.subr.mxu0 %v430
    %4127 = vmatpush1.msra.mxu0 %v429
    %4128 = vmatprep.subr.mxu0 %v353
    %4129 = vmatpush1.msra.mxu0 %v352
    %4130 = vmatprep.subr.mxu0 %v276
    %4131 = vmatpush1.msra.mxu0 %v275
    %4132 = vmatprep.subr.mxu0 %v199
    %4133 = vmatpush1.msra.mxu0 %v198
    %4134 = vmatprep.subr.mxu0 %v122
    %4135 = vmatpush1.msra.mxu0 %v121
    %4136 = vmatprep.subr.mxu0 0.0
    %4137 = vmatpush2.msra.mxu0 0.0
    %4138 = vmatprep.subr.mxu0 0.0
    %4139 = vmatpush2.msra.mxu0 0.0
    %4140 = vmatprep.subr.mxu0 0.0
    %4141 = vmatpush2.msra.mxu0 0.0
    %4142 = vmatprep.subr.mxu0 0.0
    %4143 = vmatpush2.msra.mxu0 0.0
    %4144 = vmatprep.subr.mxu0 0.0
    %4145 = vmatpush2.msra.mxu0 0.0
    %4146 = vmatprep.subr.mxu0 0.0
    %4147 = vmatpush2.msra.mxu0 0.0
    %4148 = vmatprep.subr.mxu0 0.0
    %4149 = vmatpush2.msra.mxu0 0.0
    %4150 = vmatprep.subr.mxu0 0.0
    %4151 = vmatpush2.msra.mxu0 0.0
    %4152 = vmatprep.subr.mxu0 0.0
    %4153 = vmatpush2.msra.mxu0 0.0
    %4154 = vmatprep.subr.mxu0 0.0
    %4155 = vmatpush2.msra.mxu0 0.0
    %4156 = vmatprep.subr.mxu0 0.0
    %4157 = vmatpush2.msra.mxu0 0.0
    %4158 = vmatprep.subr.mxu0 0.0
    %4159 = vmatpush2.msra.mxu0 0.0
    %4160 = vmatprep.subr.mxu0 0.0
    %4161 = vmatpush2.msra.mxu0 0.0
    %4162 = vmatprep.subr.mxu0 0.0
    %4163 = vmatpush2.msra.mxu0 0.0
    %4164 = vmatprep.subr.mxu0 0.0
    %4165 = vmatpush2.msra.mxu0 0.0
    %4166 = vmatprep.subr.mxu0 0.0
    %4167 = vmatpush2.msra.mxu0 0.0
    %4168 = vmatprep.mubr.f32.mxu0 0.0
    %4169 = vmatmul.mubr.f32.gmra.mxu0 %v52
    %v4170 = vpop.f32.mrf.mxu0
    %v4171 = vadd.f32 %v1580, %v4170
    %v4172 = vpop.f32.mrf.mxu0
    %v4173 = vadd.f32 %v1584, %v4172
    %4174 = vdwg.mxu0
    %4175 = vmatprep.subr.mxu0 %v1279
    %4176 = vmatpush1.msra.mxu0 %v1278
    %4177 = vmatprep.subr.mxu0 %v1202
    %4178 = vmatpush1.msra.mxu0 %v1201
    %4179 = vmatprep.subr.mxu0 %v1125
    %4180 = vmatpush1.msra.mxu0 %v1124
    %4181 = vmatprep.subr.mxu0 %v1048
    %4182 = vmatpush1.msra.mxu0 %v1047
    %4183 = vmatprep.subr.mxu0 %v971
    %4184 = vmatpush1.msra.mxu0 %v970
    %4185 = vmatprep.subr.mxu0 %v894
    %4186 = vmatpush1.msra.mxu0 %v893
    %4187 = vmatprep.subr.mxu0 %v817
    %4188 = vmatpush1.msra.mxu0 %v816
    %4189 = vmatprep.subr.mxu0 %v740
    %4190 = vmatpush1.msra.mxu0 %v739
    %4191 = vmatprep.subr.mxu0 %v663
    %4192 = vmatpush1.msra.mxu0 %v662
    %4193 = vmatprep.subr.mxu0 %v586
    %4194 = vmatpush1.msra.mxu0 %v585
    %4195 = vmatprep.subr.mxu0 %v509
    %4196 = vmatpush1.msra.mxu0 %v508
    %4197 = vmatprep.subr.mxu0 %v432
    %4198 = vmatpush1.msra.mxu0 %v431
    %4199 = vmatprep.subr.mxu0 %v355
    %4200 = vmatpush1.msra.mxu0 %v354
    %4201 = vmatprep.subr.mxu0 %v278
    %4202 = vmatpush1.msra.mxu0 %v277
    %4203 = vmatprep.subr.mxu0 %v201
    %4204 = vmatpush1.msra.mxu0 %v200
    %4205 = vmatprep.subr.mxu0 %v124
    %4206 = vmatpush1.msra.mxu0 %v123
    %4207 = vmatprep.subr.mxu0 0.0
    %4208 = vmatpush2.msra.mxu0 0.0
    %4209 = vmatprep.subr.mxu0 0.0
    %4210 = vmatpush2.msra.mxu0 0.0
    %4211 = vmatprep.subr.mxu0 0.0
    %4212 = vmatpush2.msra.mxu0 0.0
    %4213 = vmatprep.subr.mxu0 0.0
    %4214 = vmatpush2.msra.mxu0 0.0
    %4215 = vmatprep.subr.mxu0 0.0
    %4216 = vmatpush2.msra.mxu0 0.0
    %4217 = vmatprep.subr.mxu0 0.0
    %4218 = vmatpush2.msra.mxu0 0.0
    %4219 = vmatprep.subr.mxu0 0.0
    %4220 = vmatpush2.msra.mxu0 0.0
    %4221 = vmatprep.subr.mxu0 0.0
    %4222 = vmatpush2.msra.mxu0 0.0
    %4223 = vmatprep.subr.mxu0 0.0
    %4224 = vmatpush2.msra.mxu0 0.0
    %4225 = vmatprep.subr.mxu0 0.0
    %4226 = vmatpush2.msra.mxu0 0.0
    %4227 = vmatprep.subr.mxu0 0.0
    %4228 = vmatpush2.msra.mxu0 0.0
    %4229 = vmatprep.subr.mxu0 0.0
    %4230 = vmatpush2.msra.mxu0 0.0
    %4231 = vmatprep.subr.mxu0 0.0
    %4232 = vmatpush2.msra.mxu0 0.0
    %4233 = vmatprep.subr.mxu0 0.0
    %4234 = vmatpush2.msra.mxu0 0.0
    %4235 = vmatprep.subr.mxu0 0.0
    %4236 = vmatpush2.msra.mxu0 0.0
    %4237 = vmatprep.subr.mxu0 0.0
    %4238 = vmatpush2.msra.mxu0 0.0
    %4239 = vmatprep.mubr.f32.mxu0 0.0
    %4240 = vmatmul.mubr.f32.gmra.mxu0 %v52
    %v4241 = vpop.f32.mrf.mxu0
    %v4242 = vadd.f32 %v1588, %v4241
    %v4243 = vpop.f32.mrf.mxu0
    %v4244 = vadd.f32 %v1592, %v4243
    %4245 = vdwg.mxu0
    %4246 = vmatprep.subr.mxu0 %v1281
    %4247 = vmatpush1.msra.mxu0 %v1280
    %4248 = vmatprep.subr.mxu0 %v1204
    %4249 = vmatpush1.msra.mxu0 %v1203
    %4250 = vmatprep.subr.mxu0 %v1127
    %4251 = vmatpush1.msra.mxu0 %v1126
    %4252 = vmatprep.subr.mxu0 %v1050
    %4253 = vmatpush1.msra.mxu0 %v1049
    %4254 = vmatprep.subr.mxu0 %v973
    %4255 = vmatpush1.msra.mxu0 %v972
    %4256 = vmatprep.subr.mxu0 %v896
    %4257 = vmatpush1.msra.mxu0 %v895
    %4258 = vmatprep.subr.mxu0 %v819
    %4259 = vmatpush1.msra.mxu0 %v818
    %4260 = vmatprep.subr.mxu0 %v742
    %4261 = vmatpush1.msra.mxu0 %v741
    %4262 = vmatprep.subr.mxu0 %v665
    %4263 = vmatpush1.msra.mxu0 %v664
    %4264 = vmatprep.subr.mxu0 %v588
    %4265 = vmatpush1.msra.mxu0 %v587
    %4266 = vmatprep.subr.mxu0 %v511
    %4267 = vmatpush1.msra.mxu0 %v510
    %4268 = vmatprep.subr.mxu0 %v434
    %4269 = vmatpush1.msra.mxu0 %v433
    %4270 = vmatprep.subr.mxu0 %v357
    %4271 = vmatpush1.msra.mxu0 %v356
    %4272 = vmatprep.subr.mxu0 %v280
    %4273 = vmatpush1.msra.mxu0 %v279
    %4274 = vmatprep.subr.mxu0 %v203
    %4275 = vmatpush1.msra.mxu0 %v202
    %4276 = vmatprep.subr.mxu0 %v126
    %4277 = vmatpush1.msra.mxu0 %v125
    %4278 = vmatprep.subr.mxu0 0.0
    %4279 = vmatpush2.msra.mxu0 0.0
    %4280 = vmatprep.subr.mxu0 0.0
    %4281 = vmatpush2.msra.mxu0 0.0
    %4282 = vmatprep.subr.mxu0 0.0
    %4283 = vmatpush2.msra.mxu0 0.0
    %4284 = vmatprep.subr.mxu0 0.0
    %4285 = vmatpush2.msra.mxu0 0.0
    %4286 = vmatprep.subr.mxu0 0.0
    %4287 = vmatpush2.msra.mxu0 0.0
    %4288 = vmatprep.subr.mxu0 0.0
    %4289 = vmatpush2.msra.mxu0 0.0
    %4290 = vmatprep.subr.mxu0 0.0
    %4291 = vmatpush2.msra.mxu0 0.0
    %4292 = vmatprep.subr.mxu0 0.0
    %4293 = vmatpush2.msra.mxu0 0.0
    %4294 = vmatprep.subr.mxu0 0.0
    %4295 = vmatpush2.msra.mxu0 0.0
    %4296 = vmatprep.subr.mxu0 0.0
    %4297 = vmatpush2.msra.mxu0 0.0
    %4298 = vmatprep.subr.mxu0 0.0
    %4299 = vmatpush2.msra.mxu0 0.0
    %4300 = vmatprep.subr.mxu0 0.0
    %4301 = vmatpush2.msra.mxu0 0.0
    %4302 = vmatprep.subr.mxu0 0.0
    %4303 = vmatpush2.msra.mxu0 0.0
    %4304 = vmatprep.subr.mxu0 0.0
    %4305 = vmatpush2.msra.mxu0 0.0
    %4306 = vmatprep.subr.mxu0 0.0
    %4307 = vmatpush2.msra.mxu0 0.0
    %4308 = vmatprep.subr.mxu0 0.0
    %4309 = vmatpush2.msra.mxu0 0.0
    %4310 = vmatprep.mubr.f32.mxu0 0.0
    %4311 = vmatmul.mubr.f32.gmra.mxu0 %v52
    %v4312 = vpop.f32.mrf.mxu0
    %v4313 = vadd.f32 %v1596, %v4312
    %v4314 = vpop.f32.mrf.mxu0
    %v4315 = vadd.f32 %v1600, %v4314
    %4316 = vdwg.mxu0
    %4317 = vmatprep.subr.mxu0 %v1283
    %4318 = vmatpush1.msra.mxu0 %v1282
    %4319 = vmatprep.subr.mxu0 %v1206
    %4320 = vmatpush1.msra.mxu0 %v1205
    %4321 = vmatprep.subr.mxu0 %v1129
    %4322 = vmatpush1.msra.mxu0 %v1128
    %4323 = vmatprep.subr.mxu0 %v1052
    %4324 = vmatpush1.msra.mxu0 %v1051
    %4325 = vmatprep.subr.mxu0 %v975
    %4326 = vmatpush1.msra.mxu0 %v974
    %4327 = vmatprep.subr.mxu0 %v898
    %4328 = vmatpush1.msra.mxu0 %v897
    %4329 = vmatprep.subr.mxu0 %v821
    %4330 = vmatpush1.msra.mxu0 %v820
    %4331 = vmatprep.subr.mxu0 %v744
    %4332 = vmatpush1.msra.mxu0 %v743
    %4333 = vmatprep.subr.mxu0 %v667
    %4334 = vmatpush1.msra.mxu0 %v666
    %4335 = vmatprep.subr.mxu0 %v590
    %4336 = vmatpush1.msra.mxu0 %v589
    %4337 = vmatprep.subr.mxu0 %v513
    %4338 = vmatpush1.msra.mxu0 %v512
    %4339 = vmatprep.subr.mxu0 %v436
    %4340 = vmatpush1.msra.mxu0 %v435
    %4341 = vmatprep.subr.mxu0 %v359
    %4342 = vmatpush1.msra.mxu0 %v358
    %4343 = vmatprep.subr.mxu0 %v282
    %4344 = vmatpush1.msra.mxu0 %v281
    %4345 = vmatprep.subr.mxu0 %v205
    %4346 = vmatpush1.msra.mxu0 %v204
    %4347 = vmatprep.subr.mxu0 %v128
    %4348 = vmatpush1.msra.mxu0 %v127
    %4349 = vmatprep.subr.mxu0 0.0
    %4350 = vmatpush2.msra.mxu0 0.0
    %4351 = vmatprep.subr.mxu0 0.0
    %4352 = vmatpush2.msra.mxu0 0.0
    %4353 = vmatprep.subr.mxu0 0.0
    %4354 = vmatpush2.msra.mxu0 0.0
    %4355 = vmatprep.subr.mxu0 0.0
    %4356 = vmatpush2.msra.mxu0 0.0
    %4357 = vmatprep.subr.mxu0 0.0
    %4358 = vmatpush2.msra.mxu0 0.0
    %4359 = vmatprep.subr.mxu0 0.0
    %4360 = vmatpush2.msra.mxu0 0.0
    %4361 = vmatprep.subr.mxu0 0.0
    %4362 = vmatpush2.msra.mxu0 0.0
    %4363 = vmatprep.subr.mxu0 0.0
    %4364 = vmatpush2.msra.mxu0 0.0
    %4365 = vmatprep.subr.mxu0 0.0
    %4366 = vmatpush2.msra.mxu0 0.0
    %4367 = vmatprep.subr.mxu0 0.0
    %4368 = vmatpush2.msra.mxu0 0.0
    %4369 = vmatprep.subr.mxu0 0.0
    %4370 = vmatpush2.msra.mxu0 0.0
    %4371 = vmatprep.subr.mxu0 0.0
    %4372 = vmatpush2.msra.mxu0 0.0
    %4373 = vmatprep.subr.mxu0 0.0
    %4374 = vmatpush2.msra.mxu0 0.0
    %4375 = vmatprep.subr.mxu0 0.0
    %4376 = vmatpush2.msra.mxu0 0.0
    %4377 = vmatprep.subr.mxu0 0.0
    %4378 = vmatpush2.msra.mxu0 0.0
    %4379 = vmatprep.subr.mxu0 0.0
    %4380 = vmatpush2.msra.mxu0 0.0
    %4381 = vmatprep.mubr.f32.mxu0 0.0
    %4382 = vmatmul.mubr.f32.gmra.mxu0 %v52
    %v4383 = vpop.f32.mrf.mxu0
    %v4384 = vadd.f32 %v1604, %v4383
    %v4385 = vpop.f32.mrf.mxu0
    %v4386 = vadd.f32 %v1608, %v4385
    %4387 = vdwg.mxu0
    %4388 = vmatprep.subr.mxu0 0.0
    %4389 = vmatpush1.msra.mxu0 %v1284
    %4390 = vmatprep.subr.mxu0 0.0
    %4391 = vmatpush1.msra.mxu0 %v1207
    %4392 = vmatprep.subr.mxu0 0.0
    %4393 = vmatpush1.msra.mxu0 %v1130
    %4394 = vmatprep.subr.mxu0 0.0
    %4395 = vmatpush1.msra.mxu0 %v1053
    %4396 = vmatprep.subr.mxu0 0.0
    %4397 = vmatpush1.msra.mxu0 %v976
    %4398 = vmatprep.subr.mxu0 0.0
    %4399 = vmatpush1.msra.mxu0 %v899
    %4400 = vmatprep.subr.mxu0 0.0
    %4401 = vmatpush1.msra.mxu0 %v822
    %4402 = vmatprep.subr.mxu0 0.0
    %4403 = vmatpush1.msra.mxu0 %v745
    %4404 = vmatprep.subr.mxu0 0.0
    %4405 = vmatpush1.msra.mxu0 %v668
    %4406 = vmatprep.subr.mxu0 0.0
    %4407 = vmatpush1.msra.mxu0 %v591
    %4408 = vmatprep.subr.mxu0 0.0
    %4409 = vmatpush1.msra.mxu0 %v514
    %4410 = vmatprep.subr.mxu0 0.0
    %4411 = vmatpush1.msra.mxu0 %v437
    %4412 = vmatprep.subr.mxu0 0.0
    %4413 = vmatpush1.msra.mxu0 %v360
    %4414 = vmatprep.subr.mxu0 0.0
    %4415 = vmatpush1.msra.mxu0 %v283
    %4416 = vmatprep.subr.mxu0 0.0
    %4417 = vmatpush1.msra.mxu0 %v206
    %4418 = vmatprep.subr.mxu0 0.0
    %4419 = vmatpush1.msra.mxu0 %v129
    %4420 = vmatprep.subr.mxu0 0.0
    %4421 = vmatpush2.msra.mxu0 0.0
    %4422 = vmatprep.subr.mxu0 0.0
    %4423 = vmatpush2.msra.mxu0 0.0
    %4424 = vmatprep.subr.mxu0 0.0
    %4425 = vmatpush2.msra.mxu0 0.0
    %4426 = vmatprep.subr.mxu0 0.0
    %4427 = vmatpush2.msra.mxu0 0.0
    %4428 = vmatprep.subr.mxu0 0.0
    %4429 = vmatpush2.msra.mxu0 0.0
    %4430 = vmatprep.subr.mxu0 0.0
    %4431 = vmatpush2.msra.mxu0 0.0
    %4432 = vmatprep.subr.mxu0 0.0
    %4433 = vmatpush2.msra.mxu0 0.0
    %4434 = vmatprep.subr.mxu0 0.0
    %4435 = vmatpush2.msra.mxu0 0.0
    %4436 = vmatprep.subr.mxu0 0.0
    %4437 = vmatpush2.msra.mxu0 0.0
    %4438 = vmatprep.subr.mxu0 0.0
    %4439 = vmatpush2.msra.mxu0 0.0
    %4440 = vmatprep.subr.mxu0 0.0
    %4441 = vmatpush2.msra.mxu0 0.0
    %4442 = vmatprep.subr.mxu0 0.0
    %4443 = vmatpush2.msra.mxu0 0.0
    %4444 = vmatprep.subr.mxu0 0.0
    %4445 = vmatpush2.msra.mxu0 0.0
    %4446 = vmatprep.subr.mxu0 0.0
    %4447 = vmatpush2.msra.mxu0 0.0
    %4448 = vmatprep.subr.mxu0 0.0
    %4449 = vmatpush2.msra.mxu0 0.0
    %4450 = vmatprep.subr.mxu0 0.0
    %4451 = vmatpush2.msra.mxu0 0.0
    %4452 = vmatprep.mubr.f32.mxu0 0.0
    %4453 = vmatmul.mubr.f32.gmra.mxu0 %v52
    %v4454 = vpop.f32.mrf.mxu0
    %v4455 = vadd.f32 %v1612, %v4454
    %v4456 = vpop.f32.mrf.mxu0
    %4457 = vdwg.mxu0
    %4458 = vst [vmem:[#allocation8] sm:$0xff] %v1757
    %4459 = vst [vmem:[#allocation8 + $0x8] sm:$0xff] %v1759
    %4460 = vst [vmem:[#allocation8 + $0x10] sm:$0xff] %v1828
    %4461 = vst [vmem:[#allocation8 + $0x18] sm:$0xff] %v1830
    %4462 = vst [vmem:[#allocation8 + $0x20] sm:$0xff] %v1899
    %4463 = vst [vmem:[#allocation8 + $0x28] sm:$0xff] %v1901
    %4464 = vst [vmem:[#allocation8 + $0x30] sm:$0xff] %v1970
    %4465 = vst [vmem:[#allocation8 + $0x38] sm:$0xff] %v1972
    %4466 = vst [vmem:[#allocation8 + $0x40] sm:$0xff] %v2041
    %4467 = vst [vmem:[#allocation8 + $0x48] sm:$0xff] %v2043
    %4468 = vst [vmem:[#allocation8 + $0x50] sm:$0xff] %v2112
    %4469 = vst [vmem:[#allocation8 + $0x58] sm:$0xff] %v2114
    %4470 = vst [vmem:[#allocation8 + $0x60] sm:$0xff] %v2183
    %4471 = vst [vmem:[#allocation8 + $0x68] sm:$0xff] %v2185
    %4472 = vst [vmem:[#allocation8 + $0x70] sm:$0xff] %v2254
    %4473 = vst [vmem:[#allocation8 + $0x78] sm:$0xff] %v2256
    %4474 = vst [vmem:[#allocation8 + $0x80] sm:$0xff] %v2325
    %4475 = vst [vmem:[#allocation8 + $0x88] sm:$0xff] %v2327
    %4476 = vst [vmem:[#allocation8 + $0x90] sm:$0xff] %v2396
    %4477 = vst [vmem:[#allocation8 + $0x98] sm:$0xff] %v2398
    %4478 = vst [vmem:[#allocation8 + $0xa0] sm:$0xff] %v2467
    %4479 = vst [vmem:[#allocation8 + $0xa8] sm:$0xff] %v2469
    %4480 = vst [vmem:[#allocation8 + $0xb0] sm:$0xff] %v2538
    %4481 = vst [vmem:[#allocation8 + $0xb8] sm:$0xff] %v2540
    %4482 = vst [vmem:[#allocation8 + $0xc0] sm:$0xff] %v2609
    %4483 = vst [vmem:[#allocation8 + $0xc8] sm:$0xff] %v2611
    %4484 = vst [vmem:[#allocation8 + $0xd0] sm:$0xff] %v2680
    %4485 = vst [vmem:[#allocation8 + $0xd8] sm:$0xff] %v2682
    %4486 = vst [vmem:[#allocation8 + $0xe0] sm:$0xff] %v2751
    %4487 = vst [vmem:[#allocation8 + $0xe8] sm:$0xff] %v2753
    %4488 = vst [vmem:[#allocation8 + $0xf0] sm:$0xff] %v2822
    %4489 = vst [vmem:[#allocation8 + $0xf8] sm:$0xff] %v2824
    %4490 = vst [vmem:[#allocation8 + $0x100] sm:$0xff] %v2893
    %4491 = vst [vmem:[#allocation8 + $0x108] sm:$0xff] %v2895
    %4492 = vst [vmem:[#allocation8 + $0x110] sm:$0xff] %v2964
    %4493 = vst [vmem:[#allocation8 + $0x118] sm:$0xff] %v2966
    %4494 = vst [vmem:[#allocation8 + $0x120] sm:$0xff] %v3035
    %4495 = vst [vmem:[#allocation8 + $0x128] sm:$0xff] %v3037
    %4496 = vst [vmem:[#allocation8 + $0x130] sm:$0xff] %v3106
    %4497 = vst [vmem:[#allocation8 + $0x138] sm:$0xff] %v3108
    %4498 = vst [vmem:[#allocation8 + $0x140] sm:$0xff] %v3177
    %4499 = vst [vmem:[#allocation8 + $0x148] sm:$0xff] %v3179
    %4500 = vst [vmem:[#allocation8 + $0x150] sm:$0xff] %v3248
    %4501 = vst [vmem:[#allocation8 + $0x158] sm:$0xff] %v3250
    %4502 = vst [vmem:[#allocation8 + $0x160] sm:$0xff] %v3319
    %4503 = vst [vmem:[#allocation8 + $0x168] sm:$0xff] %v3321
    %4504 = vst [vmem:[#allocation8 + $0x170] sm:$0xff] %v3390
    %4505 = vst [vmem:[#allocation8 + $0x178] sm:$0xff] %v3392
    %4506 = vst [vmem:[#allocation8 + $0x180] sm:$0xff] %v3461
    %4507 = vst [vmem:[#allocation8 + $0x188] sm:$0xff] %v3463
    %4508 = vst [vmem:[#allocation8 + $0x190] sm:$0xff] %v3532
    %4509 = vst [vmem:[#allocation8 + $0x198] sm:$0xff] %v3534
    %4510 = vst [vmem:[#allocation8 + $0x1a0] sm:$0xff] %v3603
    %4511 = vst [vmem:[#allocation8 + $0x1a8] sm:$0xff] %v3605
    %4512 = vst [vmem:[#allocation8 + $0x1b0] sm:$0xff] %v3674
    %4513 = vst [vmem:[#allocation8 + $0x1b8] sm:$0xff] %v3676
    %4514 = vst [vmem:[#allocation8 + $0x1c0] sm:$0xff] %v3745
    %4515 = vst [vmem:[#allocation8 + $0x1c8] sm:$0xff] %v3747
    %4516 = vst [vmem:[#allocation8 + $0x1d0] sm:$0xff] %v3816
    %4517 = vst [vmem:[#allocation8 + $0x1d8] sm:$0xff] %v3818
    %4518 = vst [vmem:[#allocation8 + $0x1e0] sm:$0xff] %v3887
    %4519 = vst [vmem:[#allocation8 + $0x1e8] sm:$0xff] %v3889
    %4520 = vst [vmem:[#allocation8 + $0x1f0] sm:$0xff] %v3958
    %4521 = vst [vmem:[#allocation8 + $0x1f8] sm:$0xff] %v3960
    %4522 = vst [vmem:[#allocation8 + $0x200] sm:$0xff] %v4029
    %4523 = vst [vmem:[#allocation8 + $0x208] sm:$0xff] %v4031
    %4524 = vst [vmem:[#allocation8 + $0x210] sm:$0xff] %v4100
    %4525 = vst [vmem:[#allocation8 + $0x218] sm:$0xff] %v4102
    %4526 = vst [vmem:[#allocation8 + $0x220] sm:$0xff] %v4171
    %4527 = vst [vmem:[#allocation8 + $0x228] sm:$0xff] %v4173
    %4528 = vst [vmem:[#allocation8 + $0x230] sm:$0xff] %v4242
    %4529 = vst [vmem:[#allocation8 + $0x238] sm:$0xff] %v4244
    %4530 = vst [vmem:[#allocation8 + $0x240] sm:$0xff] %v4313
    %4531 = vst [vmem:[#allocation8 + $0x248] sm:$0xff] %v4315
    %4532 = vst [vmem:[#allocation8 + $0x250] sm:$0xff] %v4384
    %4533 = vst [vmem:[#allocation8 + $0x258] sm:$0xff] %v4386
    %4534 = vst [vmem:[#allocation8 + $0x260] sm:$0xff] %v4455
    // Predicated region
    $region26: #{tpu_custom_call.1} parent=1 // pred_check
      _
    $region27: #{tpu_custom_call.1} parent=1 // pred_check_branch
      %4536 = sbr.rel (0) target = $region29
    $region28: #{tpu_custom_call.1} parent=1 // pred_region
      %s4538 = ssub.s32 9856, 9856
      %4539 = vsyncadd [#allocation4], %s4538
      %s4541 = sshll.u32 [#allocation8], 4
      %s4542 = int_to_ptr.vmem [resolvable:$true] %s4541
      %4544 = dma.vmem_to_hbm [thread:$0]  %s4542, 9856, %s3, [#allocation4]
    $region29: #{tpu_custom_call.1} parent=1 // pred_fallthru
      _
    // Predicated region
    $region30: #{tpu_custom_call.1} parent=1 // pred_check
      _
    $region31: #{tpu_custom_call.1} parent=1 // pred_check_branch
      %4546 = sbr.rel (0) target = $region33
    $region32: #{tpu_custom_call.1} parent=1 // pred_region
      %4547 = dma.done [#allocation4], 9856
    $region33: #{tpu_custom_call.1} parent=1 // pred_fallthru
      _
    %4548 = vsyncpa [#allocation3], 1
    %4549 = vsyncpa [#allocation6], 1
    %4550 = vsyncpa [#allocation4], 1

</llo_original>
